<compile_context>
chip_gen: v7x
topology: tpu7x:2x2x1
jax: 0.10.0
libtpu: 0.0.40
codegen_flags: <defaults>
</compile_context>

<pallas_src>
import jax
import jax.numpy as jnp
from jax.experimental import pallas as pl
from jax.experimental.pallas import tpu as pltpu

WDT = jnp.bfloat16   # matmul operand dtype (accumulation stays f32)


# ----------------------------- fused Pallas kernel -------------------------

def fused_decoder_kernel(
    x_ref,
    up0_w, up0_s, up0_t,
    dec0_w, dec0_s, dec0_t,
    r0_w1, r0_s1, r0_t1, r0_w2, r0_b2, r0_se1, r0_se2,
    up1_w, up1_s, up1_t,
    dec1_w, dec1_s, dec1_t,
    r1_w1, r1_s1, r1_t1, r1_w2, r1_b2, r1_se1, r1_se2,
    up2_w, up2_s, up2_t,
    dec2_w, dec2_b,
    o_ref,
):
    def mm(a, w_ref):
        # bf16 MXU matmul, f32 accumulation
        return jnp.dot(a.astype(w_ref.dtype), w_ref[...],
                       preferred_element_type=jnp.float32)

    def bn_swish(y, s_ref, t_ref):
        # eval-mode BN (linear bias already folded into t_ref) + Swish, in f32
        y = y * s_ref[...] + t_ref[...]
        return y * jax.nn.sigmoid(y)

    def residual(h, w1, s1, t1, w2, b2, se1, se2):
        # ResidualBlock on flattened (tb, H0*H1); kron-expanded weights make
        # the permute/reshape pair of the PyTorch module unnecessary.
        # 0.1 residual scale is pre-folded into w2/b2; se1 carries the exact
        # 10x compensation so the SE gate is unchanged.
        t = bn_swish(mm(h, w1), s1, t1)
        y = mm(t, w2) + b2[...]                  # = 0.1 * (original y)
        g = jnp.maximum(mm(y, se1), 0.0)         # SE squeeze+fc1 (pool folded)
        gate = jax.nn.sigmoid(mm(g, se2))        # SE fc2 + broadcast (folded)
        return h + y * gate                      # == h + 0.1 * y_orig * gate

    h = x_ref[...].astype(jnp.float32)
    h = bn_swish(mm(h, up0_w), up0_s, up0_t)            # up_sample_blocks[0]
    h = bn_swish(mm(h, dec0_w), dec0_s, dec0_t)         # decoder_blocks[0]
    h = residual(h, r0_w1, r0_s1, r0_t1, r0_w2, r0_b2, r0_se1, r0_se2)
    h = bn_swish(mm(h, up1_w), up1_s, up1_t)            # up_sample_blocks[1]
    h = bn_swish(mm(h, dec1_w), dec1_s, dec1_t)         # decoder_blocks[1]
    h = residual(h, r1_w1, r1_s1, r1_t1, r1_w2, r1_b2, r1_se1, r1_se2)
    h = bn_swish(mm(h, up2_w), up2_s, up2_t)            # up_sample_blocks[2]
    o_ref[...] = mm(h, dec2_w) + dec2_b[...]            # decoder_blocks[2]


# ------------------------------ call wrapper --------------------------------

def _round_up(x, m):
    return (x + m - 1) // m * m


def _const_index_map(ndim):
    # grid-invariant block: fetched once, VMEM-resident across batch tiles
    return lambda b: (0,) * ndim


def decoder_forward(params, x, data_config, cfg, batch_tile=256):
    B, latent_dim = x.shape
    N = data_config['num_class'] * data_config['num_each_class']
    D = cfg['input_dim']
    out_w = N * D

    # Batch tiling: >= 8 rows (f32 sublane group), up to `batch_tile` rows per
    # grid step (256 rows fills the v6e/v7x MXU row dimension).
    tb = min(batch_tile, max(8, _round_up(B, 8)))
    b_pad = _round_up(B, tb)
    if b_pad != B:
        x = jnp.pad(x, ((0, b_pad - B), (0, 0)))
    grid = (b_pad // tb,)

    x_spec = pl.BlockSpec((tb, latent_dim), lambda b: (b, 0))
    w_specs = [pl.BlockSpec(w.shape, _const_index_map(w.ndim)) for w in params]
    out_spec = pl.BlockSpec((tb, out_w), lambda b: (b, 0))

    # Explicit VMEM budget: resident weights (double-buffer accounted), live
    # f32 activations, pipelined x/out tiles, plus slop.  Clamped so it stays
    # legal on v7x's smaller (64 MiB physical) VMEM.
    weight_bytes = sum(int(a.size) * a.dtype.itemsize for a in params)
    max_width = max(a.shape[-1] for a in params)
    act_bytes = 12 * tb * max_width * 4
    io_bytes = 2 * tb * (latent_dim + out_w) * 4
    vmem_limit = 2 * weight_bytes + act_bytes + io_bytes + (4 << 20)
    vmem_limit = int(min(max(vmem_limit, 16 << 20), 48 << 20))

    out = pl.pallas_call(
        fused_decoder_kernel,
        out_shape=jax.ShapeDtypeStruct((b_pad, out_w), jnp.float32),
        grid=grid,
        in_specs=[x_spec] + w_specs,
        out_specs=out_spec,
        compiler_params=pltpu.CompilerParams(
            dimension_semantics=("parallel",),   # v7x: shard batch over 2 TCs
            vmem_limit_bytes=vmem_limit),
    )(x, *params)
    return out[:B].reshape(B, N, D)


# --------------------------- parameter building ----------------------------

def _init_linear(key, din, dout):
    k1, k2 = jax.random.split(key)
    bound = 1.0 / (din ** 0.5)
    w = jax.random.uniform(k1, (din, dout), jnp.float32, -bound, bound)
    b = jax.random.uniform(k2, (1, dout), jnp.float32, -bound, bound)
    return w, b


def _init_bn(key, d, eps=1e-5):
    k1, k2 = jax.random.split(key)
    gamma = 1.0 + 0.1 * jax.random.normal(k1, (1, d), jnp.float32)
    beta = 0.1 * jax.random.normal(k2, (1, d), jnp.float32)
    # eval-mode BN with running_mean=0, running_var=1 -> scale/shift
    scale = gamma / jnp.sqrt(1.0 + eps)
    shift = beta
    return scale, shift


def _make_kernel_mask(n_out, n_in, period=3):
    j = jnp.arange(n_out)[:, None]
    i = jnp.arange(n_in)[None, :]
    return ((i + j) % period != 0).astype(jnp.float32)   # (n_out, n_in)


def _expand_block_mask(mask, d_in, d_out):
    # (n_out, n_in) row-mask -> (n_in*d_in, n_out*d_out) block mask on W
    return jnp.kron(jnp.transpose(mask), jnp.ones((d_in, d_out), jnp.float32))


def _build_linear_bn(k_lin, k_bn, din, dout, mask=None):
    """Linear -> BN (eval) with bias folded into the shift; weight pre-masked."""
    w, b = _init_linear(k_lin, din, dout)
    if mask is not None:
        w = w * mask
    scale, shift = _init_bn(k_bn, dout)
    shift_f = b * scale + shift
    return [w.astype(WDT), scale, shift_f]


def _build_residual(keys, H0, H1):
    """ResidualBlock params, pre-expanded to flattened (H0*H1) layout."""
    k1, kb, k2, ks1, ks2 = keys
    w1, b1 = _init_linear(k1, H0, H0)
    scale, shift = _init_bn(kb, H0)
    w2, b2 = _init_linear(k2, H0, H0)
    hr = max(H0 // 4, 1)
    wse1, _ = _init_linear(ks1, H0, hr)    # SE linears: bias-free
    wse2, _ = _init_linear(ks2, hr, H0)

    eye_h1 = jnp.eye(H1, dtype=jnp.float32)
    w1k = jnp.kron(w1, eye_h1)                          # (H0*H1, H0*H1)
    w2k = jnp.kron(w2, eye_h1) * 0.1                    # 0.1 residual fold
    scale_f = jnp.repeat(scale, H1, axis=1)             # (1, H0*H1)
    shift_f = jnp.repeat(b1 * scale + shift, H1, axis=1)
    b2_f = jnp.repeat(b2, H1, axis=1) * 0.1             # 0.1 residual fold

    eye_h0 = jnp.eye(H0, dtype=jnp.float32)
    pool = jnp.kron(eye_h0, jnp.ones((H1, 1), jnp.float32)) / H1   # (H0*H1, H0)
    expand = jnp.kron(eye_h0, jnp.ones((1, H1), jnp.float32))      # (H0, H0*H1)
    wse1_f = (pool @ wse1) * 10.0      # exact compensation for the 0.1 fold
    wse2_f = wse2 @ expand             # (hr, H0*H1)

    # Pad SE bottleneck to 8 lanes (one sublane group): zero-padded columns of
    # wse1_f / rows of wse2_f are exact no-ops but avoid 2/4-lane MXU pushes.
    hr_pad = 8
    if hr < hr_pad:
        wse1_f = jnp.pad(wse1_f, ((0, 0), (0, hr_pad - hr)))
        wse2_f = jnp.pad(wse2_f, ((0, hr_pad - hr), (0, 0)))

    return [w1k.astype(WDT), scale_f, shift_f, w2k.astype(WDT), b2_f,
            wse1_f.astype(WDT), wse2_f.astype(WDT)]


def build_decoder_params(key, data_config, cfg, latent_dim):
    num_class = data_config['num_class']
    num_each = data_config['num_each_class']
    out_dim = cfg['input_dim']

    ks = jax.random.split(key, 32)
    ki = iter(ks)
    p = []

    # up_sample_blocks[0]: latent -> (se3, ed3)
    d_out = cfg['sparse_embedding3'] * cfg['embedding_dim3']
    p += _build_linear_bn(next(ki), next(ki), latent_dim, d_out)

    # decoder_blocks[0]: (se3, ed3) -> (le2, ed2)   (mask pre-folded)
    nin, din = cfg['sparse_embedding3'], cfg['embedding_dim3']
    nout, dout = cfg['linear_embedding2'], cfg['embedding_dim2']
    mask = _expand_block_mask(_make_kernel_mask(nout, nin), din, dout)
    p += _build_linear_bn(next(ki), next(ki), nin * din, nout * dout, mask=mask)

    # residual_blocks[0]: hidden_format = (le2, ed2)
    p += _build_residual([next(ki) for _ in range(5)],
                         cfg['linear_embedding2'], cfg['embedding_dim2'])

    # up_sample_blocks[1]: (le2, ed2) -> (se2, ed2)
    d_in = cfg['linear_embedding2'] * cfg['embedding_dim2']
    d_out = cfg['sparse_embedding2'] * cfg['embedding_dim2']
    p += _build_linear_bn(next(ki), next(ki), d_in, d_out)

    # decoder_blocks[1]: (se2, ed2) -> (le1, ed1)
    nin, din = cfg['sparse_embedding2'], cfg['embedding_dim2']
    nout, dout = cfg['linear_embedding1'], cfg['embedding_dim1']
    mask = _expand_block_mask(_make_kernel_mask(nout, nin), din, dout)
    p += _build_linear_bn(next(ki), next(ki), nin * din, nout * dout, mask=mask)

    # residual_blocks[1]: hidden_format = (le1, ed1)
    p += _build_residual([next(ki) for _ in range(5)],
                         cfg['linear_embedding1'], cfg['embedding_dim1'])

    # up_sample_blocks[2]: (le1, ed1) -> (se1, ed1)
    d_in = cfg['linear_embedding1'] * cfg['embedding_dim1']
    d_out = cfg['sparse_embedding1'] * cfg['embedding_dim1']
    p += _build_linear_bn(next(ki), next(ki), d_in, d_out)

    # decoder_blocks[2]: AutoSparseLinear (se1, ed1) -> (N, output_dim)
    nin, din = cfg['sparse_embedding1'], cfg['embedding_dim1']
    nout, dout = num_class * num_each, out_dim
    w, b = _init_linear(next(ki), nin * din, nout * dout)
    mask = _expand_block_mask(_make_kernel_mask(nout, nin), din, dout)
    p += [(w * mask).astype(WDT), b]

    return tuple(p)


# ----------------------------------- main -----------------------------------

if __name__ == "__main__":
    data_config = dict(num_class=4, num_each_class=4)
    decoder_config = dict(
        input_dim=8,
        sparse_embedding3=8, embedding_dim3=16,
        linear_embedding2=8, embedding_dim2=16, sparse_embedding2=16,
        linear_embedding1=16, embedding_dim1=16, sparse_embedding1=32,
        bn_momentum=0.01,
    )
    latent_dim = 32
    B = 2

    key = jax.random.PRNGKey(0)
    k_params, k_x = jax.random.split(key)
    params = build_decoder_params(k_params, data_config, decoder_config,
                                  latent_dim)
    x = jax.random.normal(k_x, (B, latent_dim), jnp.float32)

    out = decoder_forward(params, x, data_config, decoder_config)
    out = jax.block_until_ready(out)

    expected = (B, data_config['num_class'] * data_config['num_each_class'],
                decoder_config['input_dim'])
    assert out.shape == expected, (out.shape, expected)
    assert bool(jnp.all(jnp.isfinite(out)))
    print("KERNEL_OK")
</pallas_src>

<mosaic_0001>
module attributes {stable_mosaic.version = 11 : i64} {
  func.func @fused_decoder_kernel(%arg0: i32, %arg1: memref<8x32xf32, #tpu.memory_space<vmem>>, %arg2: memref<32x128xbf16, #tpu.memory_space<vmem>>, %arg3: memref<1x128xf32, #tpu.memory_space<vmem>>, %arg4: memref<1x128xf32, #tpu.memory_space<vmem>>, %arg5: memref<128x128xbf16, #tpu.memory_space<vmem>>, %arg6: memref<1x128xf32, #tpu.memory_space<vmem>>, %arg7: memref<1x128xf32, #tpu.memory_space<vmem>>, %arg8: memref<128x128xbf16, #tpu.memory_space<vmem>>, %arg9: memref<1x128xf32, #tpu.memory_space<vmem>>, %arg10: memref<1x128xf32, #tpu.memory_space<vmem>>, %arg11: memref<128x128xbf16, #tpu.memory_space<vmem>>, %arg12: memref<1x128xf32, #tpu.memory_space<vmem>>, %arg13: memref<128x8xbf16, #tpu.memory_space<vmem>>, %arg14: memref<8x128xbf16, #tpu.memory_space<vmem>>, %arg15: memref<128x256xbf16, #tpu.memory_space<vmem>>, %arg16: memref<1x256xf32, #tpu.memory_space<vmem>>, %arg17: memref<1x256xf32, #tpu.memory_space<vmem>>, %arg18: memref<256x256xbf16, #tpu.memory_space<vmem>>, %arg19: memref<1x256xf32, #tpu.memory_space<vmem>>, %arg20: memref<1x256xf32, #tpu.memory_space<vmem>>, %arg21: memref<256x256xbf16, #tpu.memory_space<vmem>>, %arg22: memref<1x256xf32, #tpu.memory_space<vmem>>, %arg23: memref<1x256xf32, #tpu.memory_space<vmem>>, %arg24: memref<256x256xbf16, #tpu.memory_space<vmem>>, %arg25: memref<1x256xf32, #tpu.memory_space<vmem>>, %arg26: memref<256x8xbf16, #tpu.memory_space<vmem>>, %arg27: memref<8x256xbf16, #tpu.memory_space<vmem>>, %arg28: memref<256x512xbf16, #tpu.memory_space<vmem>>, %arg29: memref<1x512xf32, #tpu.memory_space<vmem>>, %arg30: memref<1x512xf32, #tpu.memory_space<vmem>>, %arg31: memref<512x128xbf16, #tpu.memory_space<vmem>>, %arg32: memref<1x128xf32, #tpu.memory_space<vmem>>, %arg33: memref<8x128xf32, #tpu.memory_space<vmem>>) attributes {dimension_semantics = [#tpu.dimension_semantics<parallel>], iteration_bounds = array<i64: 1>, scalar_prefetch = 0 : i64, scratch_operands = 0 : i64, tpu.core_type = #tpu.core_type<tc>, window_params = [{transform_indices = @transform_0, window_bounds = array<i64: 8, 32>}, {pipeline_mode = #tpu.pipeline_mode<synchronous>, transform_indices = @transform_1, window_bounds = array<i64: 32, 128>}, {pipeline_mode = #tpu.pipeline_mode<synchronous>, transform_indices = @transform_2, window_bounds = array<i64: 1, 128>}, {pipeline_mode = #tpu.pipeline_mode<synchronous>, transform_indices = @transform_3, window_bounds = array<i64: 1, 128>}, {pipeline_mode = #tpu.pipeline_mode<synchronous>, transform_indices = @transform_4, window_bounds = array<i64: 128, 128>}, {pipeline_mode = #tpu.pipeline_mode<synchronous>, transform_indices = @transform_5, window_bounds = array<i64: 1, 128>}, {pipeline_mode = #tpu.pipeline_mode<synchronous>, transform_indices = @transform_6, window_bounds = array<i64: 1, 128>}, {pipeline_mode = #tpu.pipeline_mode<synchronous>, transform_indices = @transform_7, window_bounds = array<i64: 128, 128>}, {pipeline_mode = #tpu.pipeline_mode<synchronous>, transform_indices = @transform_8, window_bounds = array<i64: 1, 128>}, {pipeline_mode = #tpu.pipeline_mode<synchronous>, transform_indices = @transform_9, window_bounds = array<i64: 1, 128>}, {pipeline_mode = #tpu.pipeline_mode<synchronous>, transform_indices = @transform_10, window_bounds = array<i64: 128, 128>}, {pipeline_mode = #tpu.pipeline_mode<synchronous>, transform_indices = @transform_11, window_bounds = array<i64: 1, 128>}, {pipeline_mode = #tpu.pipeline_mode<synchronous>, transform_indices = @transform_12, window_bounds = array<i64: 128, 8>}, {pipeline_mode = #tpu.pipeline_mode<synchronous>, transform_indices = @transform_13, window_bounds = array<i64: 8, 128>}, {pipeline_mode = #tpu.pipeline_mode<synchronous>, transform_indices = @transform_14, window_bounds = array<i64: 128, 256>}, {pipeline_mode = #tpu.pipeline_mode<synchronous>, transform_indices = @transform_15, window_bounds = array<i64: 1, 256>}, {pipeline_mode = #tpu.pipeline_mode<synchronous>, transform_indices = @transform_16, window_bounds = array<i64: 1, 256>}, {pipeline_mode = #tpu.pipeline_mode<synchronous>, transform_indices = @transform_17, window_bounds = array<i64: 256, 256>}, {pipeline_mode = #tpu.pipeline_mode<synchronous>, transform_indices = @transform_18, window_bounds = array<i64: 1, 256>}, {pipeline_mode = #tpu.pipeline_mode<synchronous>, transform_indices = @transform_19, window_bounds = array<i64: 1, 256>}, {pipeline_mode = #tpu.pipeline_mode<synchronous>, transform_indices = @transform_20, window_bounds = array<i64: 256, 256>}, {pipeline_mode = #tpu.pipeline_mode<synchronous>, transform_indices = @transform_21, window_bounds = array<i64: 1, 256>}, {pipeline_mode = #tpu.pipeline_mode<synchronous>, transform_indices = @transform_22, window_bounds = array<i64: 1, 256>}, {pipeline_mode = #tpu.pipeline_mode<synchronous>, transform_indices = @transform_23, window_bounds = array<i64: 256, 256>}, {pipeline_mode = #tpu.pipeline_mode<synchronous>, transform_indices = @transform_24, window_bounds = array<i64: 1, 256>}, {pipeline_mode = #tpu.pipeline_mode<synchronous>, transform_indices = @transform_25, window_bounds = array<i64: 256, 8>}, {pipeline_mode = #tpu.pipeline_mode<synchronous>, transform_indices = @transform_26, window_bounds = array<i64: 8, 256>}, {pipeline_mode = #tpu.pipeline_mode<synchronous>, transform_indices = @transform_27, window_bounds = array<i64: 256, 512>}, {pipeline_mode = #tpu.pipeline_mode<synchronous>, transform_indices = @transform_28, window_bounds = array<i64: 1, 512>}, {pipeline_mode = #tpu.pipeline_mode<synchronous>, transform_indices = @transform_29, window_bounds = array<i64: 1, 512>}, {pipeline_mode = #tpu.pipeline_mode<synchronous>, transform_indices = @transform_30, window_bounds = array<i64: 512, 128>}, {pipeline_mode = #tpu.pipeline_mode<synchronous>, transform_indices = @transform_31, window_bounds = array<i64: 1, 128>}, {transform_indices = @transform_32, window_bounds = array<i64: 8, 128>}]} {
    %c0 = arith.constant 0 : index
    %c0_0 = arith.constant 0 : index
    %0 = vector.load %arg1[%c0, %c0_0] : memref<8x32xf32, #tpu.memory_space<vmem>>, vector<8x32xf32>
    %1 = arith.truncf %0 : vector<8x32xf32> to vector<8x32xbf16>
    %c0_1 = arith.constant 0 : index
    %c0_2 = arith.constant 0 : index
    %2 = vector.load %arg2[%c0_1, %c0_2] : memref<32x128xbf16, #tpu.memory_space<vmem>>, vector<32x128xbf16>
    %cst = arith.constant dense<0.000000e+00> : vector<8x128xf32>
    %3 = tpu.matmul %1, %2, %cst {dimension_numbers = #tpu.dot_dimension_numbers<[1], [0], [0], [1], [0, 0, 1, 1], [], []>} : vector<8x32xbf16>, vector<32x128xbf16>, vector<8x128xf32> -> vector<8x128xf32>
    %c0_3 = arith.constant 0 : index
    %c0_4 = arith.constant 0 : index
    %4 = vector.load %arg3[%c0_3, %c0_4] : memref<1x128xf32, #tpu.memory_space<vmem>>, vector<1x128xf32>
    %5 = vector.broadcast %4 : vector<1x128xf32> to vector<8x128xf32>
    %6 = arith.mulf %3, %5 : vector<8x128xf32>
    %c0_5 = arith.constant 0 : index
    %c0_6 = arith.constant 0 : index
    %7 = vector.load %arg4[%c0_5, %c0_6] : memref<1x128xf32, #tpu.memory_space<vmem>>, vector<1x128xf32>
    %8 = vector.broadcast %7 : vector<1x128xf32> to vector<8x128xf32>
    %9 = arith.addf %6, %8 : vector<8x128xf32>
    %10 = arith.negf %9 : vector<8x128xf32>
    %11 = math.exp %10 : vector<8x128xf32>
    %cst_7 = arith.constant 1.000000e+00 : f32
    %12 = vector.broadcast %cst_7 : f32 to vector<8x128xf32>
    %13 = arith.addf %12, %11 : vector<8x128xf32>
    %14 = arith.divf %12, %13 : vector<8x128xf32>
    %15 = arith.mulf %9, %14 : vector<8x128xf32>
    %16 = arith.truncf %15 : vector<8x128xf32> to vector<8x128xbf16>
    %c0_8 = arith.constant 0 : index
    %c0_9 = arith.constant 0 : index
    %17 = vector.load %arg5[%c0_8, %c0_9] : memref<128x128xbf16, #tpu.memory_space<vmem>>, vector<128x128xbf16>
    %cst_10 = arith.constant dense<0.000000e+00> : vector<8x128xf32>
    %18 = tpu.matmul %16, %17, %cst_10 {dimension_numbers = #tpu.dot_dimension_numbers<[1], [0], [0], [1], [0, 0, 1, 1], [], []>} : vector<8x128xbf16>, vector<128x128xbf16>, vector<8x128xf32> -> vector<8x128xf32>
    %c0_11 = arith.constant 0 : index
    %c0_12 = arith.constant 0 : index
    %19 = vector.load %arg6[%c0_11, %c0_12] : memref<1x128xf32, #tpu.memory_space<vmem>>, vector<1x128xf32>
    %20 = vector.broadcast %19 : vector<1x128xf32> to vector<8x128xf32>
    %21 = arith.mulf %18, %20 : vector<8x128xf32>
    %c0_13 = arith.constant 0 : index
    %c0_14 = arith.constant 0 : index
    %22 = vector.load %arg7[%c0_13, %c0_14] : memref<1x128xf32, #tpu.memory_space<vmem>>, vector<1x128xf32>
    %23 = vector.broadcast %22 : vector<1x128xf32> to vector<8x128xf32>
    %24 = arith.addf %21, %23 : vector<8x128xf32>
    %25 = arith.negf %24 : vector<8x128xf32>
    %26 = math.exp %25 : vector<8x128xf32>
    %cst_15 = arith.constant 1.000000e+00 : f32
    %27 = vector.broadcast %cst_15 : f32 to vector<8x128xf32>
    %28 = arith.addf %27, %26 : vector<8x128xf32>
    %29 = arith.divf %27, %28 : vector<8x128xf32>
    %30 = arith.mulf %24, %29 : vector<8x128xf32>
    %31 = arith.truncf %30 : vector<8x128xf32> to vector<8x128xbf16>
    %c0_16 = arith.constant 0 : index
    %c0_17 = arith.constant 0 : index
    %32 = vector.load %arg8[%c0_16, %c0_17] : memref<128x128xbf16, #tpu.memory_space<vmem>>, vector<128x128xbf16>
    %cst_18 = arith.constant dense<0.000000e+00> : vector<8x128xf32>
    %33 = tpu.matmul %31, %32, %cst_18 {dimension_numbers = #tpu.dot_dimension_numbers<[1], [0], [0], [1], [0, 0, 1, 1], [], []>} : vector<8x128xbf16>, vector<128x128xbf16>, vector<8x128xf32> -> vector<8x128xf32>
    %c0_19 = arith.constant 0 : index
    %c0_20 = arith.constant 0 : index
    %34 = vector.load %arg9[%c0_19, %c0_20] : memref<1x128xf32, #tpu.memory_space<vmem>>, vector<1x128xf32>
    %35 = vector.broadcast %34 : vector<1x128xf32> to vector<8x128xf32>
    %36 = arith.mulf %33, %35 : vector<8x128xf32>
    %c0_21 = arith.constant 0 : index
    %c0_22 = arith.constant 0 : index
    %37 = vector.load %arg10[%c0_21, %c0_22] : memref<1x128xf32, #tpu.memory_space<vmem>>, vector<1x128xf32>
    %38 = vector.broadcast %37 : vector<1x128xf32> to vector<8x128xf32>
    %39 = arith.addf %36, %38 : vector<8x128xf32>
    %40 = arith.negf %39 : vector<8x128xf32>
    %41 = math.exp %40 : vector<8x128xf32>
    %cst_23 = arith.constant 1.000000e+00 : f32
    %42 = vector.broadcast %cst_23 : f32 to vector<8x128xf32>
    %43 = arith.addf %42, %41 : vector<8x128xf32>
    %44 = arith.divf %42, %43 : vector<8x128xf32>
    %45 = arith.mulf %39, %44 : vector<8x128xf32>
    %46 = arith.truncf %45 : vector<8x128xf32> to vector<8x128xbf16>
    %c0_24 = arith.constant 0 : index
    %c0_25 = arith.constant 0 : index
    %47 = vector.load %arg11[%c0_24, %c0_25] : memref<128x128xbf16, #tpu.memory_space<vmem>>, vector<128x128xbf16>
    %cst_26 = arith.constant dense<0.000000e+00> : vector<8x128xf32>
    %48 = tpu.matmul %46, %47, %cst_26 {dimension_numbers = #tpu.dot_dimension_numbers<[1], [0], [0], [1], [0, 0, 1, 1], [], []>} : vector<8x128xbf16>, vector<128x128xbf16>, vector<8x128xf32> -> vector<8x128xf32>
    %c0_27 = arith.constant 0 : index
    %c0_28 = arith.constant 0 : index
    %49 = vector.load %arg12[%c0_27, %c0_28] : memref<1x128xf32, #tpu.memory_space<vmem>>, vector<1x128xf32>
    %50 = vector.broadcast %49 : vector<1x128xf32> to vector<8x128xf32>
    %51 = arith.addf %48, %50 : vector<8x128xf32>
    %52 = arith.truncf %51 : vector<8x128xf32> to vector<8x128xbf16>
    %c0_29 = arith.constant 0 : index
    %c0_30 = arith.constant 0 : index
    %53 = vector.load %arg13[%c0_29, %c0_30] : memref<128x8xbf16, #tpu.memory_space<vmem>>, vector<128x8xbf16>
    %cst_31 = arith.constant dense<0.000000e+00> : vector<8x8xf32>
    %54 = tpu.matmul %52, %53, %cst_31 {dimension_numbers = #tpu.dot_dimension_numbers<[1], [0], [0], [1], [0, 0, 1, 1], [], []>} : vector<8x128xbf16>, vector<128x8xbf16>, vector<8x8xf32> -> vector<8x8xf32>
    %cst_32 = arith.constant 0.000000e+00 : f32
    %55 = vector.broadcast %cst_32 : f32 to vector<8x8xf32>
    %56 = arith.maximumf %54, %55 : vector<8x8xf32>
    %57 = arith.truncf %56 : vector<8x8xf32> to vector<8x8xbf16>
    %c0_33 = arith.constant 0 : index
    %c0_34 = arith.constant 0 : index
    %58 = vector.load %arg14[%c0_33, %c0_34] : memref<8x128xbf16, #tpu.memory_space<vmem>>, vector<8x128xbf16>
    %cst_35 = arith.constant dense<0.000000e+00> : vector<8x128xf32>
    %59 = tpu.matmul %57, %58, %cst_35 {dimension_numbers = #tpu.dot_dimension_numbers<[1], [0], [0], [1], [0, 0, 1, 1], [], []>} : vector<8x8xbf16>, vector<8x128xbf16>, vector<8x128xf32> -> vector<8x128xf32>
    %60 = arith.negf %59 : vector<8x128xf32>
    %61 = math.exp %60 : vector<8x128xf32>
    %cst_36 = arith.constant 1.000000e+00 : f32
    %62 = vector.broadcast %cst_36 : f32 to vector<8x128xf32>
    %63 = arith.addf %62, %61 : vector<8x128xf32>
    %64 = arith.divf %62, %63 : vector<8x128xf32>
    %65 = arith.mulf %51, %64 : vector<8x128xf32>
    %66 = arith.addf %30, %65 : vector<8x128xf32>
    %67 = arith.truncf %66 : vector<8x128xf32> to vector<8x128xbf16>
    %c0_37 = arith.constant 0 : index
    %c0_38 = arith.constant 0 : index
    %68 = vector.load %arg15[%c0_37, %c0_38] : memref<128x256xbf16, #tpu.memory_space<vmem>>, vector<128x256xbf16>
    %cst_39 = arith.constant dense<0.000000e+00> : vector<8x256xf32>
    %69 = tpu.matmul %67, %68, %cst_39 {dimension_numbers = #tpu.dot_dimension_numbers<[1], [0], [0], [1], [0, 0, 1, 1], [], []>} : vector<8x128xbf16>, vector<128x256xbf16>, vector<8x256xf32> -> vector<8x256xf32>
    %c0_40 = arith.constant 0 : index
    %c0_41 = arith.constant 0 : index
    %70 = vector.load %arg16[%c0_40, %c0_41] : memref<1x256xf32, #tpu.memory_space<vmem>>, vector<1x256xf32>
    %71 = vector.broadcast %70 : vector<1x256xf32> to vector<8x256xf32>
    %72 = arith.mulf %69, %71 : vector<8x256xf32>
    %c0_42 = arith.constant 0 : index
    %c0_43 = arith.constant 0 : index
    %73 = vector.load %arg17[%c0_42, %c0_43] : memref<1x256xf32, #tpu.memory_space<vmem>>, vector<1x256xf32>
    %74 = vector.broadcast %73 : vector<1x256xf32> to vector<8x256xf32>
    %75 = arith.addf %72, %74 : vector<8x256xf32>
    %76 = arith.negf %75 : vector<8x256xf32>
    %77 = math.exp %76 : vector<8x256xf32>
    %cst_44 = arith.constant 1.000000e+00 : f32
    %78 = vector.broadcast %cst_44 : f32 to vector<8x256xf32>
    %79 = arith.addf %78, %77 : vector<8x256xf32>
    %80 = arith.divf %78, %79 : vector<8x256xf32>
    %81 = arith.mulf %75, %80 : vector<8x256xf32>
    %82 = arith.truncf %81 : vector<8x256xf32> to vector<8x256xbf16>
    %c0_45 = arith.constant 0 : index
    %c0_46 = arith.constant 0 : index
    %83 = vector.load %arg18[%c0_45, %c0_46] : memref<256x256xbf16, #tpu.memory_space<vmem>>, vector<256x256xbf16>
    %cst_47 = arith.constant dense<0.000000e+00> : vector<8x256xf32>
    %84 = tpu.matmul %82, %83, %cst_47 {dimension_numbers = #tpu.dot_dimension_numbers<[1], [0], [0], [1], [0, 0, 1, 1], [], []>} : vector<8x256xbf16>, vector<256x256xbf16>, vector<8x256xf32> -> vector<8x256xf32>
    %c0_48 = arith.constant 0 : index
    %c0_49 = arith.constant 0 : index
    %85 = vector.load %arg19[%c0_48, %c0_49] : memref<1x256xf32, #tpu.memory_space<vmem>>, vector<1x256xf32>
    %86 = vector.broadcast %85 : vector<1x256xf32> to vector<8x256xf32>
    %87 = arith.mulf %84, %86 : vector<8x256xf32>
    %c0_50 = arith.constant 0 : index
    %c0_51 = arith.constant 0 : index
    %88 = vector.load %arg20[%c0_50, %c0_51] : memref<1x256xf32, #tpu.memory_space<vmem>>, vector<1x256xf32>
    %89 = vector.broadcast %88 : vector<1x256xf32> to vector<8x256xf32>
    %90 = arith.addf %87, %89 : vector<8x256xf32>
    %91 = arith.negf %90 : vector<8x256xf32>
    %92 = math.exp %91 : vector<8x256xf32>
    %cst_52 = arith.constant 1.000000e+00 : f32
    %93 = vector.broadcast %cst_52 : f32 to vector<8x256xf32>
    %94 = arith.addf %93, %92 : vector<8x256xf32>
    %95 = arith.divf %93, %94 : vector<8x256xf32>
    %96 = arith.mulf %90, %95 : vector<8x256xf32>
    %97 = arith.truncf %96 : vector<8x256xf32> to vector<8x256xbf16>
    %c0_53 = arith.constant 0 : index
    %c0_54 = arith.constant 0 : index
    %98 = vector.load %arg21[%c0_53, %c0_54] : memref<256x256xbf16, #tpu.memory_space<vmem>>, vector<256x256xbf16>
    %cst_55 = arith.constant dense<0.000000e+00> : vector<8x256xf32>
    %99 = tpu.matmul %97, %98, %cst_55 {dimension_numbers = #tpu.dot_dimension_numbers<[1], [0], [0], [1], [0, 0, 1, 1], [], []>} : vector<8x256xbf16>, vector<256x256xbf16>, vector<8x256xf32> -> vector<8x256xf32>
    %c0_56 = arith.constant 0 : index
    %c0_57 = arith.constant 0 : index
    %100 = vector.load %arg22[%c0_56, %c0_57] : memref<1x256xf32, #tpu.memory_space<vmem>>, vector<1x256xf32>
    %101 = vector.broadcast %100 : vector<1x256xf32> to vector<8x256xf32>
    %102 = arith.mulf %99, %101 : vector<8x256xf32>
    %c0_58 = arith.constant 0 : index
    %c0_59 = arith.constant 0 : index
    %103 = vector.load %arg23[%c0_58, %c0_59] : memref<1x256xf32, #tpu.memory_space<vmem>>, vector<1x256xf32>
    %104 = vector.broadcast %103 : vector<1x256xf32> to vector<8x256xf32>
    %105 = arith.addf %102, %104 : vector<8x256xf32>
    %106 = arith.negf %105 : vector<8x256xf32>
    %107 = math.exp %106 : vector<8x256xf32>
    %cst_60 = arith.constant 1.000000e+00 : f32
    %108 = vector.broadcast %cst_60 : f32 to vector<8x256xf32>
    %109 = arith.addf %108, %107 : vector<8x256xf32>
    %110 = arith.divf %108, %109 : vector<8x256xf32>
    %111 = arith.mulf %105, %110 : vector<8x256xf32>
    %112 = arith.truncf %111 : vector<8x256xf32> to vector<8x256xbf16>
    %c0_61 = arith.constant 0 : index
    %c0_62 = arith.constant 0 : index
    %113 = vector.load %arg24[%c0_61, %c0_62] : memref<256x256xbf16, #tpu.memory_space<vmem>>, vector<256x256xbf16>
    %cst_63 = arith.constant dense<0.000000e+00> : vector<8x256xf32>
    %114 = tpu.matmul %112, %113, %cst_63 {dimension_numbers = #tpu.dot_dimension_numbers<[1], [0], [0], [1], [0, 0, 1, 1], [], []>} : vector<8x256xbf16>, vector<256x256xbf16>, vector<8x256xf32> -> vector<8x256xf32>
    %c0_64 = arith.constant 0 : index
    %c0_65 = arith.constant 0 : index
    %115 = vector.load %arg25[%c0_64, %c0_65] : memref<1x256xf32, #tpu.memory_space<vmem>>, vector<1x256xf32>
    %116 = vector.broadcast %115 : vector<1x256xf32> to vector<8x256xf32>
    %117 = arith.addf %114, %116 : vector<8x256xf32>
    %118 = arith.truncf %117 : vector<8x256xf32> to vector<8x256xbf16>
    %c0_66 = arith.constant 0 : index
    %c0_67 = arith.constant 0 : index
    %119 = vector.load %arg26[%c0_66, %c0_67] : memref<256x8xbf16, #tpu.memory_space<vmem>>, vector<256x8xbf16>
    %cst_68 = arith.constant dense<0.000000e+00> : vector<8x8xf32>
    %120 = tpu.matmul %118, %119, %cst_68 {dimension_numbers = #tpu.dot_dimension_numbers<[1], [0], [0], [1], [0, 0, 1, 1], [], []>} : vector<8x256xbf16>, vector<256x8xbf16>, vector<8x8xf32> -> vector<8x8xf32>
    %cst_69 = arith.constant 0.000000e+00 : f32
    %121 = vector.broadcast %cst_69 : f32 to vector<8x8xf32>
    %122 = arith.maximumf %120, %121 : vector<8x8xf32>
    %123 = arith.truncf %122 : vector<8x8xf32> to vector<8x8xbf16>
    %c0_70 = arith.constant 0 : index
    %c0_71 = arith.constant 0 : index
    %124 = vector.load %arg27[%c0_70, %c0_71] : memref<8x256xbf16, #tpu.memory_space<vmem>>, vector<8x256xbf16>
    %cst_72 = arith.constant dense<0.000000e+00> : vector<8x256xf32>
    %125 = tpu.matmul %123, %124, %cst_72 {dimension_numbers = #tpu.dot_dimension_numbers<[1], [0], [0], [1], [0, 0, 1, 1], [], []>} : vector<8x8xbf16>, vector<8x256xbf16>, vector<8x256xf32> -> vector<8x256xf32>
    %126 = arith.negf %125 : vector<8x256xf32>
    %127 = math.exp %126 : vector<8x256xf32>
    %cst_73 = arith.constant 1.000000e+00 : f32
    %128 = vector.broadcast %cst_73 : f32 to vector<8x256xf32>
    %129 = arith.addf %128, %127 : vector<8x256xf32>
    %130 = arith.divf %128, %129 : vector<8x256xf32>
    %131 = arith.mulf %117, %130 : vector<8x256xf32>
    %132 = arith.addf %96, %131 : vector<8x256xf32>
    %133 = arith.truncf %132 : vector<8x256xf32> to vector<8x256xbf16>
    %c0_74 = arith.constant 0 : index
    %c0_75 = arith.constant 0 : index
    %134 = vector.load %arg28[%c0_74, %c0_75] : memref<256x512xbf16, #tpu.memory_space<vmem>>, vector<256x512xbf16>
    %cst_76 = arith.constant dense<0.000000e+00> : vector<8x512xf32>
    %135 = tpu.matmul %133, %134, %cst_76 {dimension_numbers = #tpu.dot_dimension_numbers<[1], [0], [0], [1], [0, 0, 1, 1], [], []>} : vector<8x256xbf16>, vector<256x512xbf16>, vector<8x512xf32> -> vector<8x512xf32>
    %c0_77 = arith.constant 0 : index
    %c0_78 = arith.constant 0 : index
    %136 = vector.load %arg29[%c0_77, %c0_78] : memref<1x512xf32, #tpu.memory_space<vmem>>, vector<1x512xf32>
    %137 = vector.broadcast %136 : vector<1x512xf32> to vector<8x512xf32>
    %138 = arith.mulf %135, %137 : vector<8x512xf32>
    %c0_79 = arith.constant 0 : index
    %c0_80 = arith.constant 0 : index
    %139 = vector.load %arg30[%c0_79, %c0_80] : memref<1x512xf32, #tpu.memory_space<vmem>>, vector<1x512xf32>
    %140 = vector.broadcast %139 : vector<1x512xf32> to vector<8x512xf32>
    %141 = arith.addf %138, %140 : vector<8x512xf32>
    %142 = arith.negf %141 : vector<8x512xf32>
    %143 = math.exp %142 : vector<8x512xf32>
    %cst_81 = arith.constant 1.000000e+00 : f32
    %144 = vector.broadcast %cst_81 : f32 to vector<8x512xf32>
    %145 = arith.addf %144, %143 : vector<8x512xf32>
    %146 = arith.divf %144, %145 : vector<8x512xf32>
    %147 = arith.mulf %141, %146 : vector<8x512xf32>
    %148 = arith.truncf %147 : vector<8x512xf32> to vector<8x512xbf16>
    %c0_82 = arith.constant 0 : index
    %c0_83 = arith.constant 0 : index
    %149 = vector.load %arg31[%c0_82, %c0_83] : memref<512x128xbf16, #tpu.memory_space<vmem>>, vector<512x128xbf16>
    %cst_84 = arith.constant dense<0.000000e+00> : vector<8x128xf32>
    %150 = tpu.matmul %148, %149, %cst_84 {dimension_numbers = #tpu.dot_dimension_numbers<[1], [0], [0], [1], [0, 0, 1, 1], [], []>} : vector<8x512xbf16>, vector<512x128xbf16>, vector<8x128xf32> -> vector<8x128xf32>
    %c0_85 = arith.constant 0 : index
    %c0_86 = arith.constant 0 : index
    %151 = vector.load %arg32[%c0_85, %c0_86] : memref<1x128xf32, #tpu.memory_space<vmem>>, vector<1x128xf32>
    %152 = vector.broadcast %151 : vector<1x128xf32> to vector<8x128xf32>
    %153 = arith.addf %150, %152 : vector<8x128xf32>
    %c0_87 = arith.constant 0 : index
    %c0_88 = arith.constant 0 : index
    %154 = vector.load %arg33[%c0_87, %c0_88] : memref<8x128xf32, #tpu.memory_space<vmem>>, vector<8x128xf32>
    tpu.vector_store %arg33[%c0_87, %c0_88], %153 {strides = array<i32>} : memref<8x128xf32, #tpu.memory_space<vmem>>, vector<8x128xf32>,
    return
  }
  func.func @transform_0(%arg0: i32) -> (i32, i32) {
    %c0_i32 = arith.constant 0 : i32
    %c0_i32_0 = arith.constant 0 : i32
    return %arg0, %c0_i32 : i32, i32
  }
  func.func @transform_1(%arg0: i32) -> (i32, i32) {
    %c0_i32 = arith.constant 0 : i32
    %c0_i32_0 = arith.constant 0 : i32
    %c0_i32_1 = arith.constant 0 : i32
    return %c0_i32, %c0_i32_0 : i32, i32
  }
  func.func @transform_2(%arg0: i32) -> (i32, i32) {
    %c0_i32 = arith.constant 0 : i32
    %c0_i32_0 = arith.constant 0 : i32
    %c0_i32_1 = arith.constant 0 : i32
    return %c0_i32, %c0_i32_0 : i32, i32
  }
  func.func @transform_3(%arg0: i32) -> (i32, i32) {
    %c0_i32 = arith.constant 0 : i32
    %c0_i32_0 = arith.constant 0 : i32
    %c0_i32_1 = arith.constant 0 : i32
    return %c0_i32, %c0_i32_0 : i32, i32
  }
  func.func @transform_4(%arg0: i32) -> (i32, i32) {
    %c0_i32 = arith.constant 0 : i32
    %c0_i32_0 = arith.constant 0 : i32
    %c0_i32_1 = arith.constant 0 : i32
    return %c0_i32, %c0_i32_0 : i32, i32
  }
  func.func @transform_5(%arg0: i32) -> (i32, i32) {
    %c0_i32 = arith.constant 0 : i32
    %c0_i32_0 = arith.constant 0 : i32
    %c0_i32_1 = arith.constant 0 : i32
    return %c0_i32, %c0_i32_0 : i32, i32
  }
  func.func @transform_6(%arg0: i32) -> (i32, i32) {
    %c0_i32 = arith.constant 0 : i32
    %c0_i32_0 = arith.constant 0 : i32
    %c0_i32_1 = arith.constant 0 : i32
    return %c0_i32, %c0_i32_0 : i32, i32
  }
  func.func @transform_7(%arg0: i32) -> (i32, i32) {
    %c0_i32 = arith.constant 0 : i32
    %c0_i32_0 = arith.constant 0 : i32
    %c0_i32_1 = arith.constant 0 : i32
    return %c0_i32, %c0_i32_0 : i32, i32
  }
  func.func @transform_8(%arg0: i32) -> (i32, i32) {
    %c0_i32 = arith.constant 0 : i32
    %c0_i32_0 = arith.constant 0 : i32
    %c0_i32_1 = arith.constant 0 : i32
    return %c0_i32, %c0_i32_0 : i32, i32
  }
  func.func @transform_9(%arg0: i32) -> (i32, i32) {
    %c0_i32 = arith.constant 0 : i32
    %c0_i32_0 = arith.constant 0 : i32
    %c0_i32_1 = arith.constant 0 : i32
    return %c0_i32, %c0_i32_0 : i32, i32
  }
  func.func @transform_10(%arg0: i32) -> (i32, i32) {
    %c0_i32 = arith.constant 0 : i32
    %c0_i32_0 = arith.constant 0 : i32
    %c0_i32_1 = arith.constant 0 : i32
    return %c0_i32, %c0_i32_0 : i32, i32
  }
  func.func @transform_11(%arg0: i32) -> (i32, i32) {
    %c0_i32 = arith.constant 0 : i32
    %c0_i32_0 = arith.constant 0 : i32
    %c0_i32_1 = arith.constant 0 : i32
    return %c0_i32, %c0_i32_0 : i32, i32
  }
  func.func @transform_12(%arg0: i32) -> (i32, i32) {
    %c0_i32 = arith.constant 0 : i32
    %c0_i32_0 = arith.constant 0 : i32
    %c0_i32_1 = arith.constant 0 : i32
    return %c0_i32, %c0_i32_0 : i32, i32
  }
  func.func @transform_13(%arg0: i32) -> (i32, i32) {
    %c0_i32 = arith.constant 0 : i32
    %c0_i32_0 = arith.constant 0 : i32
    %c0_i32_1 = arith.constant 0 : i32
    return %c0_i32, %c0_i32_0 : i32, i32
  }
  func.func @transform_14(%arg0: i32) -> (i32, i32) {
    %c0_i32 = arith.constant 0 : i32
    %c0_i32_0 = arith.constant 0 : i32
    %c0_i32_1 = arith.constant 0 : i32
    return %c0_i32, %c0_i32_0 : i32, i32
  }
  func.func @transform_15(%arg0: i32) -> (i32, i32) {
    %c0_i32 = arith.constant 0 : i32
    %c0_i32_0 = arith.constant 0 : i32
    %c0_i32_1 = arith.constant 0 : i32
    return %c0_i32, %c0_i32_0 : i32, i32
  }
  func.func @transform_16(%arg0: i32) -> (i32, i32) {
    %c0_i32 = arith.constant 0 : i32
    %c0_i32_0 = arith.constant 0 : i32
    %c0_i32_1 = arith.constant 0 : i32
    return %c0_i32, %c0_i32_0 : i32, i32
  }
  func.func @transform_17(%arg0: i32) -> (i32, i32) {
    %c0_i32 = arith.constant 0 : i32
    %c0_i32_0 = arith.constant 0 : i32
    %c0_i32_1 = arith.constant 0 : i32
    return %c0_i32, %c0_i32_0 : i32, i32
  }
  func.func @transform_18(%arg0: i32) -> (i32, i32) {
    %c0_i32 = arith.constant 0 : i32
    %c0_i32_0 = arith.constant 0 : i32
    %c0_i32_1 = arith.constant 0 : i32
    return %c0_i32, %c0_i32_0 : i32, i32
  }
  func.func @transform_19(%arg0: i32) -> (i32, i32) {
    %c0_i32 = arith.constant 0 : i32
    %c0_i32_0 = arith.constant 0 : i32
    %c0_i32_1 = arith.constant 0 : i32
    return %c0_i32, %c0_i32_0 : i32, i32
  }
  func.func @transform_20(%arg0: i32) -> (i32, i32) {
    %c0_i32 = arith.constant 0 : i32
    %c0_i32_0 = arith.constant 0 : i32
    %c0_i32_1 = arith.constant 0 : i32
    return %c0_i32, %c0_i32_0 : i32, i32
  }
  func.func @transform_21(%arg0: i32) -> (i32, i32) {
    %c0_i32 = arith.constant 0 : i32
    %c0_i32_0 = arith.constant 0 : i32
    %c0_i32_1 = arith.constant 0 : i32
    return %c0_i32, %c0_i32_0 : i32, i32
  }
  func.func @transform_22(%arg0: i32) -> (i32, i32) {
    %c0_i32 = arith.constant 0 : i32
    %c0_i32_0 = arith.constant 0 : i32
    %c0_i32_1 = arith.constant 0 : i32
    return %c0_i32, %c0_i32_0 : i32, i32
  }
  func.func @transform_23(%arg0: i32) -> (i32, i32) {
    %c0_i32 = arith.constant 0 : i32
    %c0_i32_0 = arith.constant 0 : i32
    %c0_i32_1 = arith.constant 0 : i32
    return %c0_i32, %c0_i32_0 : i32, i32
  }
  func.func @transform_24(%arg0: i32) -> (i32, i32) {
    %c0_i32 = arith.constant 0 : i32
    %c0_i32_0 = arith.constant 0 : i32
    %c0_i32_1 = arith.constant 0 : i32
    return %c0_i32, %c0_i32_0 : i32, i32
  }
  func.func @transform_25(%arg0: i32) -> (i32, i32) {
    %c0_i32 = arith.constant 0 : i32
    %c0_i32_0 = arith.constant 0 : i32
    %c0_i32_1 = arith.constant 0 : i32
    return %c0_i32, %c0_i32_0 : i32, i32
  }
  func.func @transform_26(%arg0: i32) -> (i32, i32) {
    %c0_i32 = arith.constant 0 : i32
    %c0_i32_0 = arith.constant 0 : i32
    %c0_i32_1 = arith.constant 0 : i32
    return %c0_i32, %c0_i32_0 : i32, i32
  }
  func.func @transform_27(%arg0: i32) -> (i32, i32) {
    %c0_i32 = arith.constant 0 : i32
    %c0_i32_0 = arith.constant 0 : i32
    %c0_i32_1 = arith.constant 0 : i32
    return %c0_i32, %c0_i32_0 : i32, i32
  }
  func.func @transform_28(%arg0: i32) -> (i32, i32) {
    %c0_i32 = arith.constant 0 : i32
    %c0_i32_0 = arith.constant 0 : i32
    %c0_i32_1 = arith.constant 0 : i32
    return %c0_i32, %c0_i32_0 : i32, i32
  }
  func.func @transform_29(%arg0: i32) -> (i32, i32) {
    %c0_i32 = arith.constant 0 : i32
    %c0_i32_0 = arith.constant 0 : i32
    %c0_i32_1 = arith.constant 0 : i32
    return %c0_i32, %c0_i32_0 : i32, i32
  }
  func.func @transform_30(%arg0: i32) -> (i32, i32) {
    %c0_i32 = arith.constant 0 : i32
    %c0_i32_0 = arith.constant 0 : i32
    %c0_i32_1 = arith.constant 0 : i32
    return %c0_i32, %c0_i32_0 : i32, i32
  }
  func.func @transform_31(%arg0: i32) -> (i32, i32) {
    %c0_i32 = arith.constant 0 : i32
    %c0_i32_0 = arith.constant 0 : i32
    %c0_i32_1 = arith.constant 0 : i32
    return %c0_i32, %c0_i32_0 : i32, i32
  }
  func.func @transform_32(%arg0: i32) -> (i32, i32) {
    %c0_i32 = arith.constant 0 : i32
    %c0_i32_0 = arith.constant 0 : i32
    return %arg0, %c0_i32 : i32, i32
  }
}

</mosaic_0001>

<llo_original>
// kernel: tpu_custom_call.1
$region0: #{tpu_custom_call.1}
  #allocation0 [shape = 'u32[]', space=smem, size = 0x4, offset = 0x4, fixed_abs, tag = 'smem constant byte address 0x4 - core index']
  #allocation1 [shape = 'u32[144,128]{1,0:T(1,128)}', space=vmem, size = 0x12000, scoped, tag = 'internal scratch']
  %s0 = inlined_call_operand.smem [shape: u32[33], index: -1, kind: input, shape index: {}]
  %s1 = sld [smem:[%s0]]
  %s2 = scalar_lea.smem %s0, 1
  %s3 = sld [smem:[%s2]]
  %s4 = scalar_lea.smem %s0, 2
  %s5 = sld [smem:[%s4]]
  %s6 = scalar_lea.smem %s0, 3
  %s7 = sld [smem:[%s6]]
  %s8 = scalar_lea.smem %s0, 4
  %s9 = sld [smem:[%s8]]
  %s10 = scalar_lea.smem %s0, 5
  %s11 = sld [smem:[%s10]]
  %s12 = scalar_lea.smem %s0, 6
  %s13 = sld [smem:[%s12]]
  %s14 = scalar_lea.smem %s0, 7
  %s15 = sld [smem:[%s14]]
  %s16 = scalar_lea.smem %s0, 8
  %s17 = sld [smem:[%s16]]
  %s18 = scalar_lea.smem %s0, 9
  %s19 = sld [smem:[%s18]]
  %s20 = scalar_lea.smem %s0, 10
  %s21 = sld [smem:[%s20]]
  %s22 = scalar_lea.smem %s0, 11
  %s23 = sld [smem:[%s22]]
  %s24 = scalar_lea.smem %s0, 12
  %s25 = sld [smem:[%s24]]
  %s26 = scalar_lea.smem %s0, 13
  %s27 = sld [smem:[%s26]]
  %s28 = scalar_lea.smem %s0, 14
  %s29 = sld [smem:[%s28]]
  %s30 = scalar_lea.smem %s0, 15
  %s31 = sld [smem:[%s30]]
  %s32 = scalar_lea.smem %s0, 16
  %s33 = sld [smem:[%s32]]
  %s34 = scalar_lea.smem %s0, 17
  %s35 = sld [smem:[%s34]]
  %s36 = scalar_lea.smem %s0, 18
  %s37 = sld [smem:[%s36]]
  %s38 = scalar_lea.smem %s0, 19
  %s39 = sld [smem:[%s38]]
  %s40 = scalar_lea.smem %s0, 20
  %s41 = sld [smem:[%s40]]
  %s42 = scalar_lea.smem %s0, 21
  %s43 = sld [smem:[%s42]]
  %s44 = scalar_lea.smem %s0, 22
  %s45 = sld [smem:[%s44]]
  %s46 = scalar_lea.smem %s0, 23
  %s47 = sld [smem:[%s46]]
  %s48 = scalar_lea.smem %s0, 24
  %s49 = sld [smem:[%s48]]
  %s50 = scalar_lea.smem %s0, 25
  %s51 = sld [smem:[%s50]]
  %s52 = scalar_lea.smem %s0, 26
  %s53 = sld [smem:[%s52]]
  %s54 = scalar_lea.smem %s0, 27
  %s55 = sld [smem:[%s54]]
  %s56 = scalar_lea.smem %s0, 28
  %s57 = sld [smem:[%s56]]
  %s58 = scalar_lea.smem %s0, 29
  %s59 = sld [smem:[%s58]]
  %s60 = scalar_lea.smem %s0, 30
  %s61 = sld [smem:[%s60]]
  %s62 = scalar_lea.smem %s0, 31
  %s63 = sld [smem:[%s62]]
  %s64 = scalar_lea.smem %s0, 32
  %s65 = sld [smem:[%s64]]
  %s66 = sld [smem:[#allocation0]]
  $region226: #{tpu_custom_call.1} parent=0
    _
  %s68 = ssub.s32 1, %s66
  %s69 = scalar_select 0, %s68, %s66
  $region1: #{tpu_custom_call.1} parent=0
    #allocation2 [shape = 'u8[8192]{0}', space=vmem, size = 0x2000, scoped, tag = 'input window, operand 1, single buffered']
    #allocation3 [shape = 's32[1]{0}', space=sflag, size = 0x4, scoped, tag = 'scoped memory for tpu_custom_call.1']
    #allocation4 [shape = 's32[1]{0}', space=sflag, size = 0x4, scoped, tag = 'scoped memory for tpu_custom_call.1']
    #allocation5 [shape = 'u8[512]{0}', space=vmem, size = 0x400, scoped, tag = 'input window, operand 2, single buffered']
    #allocation6 [shape = 's32[1]{0}', space=sflag, size = 0x4, scoped, tag = 'scoped memory for tpu_custom_call.1']
    #allocation7 [shape = 'u8[512]{0}', space=vmem, size = 0x400, scoped, tag = 'input window, operand 3, single buffered']
    #allocation8 [shape = 'u8[32768]{0}', space=vmem, size = 0x8000, scoped, tag = 'input window, operand 4, single buffered']
    #allocation9 [shape = 's32[1]{0}', space=sflag, size = 0x4, scoped, tag = 'scoped memory for tpu_custom_call.1']
    #allocation10 [shape = 'u8[512]{0}', space=vmem, size = 0x400, scoped, tag = 'input window, operand 5, single buffered']
    #allocation11 [shape = 'u8[512]{0}', space=vmem, size = 0x400, scoped, tag = 'input window, operand 6, single buffered']
    #allocation12 [shape = 's32[1]{0}', space=sflag, size = 0x4, scoped, tag = 'scoped memory for tpu_custom_call.1']
    #allocation13 [shape = 'u8[32768]{0}', space=vmem, size = 0x8000, scoped, tag = 'input window, operand 7, single buffered']
    #allocation14 [shape = 'u8[512]{0}', space=vmem, size = 0x400, scoped, tag = 'input window, operand 8, single buffered']
    #allocation15 [shape = 's32[1]{0}', space=sflag, size = 0x4, scoped, tag = 'scoped memory for tpu_custom_call.1']
    #allocation16 [shape = 'u8[512]{0}', space=vmem, size = 0x400, scoped, tag = 'input window, operand 9, single buffered']
    #allocation17 [shape = 'u8[32768]{0}', space=vmem, size = 0x8000, scoped, tag = 'input window, operand 10, single buffered']
    #allocation18 [shape = 's32[1]{0}', space=sflag, size = 0x4, scoped, tag = 'scoped memory for tpu_custom_call.1']
    #allocation19 [shape = 'u8[512]{0}', space=vmem, size = 0x400, scoped, tag = 'input window, operand 11, single buffered']
    #allocation20 [shape = 'u8[2048]{0}', space=vmem, size = 0x800, scoped, tag = 'input window, operand 13, single buffered']
    #allocation21 [shape = 's32[1]{0}', space=sflag, size = 0x4, scoped, tag = 'scoped memory for tpu_custom_call.1']
    #allocation22 [shape = 'u8[65536]{0}', space=vmem, size = 0x10000, scoped, tag = 'input window, operand 14, single buffered']
    #allocation23 [shape = 'u8[1024]{0}', space=vmem, size = 0x400, scoped, tag = 'input window, operand 15, single buffered']
    #allocation24 [shape = 's32[1]{0}', space=sflag, size = 0x4, scoped, tag = 'scoped memory for tpu_custom_call.1']
    #allocation25 [shape = 'u8[1024]{0}', space=vmem, size = 0x400, scoped, tag = 'input window, operand 16, single buffered']
    #allocation26 [shape = 'u8[1024]{0}', space=vmem, size = 0x400, scoped, tag = 'input window, operand 18, single buffered']
    #allocation27 [shape = 's32[1]{0}', space=sflag, size = 0x4, scoped, tag = 'scoped memory for tpu_custom_call.1']
    #allocation28 [shape = 'u8[131072]{0}', space=vmem, size = 0x20000, scoped, tag = 'input window, operand 20, single buffered']
    #allocation29 [shape = 'u8[1024]{0}', space=vmem, size = 0x400, scoped, tag = 'input window, operand 21, single buffered']
    #allocation30 [shape = 's32[1]{0}', space=sflag, size = 0x4, scoped, tag = 'scoped memory for tpu_custom_call.1']
    #allocation31 [shape = 'u8[1024]{0}', space=vmem, size = 0x400, scoped, tag = 'input window, operand 22, single buffered']
    #allocation32 [shape = 'u8[131072]{0}', space=vmem, size = 0x20000, scoped, tag = 'input window, operand 23, single buffered']
    #allocation33 [shape = 's32[1]{0}', space=sflag, size = 0x4, scoped, tag = 'scoped memory for tpu_custom_call.1']
    #allocation34 [shape = 'u8[262144]{0}', space=vmem, size = 0x40000, scoped, tag = 'input window, operand 27, single buffered']
    #allocation35 [shape = 'u8[131072]{0}', space=vmem, size = 0x20000, scoped, tag = 'input window, operand 30, single buffered']
    #allocation36 [shape = 's32[1]{0}', space=sflag, size = 0x4, scoped, tag = 'scoped memory for tpu_custom_call.1']
    #allocation37 [shape = 'u8[4096]{0}', space=vmem, size = 0x1000, scoped, tag = 'output window, operand 0, single buffered']
    %70 = vsyncpa [#allocation3], 0
    %71 = vsyncpa [#allocation6], 0
    %72 = vsyncpa [#allocation9], 0
    %73 = vsyncpa [#allocation12], 0
    %74 = vsyncpa [#allocation15], 0
    %75 = vsyncpa [#allocation18], 0
    %76 = vsyncpa [#allocation21], 0
    %77 = vsyncpa [#allocation24], 0
    %78 = vsyncpa [#allocation27], 0
    %79 = vsyncpa [#allocation30], 0
    %80 = vsyncpa [#allocation33], 0
    %81 = vsyncpa [#allocation36], 0
    %82 = vsyncpa [#allocation4], 0
    // Predicated region
    $region2: #{tpu_custom_call.1} parent=1 // pred_check
      _
    $region3: #{tpu_custom_call.1} parent=1 // pred_check_branch
      %84 = sbr.rel (0) target = $region5
    $region4: #{tpu_custom_call.1} parent=1 // pred_region
      _
    $region5: #{tpu_custom_call.1} parent=1 // pred_fallthru
      _
    // Predicated region
    $region6: #{tpu_custom_call.1} parent=1 // pred_check
      _
    $region7: #{tpu_custom_call.1} parent=1 // pred_check_branch
      %86 = sbr.rel (0) target = $region9
    $region8: #{tpu_custom_call.1} parent=1 // pred_region
      %s88 = ssub.s32 256, 256
      %89 = vsyncadd [#allocation3], %s88
      %s90 = sshll.u32 [#allocation2], 4
      %s91 = int_to_ptr.vmem [resolvable:$true] %s90
      %96 = dma.hbm_to_vmem [thread:$0]  %s3, 256, %s91, [#allocation3], 64, 64, 4
    $region9: #{tpu_custom_call.1} parent=1 // pred_fallthru
      _
    // Predicated region
    $region10: #{tpu_custom_call.1} parent=1 // pred_check
      _
    $region11: #{tpu_custom_call.1} parent=1 // pred_check_branch
      %98 = sbr.rel (0) target = $region13
    $region12: #{tpu_custom_call.1} parent=1 // pred_region
      %s100 = ssub.s32 16, 16
      %101 = vsyncadd [#allocation6], %s100
      %s103 = sshll.u32 [#allocation5], 4
      %s104 = int_to_ptr.vmem [resolvable:$true] %s103
      %106 = dma.hbm_to_vmem [thread:$0]  %s5, 16, %s104, [#allocation6]
    $region13: #{tpu_custom_call.1} parent=1 // pred_fallthru
      _
    // Predicated region
    $region14: #{tpu_custom_call.1} parent=1 // pred_check
      _
    $region15: #{tpu_custom_call.1} parent=1 // pred_check_branch
      %108 = sbr.rel (0) target = $region17
    $region16: #{tpu_custom_call.1} parent=1 // pred_region
      %s110 = ssub.s32 16, 16
      %111 = vsyncadd [#allocation6], %s110
      %s113 = sshll.u32 [#allocation7], 4
      %s114 = int_to_ptr.vmem [resolvable:$true] %s113
      %116 = dma.hbm_to_vmem [thread:$0]  %s7, 16, %s114, [#allocation6]
    $region17: #{tpu_custom_call.1} parent=1 // pred_fallthru
      _
    // Predicated region
    $region18: #{tpu_custom_call.1} parent=1 // pred_check
      _
    $region19: #{tpu_custom_call.1} parent=1 // pred_check_branch
      %118 = sbr.rel (0) target = $region21
    $region20: #{tpu_custom_call.1} parent=1 // pred_region
      %s120 = ssub.s32 1024, 1024
      %121 = vsyncadd [#allocation9], %s120
      %s122 = sshll.u32 [#allocation8], 4
      %s123 = int_to_ptr.vmem [resolvable:$true] %s122
      %128 = dma.hbm_to_vmem [thread:$0]  %s9, 1024, %s123, [#allocation9], 64, 64, 4
    $region21: #{tpu_custom_call.1} parent=1 // pred_fallthru
      _
    // Predicated region
    $region22: #{tpu_custom_call.1} parent=1 // pred_check
      _
    $region23: #{tpu_custom_call.1} parent=1 // pred_check_branch
      %130 = sbr.rel (0) target = $region25
    $region24: #{tpu_custom_call.1} parent=1 // pred_region
      %s132 = ssub.s32 16, 16
      %133 = vsyncadd [#allocation9], %s132
      %s135 = sshll.u32 [#allocation10], 4
      %s136 = int_to_ptr.vmem [resolvable:$true] %s135
      %138 = dma.hbm_to_vmem [thread:$0]  %s11, 16, %s136, [#allocation9]
    $region25: #{tpu_custom_call.1} parent=1 // pred_fallthru
      _
    // Predicated region
    $region26: #{tpu_custom_call.1} parent=1 // pred_check
      _
    $region27: #{tpu_custom_call.1} parent=1 // pred_check_branch
      %140 = sbr.rel (0) target = $region29
    $region28: #{tpu_custom_call.1} parent=1 // pred_region
      %s142 = ssub.s32 16, 16
      %143 = vsyncadd [#allocation12], %s142
      %s145 = sshll.u32 [#allocation11], 4
      %s146 = int_to_ptr.vmem [resolvable:$true] %s145
      %148 = dma.hbm_to_vmem [thread:$0]  %s13, 16, %s146, [#allocation12]
    $region29: #{tpu_custom_call.1} parent=1 // pred_fallthru
      _
    // Predicated region
    $region30: #{tpu_custom_call.1} parent=1 // pred_check
      _
    $region31: #{tpu_custom_call.1} parent=1 // pred_check_branch
      %150 = sbr.rel (0) target = $region33
    $region32: #{tpu_custom_call.1} parent=1 // pred_region
      %s152 = ssub.s32 1024, 1024
      %153 = vsyncadd [#allocation12], %s152
      %s154 = sshll.u32 [#allocation13], 4
      %s155 = int_to_ptr.vmem [resolvable:$true] %s154
      %160 = dma.hbm_to_vmem [thread:$0]  %s15, 1024, %s155, [#allocation12], 64, 64, 4
    $region33: #{tpu_custom_call.1} parent=1 // pred_fallthru
      _
    // Predicated region
    $region34: #{tpu_custom_call.1} parent=1 // pred_check
      _
    $region35: #{tpu_custom_call.1} parent=1 // pred_check_branch
      %162 = sbr.rel (0) target = $region37
    $region36: #{tpu_custom_call.1} parent=1 // pred_region
      %s164 = ssub.s32 16, 16
      %165 = vsyncadd [#allocation15], %s164
      %s167 = sshll.u32 [#allocation14], 4
      %s168 = int_to_ptr.vmem [resolvable:$true] %s167
      %170 = dma.hbm_to_vmem [thread:$0]  %s17, 16, %s168, [#allocation15]
    $region37: #{tpu_custom_call.1} parent=1 // pred_fallthru
      _
    // Predicated region
    $region38: #{tpu_custom_call.1} parent=1 // pred_check
      _
    $region39: #{tpu_custom_call.1} parent=1 // pred_check_branch
      %172 = sbr.rel (0) target = $region41
    $region40: #{tpu_custom_call.1} parent=1 // pred_region
      %s174 = ssub.s32 16, 16
      %175 = vsyncadd [#allocation15], %s174
      %s177 = sshll.u32 [#allocation16], 4
      %s178 = int_to_ptr.vmem [resolvable:$true] %s177
      %180 = dma.hbm_to_vmem [thread:$0]  %s19, 16, %s178, [#allocation15]
    $region41: #{tpu_custom_call.1} parent=1 // pred_fallthru
      _
    // Predicated region
    $region42: #{tpu_custom_call.1} parent=1 // pred_check
      _
    $region43: #{tpu_custom_call.1} parent=1 // pred_check_branch
      %182 = sbr.rel (0) target = $region45
    $region44: #{tpu_custom_call.1} parent=1 // pred_region
      %s184 = ssub.s32 1024, 1024
      %185 = vsyncadd [#allocation18], %s184
      %s186 = sshll.u32 [#allocation17], 4
      %s187 = int_to_ptr.vmem [resolvable:$true] %s186
      %192 = dma.hbm_to_vmem [thread:$0]  %s21, 1024, %s187, [#allocation18], 64, 64, 4
    $region45: #{tpu_custom_call.1} parent=1 // pred_fallthru
      _
    // Predicated region
    $region46: #{tpu_custom_call.1} parent=1 // pred_check
      _
    $region47: #{tpu_custom_call.1} parent=1 // pred_check_branch
      %194 = sbr.rel (0) target = $region49
    $region48: #{tpu_custom_call.1} parent=1 // pred_region
      %s196 = ssub.s32 16, 16
      %197 = vsyncadd [#allocation18], %s196
      %s199 = sshll.u32 [#allocation19], 4
      %s200 = int_to_ptr.vmem [resolvable:$true] %s199
      %202 = dma.hbm_to_vmem [thread:$0]  %s23, 16, %s200, [#allocation18]
    $region49: #{tpu_custom_call.1} parent=1 // pred_fallthru
      _
    // Predicated region
    $region50: #{tpu_custom_call.1} parent=1 // pred_check
      _
    $region51: #{tpu_custom_call.1} parent=1 // pred_check_branch
      %204 = sbr.rel (0) target = $region53
    $region52: #{tpu_custom_call.1} parent=1 // pred_region
      _
    $region53: #{tpu_custom_call.1} parent=1 // pred_fallthru
      _
    // Predicated region
    $region54: #{tpu_custom_call.1} parent=1 // pred_check
      _
    $region55: #{tpu_custom_call.1} parent=1 // pred_check_branch
      %206 = sbr.rel (0) target = $region57
    $region56: #{tpu_custom_call.1} parent=1 // pred_region
      %s208 = ssub.s32 64, 64
      %209 = vsyncadd [#allocation21], %s208
      %s211 = sshll.u32 [#allocation20], 4
      %s212 = int_to_ptr.vmem [resolvable:$true] %s211
      %214 = dma.hbm_to_vmem [thread:$0]  %s27, 64, %s212, [#allocation21]
    $region57: #{tpu_custom_call.1} parent=1 // pred_fallthru
      _
    // Predicated region
    $region58: #{tpu_custom_call.1} parent=1 // pred_check
      _
    $region59: #{tpu_custom_call.1} parent=1 // pred_check_branch
      %216 = sbr.rel (0) target = $region61
    $region60: #{tpu_custom_call.1} parent=1 // pred_region
      %s218 = ssub.s32 2048, 2048
      %219 = vsyncadd [#allocation21], %s218
      %s220 = sshll.u32 [#allocation22], 4
      %s221 = int_to_ptr.vmem [resolvable:$true] %s220
      %226 = dma.hbm_to_vmem [thread:$0]  %s29, 2048, %s221, [#allocation21], 128, 128, 8
    $region61: #{tpu_custom_call.1} parent=1 // pred_fallthru
      _
    // Predicated region
    $region62: #{tpu_custom_call.1} parent=1 // pred_check
      _
    $region63: #{tpu_custom_call.1} parent=1 // pred_check_branch
      %228 = sbr.rel (0) target = $region65
    $region64: #{tpu_custom_call.1} parent=1 // pred_region
      %s230 = ssub.s32 32, 32
      %231 = vsyncadd [#allocation24], %s230
      %s233 = sshll.u32 [#allocation23], 4
      %s234 = int_to_ptr.vmem [resolvable:$true] %s233
      %236 = dma.hbm_to_vmem [thread:$0]  %s31, 32, %s234, [#allocation24]
    $region65: #{tpu_custom_call.1} parent=1 // pred_fallthru
      _
    // Predicated region
    $region66: #{tpu_custom_call.1} parent=1 // pred_check
      _
    $region67: #{tpu_custom_call.1} parent=1 // pred_check_branch
      %238 = sbr.rel (0) target = $region69
    $region68: #{tpu_custom_call.1} parent=1 // pred_region
      %s240 = ssub.s32 32, 32
      %241 = vsyncadd [#allocation24], %s240
      %s243 = sshll.u32 [#allocation25], 4
      %s244 = int_to_ptr.vmem [resolvable:$true] %s243
      %246 = dma.hbm_to_vmem [thread:$0]  %s33, 32, %s244, [#allocation24]
    $region69: #{tpu_custom_call.1} parent=1 // pred_fallthru
      _
    // Predicated region
    $region70: #{tpu_custom_call.1} parent=1 // pred_check
      _
    $region71: #{tpu_custom_call.1} parent=1 // pred_check_branch
      %248 = sbr.rel (0) target = $region73
    $region72: #{tpu_custom_call.1} parent=1 // pred_region
      _
    $region73: #{tpu_custom_call.1} parent=1 // pred_fallthru
      _
    // Predicated region
    $region74: #{tpu_custom_call.1} parent=1 // pred_check
      _
    $region75: #{tpu_custom_call.1} parent=1 // pred_check_branch
      %250 = sbr.rel (0) target = $region77
    $region76: #{tpu_custom_call.1} parent=1 // pred_region
      %s252 = ssub.s32 32, 32
      %253 = vsyncadd [#allocation27], %s252
      %s255 = sshll.u32 [#allocation26], 4
      %s256 = int_to_ptr.vmem [resolvable:$true] %s255
      %258 = dma.hbm_to_vmem [thread:$0]  %s37, 32, %s256, [#allocation27]
    $region77: #{tpu_custom_call.1} parent=1 // pred_fallthru
      _
    // Predicated region
    $region78: #{tpu_custom_call.1} parent=1 // pred_check
      _
    $region79: #{tpu_custom_call.1} parent=1 // pred_check_branch
      %260 = sbr.rel (0) target = $region81
    $region80: #{tpu_custom_call.1} parent=1 // pred_region
      _
    $region81: #{tpu_custom_call.1} parent=1 // pred_fallthru
      _
    // Predicated region
    $region82: #{tpu_custom_call.1} parent=1 // pred_check
      _
    $region83: #{tpu_custom_call.1} parent=1 // pred_check_branch
      %262 = sbr.rel (0) target = $region85
    $region84: #{tpu_custom_call.1} parent=1 // pred_region
      %s264 = ssub.s32 4096, 4096
      %265 = vsyncadd [#allocation27], %s264
      %s266 = sshll.u32 [#allocation28], 4
      %s267 = int_to_ptr.vmem [resolvable:$true] %s266
      %272 = dma.hbm_to_vmem [thread:$0]  %s41, 4096, %s267, [#allocation27], 128, 128, 8
    $region85: #{tpu_custom_call.1} parent=1 // pred_fallthru
      _
    // Predicated region
    $region86: #{tpu_custom_call.1} parent=1 // pred_check
      _
    $region87: #{tpu_custom_call.1} parent=1 // pred_check_branch
      %274 = sbr.rel (0) target = $region89
    $region88: #{tpu_custom_call.1} parent=1 // pred_region
      %s276 = ssub.s32 32, 32
      %277 = vsyncadd [#allocation30], %s276
      %s279 = sshll.u32 [#allocation29], 4
      %s280 = int_to_ptr.vmem [resolvable:$true] %s279
      %282 = dma.hbm_to_vmem [thread:$0]  %s43, 32, %s280, [#allocation30]
    $region89: #{tpu_custom_call.1} parent=1 // pred_fallthru
      _
    // Predicated region
    $region90: #{tpu_custom_call.1} parent=1 // pred_check
      _
    $region91: #{tpu_custom_call.1} parent=1 // pred_check_branch
      %284 = sbr.rel (0) target = $region93
    $region92: #{tpu_custom_call.1} parent=1 // pred_region
      %s286 = ssub.s32 32, 32
      %287 = vsyncadd [#allocation30], %s286
      %s289 = sshll.u32 [#allocation31], 4
      %s290 = int_to_ptr.vmem [resolvable:$true] %s289
      %292 = dma.hbm_to_vmem [thread:$0]  %s45, 32, %s290, [#allocation30]
    $region93: #{tpu_custom_call.1} parent=1 // pred_fallthru
      _
    // Predicated region
    $region94: #{tpu_custom_call.1} parent=1 // pred_check
      _
    $region95: #{tpu_custom_call.1} parent=1 // pred_check_branch
      %294 = sbr.rel (0) target = $region97
    $region96: #{tpu_custom_call.1} parent=1 // pred_region
      %s296 = ssub.s32 4096, 4096
      %297 = vsyncadd [#allocation33], %s296
      %s298 = sshll.u32 [#allocation32], 4
      %s299 = int_to_ptr.vmem [resolvable:$true] %s298
      %304 = dma.hbm_to_vmem [thread:$0]  %s47, 4096, %s299, [#allocation33], 128, 128, 8
    $region97: #{tpu_custom_call.1} parent=1 // pred_fallthru
      _
    // Predicated region
    $region98: #{tpu_custom_call.1} parent=1 // pred_check
      _
    $region99: #{tpu_custom_call.1} parent=1 // pred_check_branch
      %306 = sbr.rel (0) target = $region101
    $region100: #{tpu_custom_call.1} parent=1 // pred_region
      _
    $region101: #{tpu_custom_call.1} parent=1 // pred_fallthru
      _
    // Predicated region
    $region102: #{tpu_custom_call.1} parent=1 // pred_check
      _
    $region103: #{tpu_custom_call.1} parent=1 // pred_check_branch
      %308 = sbr.rel (0) target = $region105
    $region104: #{tpu_custom_call.1} parent=1 // pred_region
      _
    $region105: #{tpu_custom_call.1} parent=1 // pred_fallthru
      _
    // Predicated region
    $region106: #{tpu_custom_call.1} parent=1 // pred_check
      _
    $region107: #{tpu_custom_call.1} parent=1 // pred_check_branch
      %310 = sbr.rel (0) target = $region109
    $region108: #{tpu_custom_call.1} parent=1 // pred_region
      _
    $region109: #{tpu_custom_call.1} parent=1 // pred_fallthru
      _
    // Predicated region
    $region110: #{tpu_custom_call.1} parent=1 // pred_check
      _
    $region111: #{tpu_custom_call.1} parent=1 // pred_check_branch
      %312 = sbr.rel (0) target = $region113
    $region112: #{tpu_custom_call.1} parent=1 // pred_region
      %s314 = ssub.s32 8192, 8192
      %315 = vsyncadd [#allocation33], %s314
      %s316 = sshll.u32 [#allocation34], 4
      %s317 = int_to_ptr.vmem [resolvable:$true] %s316
      %322 = dma.hbm_to_vmem [thread:$0]  %s55, 8192, %s317, [#allocation33], 256, 256, 16
    $region113: #{tpu_custom_call.1} parent=1 // pred_fallthru
      _
    // Predicated region
    $region114: #{tpu_custom_call.1} parent=1 // pred_check
      _
    $region115: #{tpu_custom_call.1} parent=1 // pred_check_branch
      %324 = sbr.rel (0) target = $region117
    $region116: #{tpu_custom_call.1} parent=1 // pred_region
      _
    $region117: #{tpu_custom_call.1} parent=1 // pred_fallthru
      _
    // Predicated region
    $region118: #{tpu_custom_call.1} parent=1 // pred_check
      _
    $region119: #{tpu_custom_call.1} parent=1 // pred_check_branch
      %326 = sbr.rel (0) target = $region121
    $region120: #{tpu_custom_call.1} parent=1 // pred_region
      _
    $region121: #{tpu_custom_call.1} parent=1 // pred_fallthru
      _
    // Predicated region
    $region122: #{tpu_custom_call.1} parent=1 // pred_check
      _
    $region123: #{tpu_custom_call.1} parent=1 // pred_check_branch
      %328 = sbr.rel (0) target = $region125
    $region124: #{tpu_custom_call.1} parent=1 // pred_region
      %s330 = ssub.s32 4096, 4096
      %331 = vsyncadd [#allocation36], %s330
      %s332 = sshll.u32 [#allocation35], 4
      %s333 = int_to_ptr.vmem [resolvable:$true] %s332
      %338 = dma.hbm_to_vmem [thread:$0]  %s61, 4096, %s333, [#allocation36], 64, 64, 4
    $region125: #{tpu_custom_call.1} parent=1 // pred_fallthru
      _
    // Predicated region
    $region126: #{tpu_custom_call.1} parent=1 // pred_check
      _
    $region127: #{tpu_custom_call.1} parent=1 // pred_check_branch
      %340 = sbr.rel (0) target = $region129
    $region128: #{tpu_custom_call.1} parent=1 // pred_region
      _
    $region129: #{tpu_custom_call.1} parent=1 // pred_fallthru
      _
    // Predicated region
    $region130: #{tpu_custom_call.1} parent=1 // pred_check
      _
    $region131: #{tpu_custom_call.1} parent=1 // pred_check_branch
      %342 = sbr.rel (0) target = $region133
    $region132: #{tpu_custom_call.1} parent=1 // pred_region
      %343 = dma.done [#allocation3], 256
    $region133: #{tpu_custom_call.1} parent=1 // pred_fallthru
      _
    // Predicated region
    $region134: #{tpu_custom_call.1} parent=1 // pred_check
      _
    $region135: #{tpu_custom_call.1} parent=1 // pred_check_branch
      %345 = sbr.rel (0) target = $region137
    $region136: #{tpu_custom_call.1} parent=1 // pred_region
      %346 = dma.done [#allocation6], 16
    $region137: #{tpu_custom_call.1} parent=1 // pred_fallthru
      _
    // Predicated region
    $region138: #{tpu_custom_call.1} parent=1 // pred_check
      _
    $region139: #{tpu_custom_call.1} parent=1 // pred_check_branch
      %348 = sbr.rel (0) target = $region141
    $region140: #{tpu_custom_call.1} parent=1 // pred_region
      %349 = dma.done [#allocation6], 16
    $region141: #{tpu_custom_call.1} parent=1 // pred_fallthru
      _
    // Predicated region
    $region142: #{tpu_custom_call.1} parent=1 // pred_check
      _
    $region143: #{tpu_custom_call.1} parent=1 // pred_check_branch
      %351 = sbr.rel (0) target = $region145
    $region144: #{tpu_custom_call.1} parent=1 // pred_region
      %352 = dma.done [#allocation9], 1024
    $region145: #{tpu_custom_call.1} parent=1 // pred_fallthru
      _
    // Predicated region
    $region146: #{tpu_custom_call.1} parent=1 // pred_check
      _
    $region147: #{tpu_custom_call.1} parent=1 // pred_check_branch
      %354 = sbr.rel (0) target = $region149
    $region148: #{tpu_custom_call.1} parent=1 // pred_region
      %355 = dma.done [#allocation9], 16
    $region149: #{tpu_custom_call.1} parent=1 // pred_fallthru
      _
    // Predicated region
    $region150: #{tpu_custom_call.1} parent=1 // pred_check
      _
    $region151: #{tpu_custom_call.1} parent=1 // pred_check_branch
      %357 = sbr.rel (0) target = $region153
    $region152: #{tpu_custom_call.1} parent=1 // pred_region
      %358 = dma.done [#allocation12], 16
    $region153: #{tpu_custom_call.1} parent=1 // pred_fallthru
      _
    // Predicated region
    $region154: #{tpu_custom_call.1} parent=1 // pred_check
      _
    $region155: #{tpu_custom_call.1} parent=1 // pred_check_branch
      %360 = sbr.rel (0) target = $region157
    $region156: #{tpu_custom_call.1} parent=1 // pred_region
      %361 = dma.done [#allocation12], 1024
    $region157: #{tpu_custom_call.1} parent=1 // pred_fallthru
      _
    // Predicated region
    $region158: #{tpu_custom_call.1} parent=1 // pred_check
      _
    $region159: #{tpu_custom_call.1} parent=1 // pred_check_branch
      %363 = sbr.rel (0) target = $region161
    $region160: #{tpu_custom_call.1} parent=1 // pred_region
      %364 = dma.done [#allocation15], 16
    $region161: #{tpu_custom_call.1} parent=1 // pred_fallthru
      _
    // Predicated region
    $region162: #{tpu_custom_call.1} parent=1 // pred_check
      _
    $region163: #{tpu_custom_call.1} parent=1 // pred_check_branch
      %366 = sbr.rel (0) target = $region165
    $region164: #{tpu_custom_call.1} parent=1 // pred_region
      %367 = dma.done [#allocation15], 16
    $region165: #{tpu_custom_call.1} parent=1 // pred_fallthru
      _
    // Predicated region
    $region166: #{tpu_custom_call.1} parent=1 // pred_check
      _
    $region167: #{tpu_custom_call.1} parent=1 // pred_check_branch
      %369 = sbr.rel (0) target = $region169
    $region168: #{tpu_custom_call.1} parent=1 // pred_region
      %370 = dma.done [#allocation18], 1024
    $region169: #{tpu_custom_call.1} parent=1 // pred_fallthru
      _
    // Predicated region
    $region170: #{tpu_custom_call.1} parent=1 // pred_check
      _
    $region171: #{tpu_custom_call.1} parent=1 // pred_check_branch
      %372 = sbr.rel (0) target = $region173
    $region172: #{tpu_custom_call.1} parent=1 // pred_region
      %373 = dma.done [#allocation18], 16
    $region173: #{tpu_custom_call.1} parent=1 // pred_fallthru
      _
    // Predicated region
    $region174: #{tpu_custom_call.1} parent=1 // pred_check
      _
    $region175: #{tpu_custom_call.1} parent=1 // pred_check_branch
      %375 = sbr.rel (0) target = $region177
    $region176: #{tpu_custom_call.1} parent=1 // pred_region
      %376 = dma.done [#allocation21], 64
    $region177: #{tpu_custom_call.1} parent=1 // pred_fallthru
      _
    // Predicated region
    $region178: #{tpu_custom_call.1} parent=1 // pred_check
      _
    $region179: #{tpu_custom_call.1} parent=1 // pred_check_branch
      %378 = sbr.rel (0) target = $region181
    $region180: #{tpu_custom_call.1} parent=1 // pred_region
      %379 = dma.done [#allocation21], 2048
    $region181: #{tpu_custom_call.1} parent=1 // pred_fallthru
      _
    // Predicated region
    $region182: #{tpu_custom_call.1} parent=1 // pred_check
      _
    $region183: #{tpu_custom_call.1} parent=1 // pred_check_branch
      %381 = sbr.rel (0) target = $region185
    $region184: #{tpu_custom_call.1} parent=1 // pred_region
      %382 = dma.done [#allocation24], 32
    $region185: #{tpu_custom_call.1} parent=1 // pred_fallthru
      _
    // Predicated region
    $region186: #{tpu_custom_call.1} parent=1 // pred_check
      _
    $region187: #{tpu_custom_call.1} parent=1 // pred_check_branch
      %384 = sbr.rel (0) target = $region189
    $region188: #{tpu_custom_call.1} parent=1 // pred_region
      %385 = dma.done [#allocation24], 32
    $region189: #{tpu_custom_call.1} parent=1 // pred_fallthru
      _
    // Predicated region
    $region190: #{tpu_custom_call.1} parent=1 // pred_check
      _
    $region191: #{tpu_custom_call.1} parent=1 // pred_check_branch
      %387 = sbr.rel (0) target = $region193
    $region192: #{tpu_custom_call.1} parent=1 // pred_region
      %388 = dma.done [#allocation27], 32
    $region193: #{tpu_custom_call.1} parent=1 // pred_fallthru
      _
    // Predicated region
    $region194: #{tpu_custom_call.1} parent=1 // pred_check
      _
    $region195: #{tpu_custom_call.1} parent=1 // pred_check_branch
      %390 = sbr.rel (0) target = $region197
    $region196: #{tpu_custom_call.1} parent=1 // pred_region
      %391 = dma.done [#allocation27], 4096
    $region197: #{tpu_custom_call.1} parent=1 // pred_fallthru
      _
    // Predicated region
    $region198: #{tpu_custom_call.1} parent=1 // pred_check
      _
    $region199: #{tpu_custom_call.1} parent=1 // pred_check_branch
      %393 = sbr.rel (0) target = $region201
    $region200: #{tpu_custom_call.1} parent=1 // pred_region
      %394 = dma.done [#allocation30], 32
    $region201: #{tpu_custom_call.1} parent=1 // pred_fallthru
      _
    // Predicated region
    $region202: #{tpu_custom_call.1} parent=1 // pred_check
      _
    $region203: #{tpu_custom_call.1} parent=1 // pred_check_branch
      %396 = sbr.rel (0) target = $region205
    $region204: #{tpu_custom_call.1} parent=1 // pred_region
      %397 = dma.done [#allocation30], 32
    $region205: #{tpu_custom_call.1} parent=1 // pred_fallthru
      _
    // Predicated region
    $region206: #{tpu_custom_call.1} parent=1 // pred_check
      _
    $region207: #{tpu_custom_call.1} parent=1 // pred_check_branch
      %399 = sbr.rel (0) target = $region209
    $region208: #{tpu_custom_call.1} parent=1 // pred_region
      %400 = dma.done [#allocation33], 4096
    $region209: #{tpu_custom_call.1} parent=1 // pred_fallthru
      _
    // Predicated region
    $region210: #{tpu_custom_call.1} parent=1 // pred_check
      _
    $region211: #{tpu_custom_call.1} parent=1 // pred_check_branch
      %402 = sbr.rel (0) target = $region213
    $region212: #{tpu_custom_call.1} parent=1 // pred_region
      %403 = dma.done [#allocation33], 8192
    $region213: #{tpu_custom_call.1} parent=1 // pred_fallthru
      _
    // Predicated region
    $region214: #{tpu_custom_call.1} parent=1 // pred_check
      _
    $region215: #{tpu_custom_call.1} parent=1 // pred_check_branch
      %405 = sbr.rel (0) target = $region217
    $region216: #{tpu_custom_call.1} parent=1 // pred_region
      %406 = dma.done [#allocation36], 4096
    $region217: #{tpu_custom_call.1} parent=1 // pred_fallthru
      _
    %v408 = vld [vmem:[%s1] sm:$0xff]
    %v409 = vpack.c.bf16 %v408, %v408
    %v410 = vld [vmem:[#allocation2] sm:$0xf]
    %v411 = vld [vmem:[#allocation2 + $0x4] sm:$0xf]
    %v412 = vld [vmem:[#allocation2 + $0x8] sm:$0xf]
    %v413 = vld [vmem:[#allocation2 + $0xc] sm:$0xf]
    %v418 = vunpack.c.l.b16 %v410
    %v419 = vunpack.c.l.b16 %v411
    %v420 = vunpack.c.l.b16 %v412
    %v421 = vunpack.c.l.b16 %v413
    %v422 = vpack.c.b16 %v419, %v418
    %v423 = vpack.c.b16 %v421, %v420
    %vm426 = vcmask 261120
    %v428 = vsel %vm426, %v409, 0
    %430 = vmatprep.subr.bf16.mxu0 0
    %431 = vmatpush1.bf16.msra.mxu0 %v422
    %432 = vmatprep.subr.bf16.mxu0 0
    %433 = vmatpush1.bf16.msra.mxu0 %v423
    %434 = vmatprep.subr.bf16.mxu0 0
    %435 = vmatpush1.bf16.msra.mxu0 0
    %436 = vmatprep.subr.bf16.mxu0 0
    %437 = vmatpush1.bf16.msra.mxu0 0
    %438 = vmatprep.subr.bf16.mxu0 0
    %439 = vmatpush1.bf16.msra.mxu0 0
    %440 = vmatprep.subr.bf16.mxu0 0
    %441 = vmatpush1.bf16.msra.mxu0 0
    %442 = vmatprep.subr.bf16.mxu0 0
    %443 = vmatpush1.bf16.msra.mxu0 0
    %444 = vmatprep.subr.bf16.mxu0 0
    %445 = vmatpush1.bf16.msra.mxu0 0
    %446 = vmatprep.subr.bf16.mxu0 0
    %447 = vmatpush1.bf16.msra.mxu0 0
    %448 = vmatprep.subr.bf16.mxu0 0
    %449 = vmatpush1.bf16.msra.mxu0 0
    %450 = vmatprep.subr.bf16.mxu0 0
    %451 = vmatpush1.bf16.msra.mxu0 0
    %452 = vmatprep.subr.bf16.mxu0 0
    %453 = vmatpush1.bf16.msra.mxu0 0
    %454 = vmatprep.subr.bf16.mxu0 0
    %455 = vmatpush1.bf16.msra.mxu0 0
    %456 = vmatprep.subr.bf16.mxu0 0
    %457 = vmatpush1.bf16.msra.mxu0 0
    %458 = vmatprep.subr.bf16.mxu0 0
    %459 = vmatpush1.bf16.msra.mxu0 0
    %460 = vmatprep.subr.bf16.mxu0 0
    %461 = vmatpush1.bf16.msra.mxu0 0
    %462 = vmatprep.mubr.bf16.mxu0 0
    %463 = vmatmul.mubr.bf16.gmra.mrb[0].mxu0 %v428
    %v464 = vpop.f32.mrb[0].mxu0
    %v465 = vadd.f32 0.0, %v464
    %v466 = vpop.f32.mrb[0].mxu0
    %v467 = vpop.f32.mrb[0].mxu0
    %v468 = vpop.f32.mrb[0].mxu0
    %469 = vdwg.mxu0
    %v470 = vld [vmem:[#allocation5] sm:$0x1]
    %v472 = vlaneseq
    %v473 = vshrl.u32 %v472, 7
    %v474 = vsub.s32 0, %v473
    %v475 = vrot.slane %v470, %v474
    %v477 = vmul.f32 %v465, %v475
    %v478 = vld [vmem:[#allocation7] sm:$0x1]
    %v480 = vlaneseq
    %v481 = vshrl.u32 %v480, 7
    %v482 = vsub.s32 0, %v481
    %v483 = vrot.slane %v478, %v482
    %v485 = vadd.f32 %v477, %v483
    %v486 = vxor.u32 %v485, 2147483648
    %v487 = vmul.f32 %v486, 1.442695
    %v488 = vpow.pop %v487
    %v489 = vadd.f32 %v488, 1.0
    %v490 = vrcp.pop %v489
    %v491 = vmul.f32 1.0, %v490
    %v492 = vmul.f32 %v485, %v491
    %v493 = vpack.c.bf16 %v492, %v492
    %v494 = vld [vmem:[#allocation8] sm:$0xf]
    %v495 = vld [vmem:[#allocation8 + $0x4] sm:$0xf]
    %v496 = vld [vmem:[#allocation8 + $0x8] sm:$0xf]
    %v497 = vld [vmem:[#allocation8 + $0xc] sm:$0xf]
    %v498 = vld [vmem:[#allocation8 + $0x10] sm:$0xf]
    %v499 = vld [vmem:[#allocation8 + $0x14] sm:$0xf]
    %v500 = vld [vmem:[#allocation8 + $0x18] sm:$0xf]
    %v501 = vld [vmem:[#allocation8 + $0x1c] sm:$0xf]
    %v502 = vld [vmem:[#allocation8 + $0x20] sm:$0xf]
    %v503 = vld [vmem:[#allocation8 + $0x24] sm:$0xf]
    %v504 = vld [vmem:[#allocation8 + $0x28] sm:$0xf]
    %v505 = vld [vmem:[#allocation8 + $0x2c] sm:$0xf]
    %v506 = vld [vmem:[#allocation8 + $0x30] sm:$0xf]
    %v507 = vld [vmem:[#allocation8 + $0x34] sm:$0xf]
    %v508 = vld [vmem:[#allocation8 + $0x38] sm:$0xf]
    %v509 = vld [vmem:[#allocation8 + $0x3c] sm:$0xf]
    %v526 = vunpack.c.l.b16 %v494
    %v527 = vunpack.c.l.b16 %v495
    %v528 = vunpack.c.l.b16 %v496
    %v529 = vunpack.c.l.b16 %v497
    %v530 = vunpack.c.l.b16 %v498
    %v531 = vunpack.c.l.b16 %v499
    %v532 = vunpack.c.l.b16 %v500
    %v533 = vunpack.c.l.b16 %v501
    %v534 = vunpack.c.l.b16 %v502
    %v535 = vunpack.c.l.b16 %v503
    %v536 = vunpack.c.l.b16 %v504
    %v537 = vunpack.c.l.b16 %v505
    %v538 = vunpack.c.l.b16 %v506
    %v539 = vunpack.c.l.b16 %v507
    %v540 = vunpack.c.l.b16 %v508
    %v541 = vunpack.c.l.b16 %v509
    %v542 = vpack.c.b16 %v527, %v526
    %v543 = vpack.c.b16 %v529, %v528
    %v544 = vpack.c.b16 %v531, %v530
    %v545 = vpack.c.b16 %v533, %v532
    %v546 = vpack.c.b16 %v535, %v534
    %v547 = vpack.c.b16 %v537, %v536
    %v548 = vpack.c.b16 %v539, %v538
    %v549 = vpack.c.b16 %v541, %v540
    %558 = vmatprep.subr.bf16.mxu0 0
    %559 = vmatpush1.bf16.msra.mxu0 %v542
    %560 = vmatprep.subr.bf16.mxu0 0
    %561 = vmatpush1.bf16.msra.mxu0 %v543
    %562 = vmatprep.subr.bf16.mxu0 0
    %563 = vmatpush1.bf16.msra.mxu0 %v544
    %564 = vmatprep.subr.bf16.mxu0 0
    %565 = vmatpush1.bf16.msra.mxu0 %v545
    %566 = vmatprep.subr.bf16.mxu0 0
    %567 = vmatpush1.bf16.msra.mxu0 %v546
    %568 = vmatprep.subr.bf16.mxu0 0
    %569 = vmatpush1.bf16.msra.mxu0 %v547
    %570 = vmatprep.subr.bf16.mxu0 0
    %571 = vmatpush1.bf16.msra.mxu0 %v548
    %572 = vmatprep.subr.bf16.mxu0 0
    %573 = vmatpush1.bf16.msra.mxu0 %v549
    %574 = vmatprep.subr.bf16.mxu0 0
    %575 = vmatpush1.bf16.msra.mxu0 0
    %576 = vmatprep.subr.bf16.mxu0 0
    %577 = vmatpush1.bf16.msra.mxu0 0
    %578 = vmatprep.subr.bf16.mxu0 0
    %579 = vmatpush1.bf16.msra.mxu0 0
    %580 = vmatprep.subr.bf16.mxu0 0
    %581 = vmatpush1.bf16.msra.mxu0 0
    %582 = vmatprep.subr.bf16.mxu0 0
    %583 = vmatpush1.bf16.msra.mxu0 0
    %584 = vmatprep.subr.bf16.mxu0 0
    %585 = vmatpush1.bf16.msra.mxu0 0
    %586 = vmatprep.subr.bf16.mxu0 0
    %587 = vmatpush1.bf16.msra.mxu0 0
    %588 = vmatprep.subr.bf16.mxu0 0
    %589 = vmatpush1.bf16.msra.mxu0 0
    %590 = vmatprep.mubr.bf16.mxu0 0
    %591 = vmatmul.mubr.bf16.gmra.mrb[0].mxu0 %v493
    %v592 = vpop.f32.mrb[0].mxu0
    %v593 = vadd.f32 0.0, %v592
    %v594 = vpop.f32.mrb[0].mxu0
    %v595 = vpop.f32.mrb[0].mxu0
    %v596 = vpop.f32.mrb[0].mxu0
    %597 = vdwg.mxu0
    %v598 = vld [vmem:[#allocation10] sm:$0x1]
    %v600 = vlaneseq
    %v601 = vshrl.u32 %v600, 7
    %v602 = vsub.s32 0, %v601
    %v603 = vrot.slane %v598, %v602
    %v605 = vmul.f32 %v593, %v603
    %v606 = vld [vmem:[#allocation11] sm:$0x1]
    %v608 = vlaneseq
    %v609 = vshrl.u32 %v608, 7
    %v610 = vsub.s32 0, %v609
    %v611 = vrot.slane %v606, %v610
    %v613 = vadd.f32 %v605, %v611
    %v614 = vxor.u32 %v613, 2147483648
    %v615 = vmul.f32 %v614, 1.442695
    %v616 = vpow.pop %v615
    %v617 = vadd.f32 %v616, 1.0
    %v618 = vrcp.pop %v617
    %v619 = vmul.f32 1.0, %v618
    %v620 = vmul.f32 %v613, %v619
    %v621 = vpack.c.bf16 %v620, %v620
    %v622 = vld [vmem:[#allocation13] sm:$0xf]
    %v623 = vld [vmem:[#allocation13 + $0x4] sm:$0xf]
    %v624 = vld [vmem:[#allocation13 + $0x8] sm:$0xf]
    %v625 = vld [vmem:[#allocation13 + $0xc] sm:$0xf]
    %v626 = vld [vmem:[#allocation13 + $0x10] sm:$0xf]
    %v627 = vld [vmem:[#allocation13 + $0x14] sm:$0xf]
    %v628 = vld [vmem:[#allocation13 + $0x18] sm:$0xf]
    %v629 = vld [vmem:[#allocation13 + $0x1c] sm:$0xf]
    %v630 = vld [vmem:[#allocation13 + $0x20] sm:$0xf]
    %v631 = vld [vmem:[#allocation13 + $0x24] sm:$0xf]
    %v632 = vld [vmem:[#allocation13 + $0x28] sm:$0xf]
    %v633 = vld [vmem:[#allocation13 + $0x2c] sm:$0xf]
    %v634 = vld [vmem:[#allocation13 + $0x30] sm:$0xf]
    %v635 = vld [vmem:[#allocation13 + $0x34] sm:$0xf]
    %v636 = vld [vmem:[#allocation13 + $0x38] sm:$0xf]
    %v637 = vld [vmem:[#allocation13 + $0x3c] sm:$0xf]
    %v654 = vunpack.c.l.b16 %v622
    %v655 = vunpack.c.l.b16 %v623
    %v656 = vunpack.c.l.b16 %v624
    %v657 = vunpack.c.l.b16 %v625
    %v658 = vunpack.c.l.b16 %v626
    %v659 = vunpack.c.l.b16 %v627
    %v660 = vunpack.c.l.b16 %v628
    %v661 = vunpack.c.l.b16 %v629
    %v662 = vunpack.c.l.b16 %v630
    %v663 = vunpack.c.l.b16 %v631
    %v664 = vunpack.c.l.b16 %v632
    %v665 = vunpack.c.l.b16 %v633
    %v666 = vunpack.c.l.b16 %v634
    %v667 = vunpack.c.l.b16 %v635
    %v668 = vunpack.c.l.b16 %v636
    %v669 = vunpack.c.l.b16 %v637
    %v670 = vpack.c.b16 %v655, %v654
    %v671 = vpack.c.b16 %v657, %v656
    %v672 = vpack.c.b16 %v659, %v658
    %v673 = vpack.c.b16 %v661, %v660
    %v674 = vpack.c.b16 %v663, %v662
    %v675 = vpack.c.b16 %v665, %v664
    %v676 = vpack.c.b16 %v667, %v666
    %v677 = vpack.c.b16 %v669, %v668
    %686 = vmatprep.subr.bf16.mxu0 0
    %687 = vmatpush1.bf16.msra.mxu0 %v670
    %688 = vmatprep.subr.bf16.mxu0 0
    %689 = vmatpush1.bf16.msra.mxu0 %v671
    %690 = vmatprep.subr.bf16.mxu0 0
    %691 = vmatpush1.bf16.msra.mxu0 %v672
    %692 = vmatprep.subr.bf16.mxu0 0
    %693 = vmatpush1.bf16.msra.mxu0 %v673
    %694 = vmatprep.subr.bf16.mxu0 0
    %695 = vmatpush1.bf16.msra.mxu0 %v674
    %696 = vmatprep.subr.bf16.mxu0 0
    %697 = vmatpush1.bf16.msra.mxu0 %v675
    %698 = vmatprep.subr.bf16.mxu0 0
    %699 = vmatpush1.bf16.msra.mxu0 %v676
    %700 = vmatprep.subr.bf16.mxu0 0
    %701 = vmatpush1.bf16.msra.mxu0 %v677
    %702 = vmatprep.subr.bf16.mxu0 0
    %703 = vmatpush1.bf16.msra.mxu0 0
    %704 = vmatprep.subr.bf16.mxu0 0
    %705 = vmatpush1.bf16.msra.mxu0 0
    %706 = vmatprep.subr.bf16.mxu0 0
    %707 = vmatpush1.bf16.msra.mxu0 0
    %708 = vmatprep.subr.bf16.mxu0 0
    %709 = vmatpush1.bf16.msra.mxu0 0
    %710 = vmatprep.subr.bf16.mxu0 0
    %711 = vmatpush1.bf16.msra.mxu0 0
    %712 = vmatprep.subr.bf16.mxu0 0
    %713 = vmatpush1.bf16.msra.mxu0 0
    %714 = vmatprep.subr.bf16.mxu0 0
    %715 = vmatpush1.bf16.msra.mxu0 0
    %716 = vmatprep.subr.bf16.mxu0 0
    %717 = vmatpush1.bf16.msra.mxu0 0
    %718 = vmatprep.mubr.bf16.mxu0 0
    %719 = vmatmul.mubr.bf16.gmra.mrb[0].mxu0 %v621
    %v720 = vpop.f32.mrb[0].mxu0
    %v721 = vadd.f32 0.0, %v720
    %v722 = vpop.f32.mrb[0].mxu0
    %v723 = vpop.f32.mrb[0].mxu0
    %v724 = vpop.f32.mrb[0].mxu0
    %725 = vdwg.mxu0
    %v726 = vld [vmem:[#allocation14] sm:$0x1]
    %v728 = vlaneseq
    %v729 = vshrl.u32 %v728, 7
    %v730 = vsub.s32 0, %v729
    %v731 = vrot.slane %v726, %v730
    %v733 = vmul.f32 %v721, %v731
    %v734 = vld [vmem:[#allocation16] sm:$0x1]
    %v736 = vlaneseq
    %v737 = vshrl.u32 %v736, 7
    %v738 = vsub.s32 0, %v737
    %v739 = vrot.slane %v734, %v738
    %v741 = vadd.f32 %v733, %v739
    %v742 = vxor.u32 %v741, 2147483648
    %v743 = vmul.f32 %v742, 1.442695
    %v744 = vpow.pop %v743
    %v745 = vadd.f32 %v744, 1.0
    %v746 = vrcp.pop %v745
    %v747 = vmul.f32 1.0, %v746
    %v748 = vmul.f32 %v741, %v747
    %v749 = vpack.c.bf16 %v748, %v748
    %v750 = vld [vmem:[#allocation17] sm:$0xf]
    %v751 = vld [vmem:[#allocation17 + $0x4] sm:$0xf]
    %v752 = vld [vmem:[#allocation17 + $0x8] sm:$0xf]
    %v753 = vld [vmem:[#allocation17 + $0xc] sm:$0xf]
    %v754 = vld [vmem:[#allocation17 + $0x10] sm:$0xf]
    %v755 = vld [vmem:[#allocation17 + $0x14] sm:$0xf]
    %v756 = vld [vmem:[#allocation17 + $0x18] sm:$0xf]
    %v757 = vld [vmem:[#allocation17 + $0x1c] sm:$0xf]
    %v758 = vld [vmem:[#allocation17 + $0x20] sm:$0xf]
    %v759 = vld [vmem:[#allocation17 + $0x24] sm:$0xf]
    %v760 = vld [vmem:[#allocation17 + $0x28] sm:$0xf]
    %v761 = vld [vmem:[#allocation17 + $0x2c] sm:$0xf]
    %v762 = vld [vmem:[#allocation17 + $0x30] sm:$0xf]
    %v763 = vld [vmem:[#allocation17 + $0x34] sm:$0xf]
    %v764 = vld [vmem:[#allocation17 + $0x38] sm:$0xf]
    %v765 = vld [vmem:[#allocation17 + $0x3c] sm:$0xf]
    %v766 = vld [vmem:[#allocation19] sm:$0x1]
    %v768 = vlaneseq
    %v769 = vshrl.u32 %v768, 7
    %v770 = vsub.s32 0, %v769
    %v771 = vrot.slane %v766, %v770
    %v789 = vunpack.c.l.b16 %v750
    %v790 = vunpack.c.l.b16 %v751
    %v791 = vunpack.c.l.b16 %v752
    %v792 = vunpack.c.l.b16 %v753
    %v793 = vunpack.c.l.b16 %v754
    %v794 = vunpack.c.l.b16 %v755
    %v795 = vunpack.c.l.b16 %v756
    %v796 = vunpack.c.l.b16 %v757
    %v797 = vunpack.c.l.b16 %v758
    %v798 = vunpack.c.l.b16 %v759
    %v799 = vunpack.c.l.b16 %v760
    %v800 = vunpack.c.l.b16 %v761
    %v801 = vunpack.c.l.b16 %v762
    %v802 = vunpack.c.l.b16 %v763
    %v803 = vunpack.c.l.b16 %v764
    %v804 = vunpack.c.l.b16 %v765
    %v805 = vpack.c.b16 %v790, %v789
    %v806 = vpack.c.b16 %v792, %v791
    %v807 = vpack.c.b16 %v794, %v793
    %v808 = vpack.c.b16 %v796, %v795
    %v809 = vpack.c.b16 %v798, %v797
    %v810 = vpack.c.b16 %v800, %v799
    %v811 = vpack.c.b16 %v802, %v801
    %v812 = vpack.c.b16 %v804, %v803
    %821 = vmatprep.subr.bf16.mxu0 0
    %822 = vmatpush1.bf16.msra.mxu0 %v805
    %823 = vmatprep.subr.bf16.mxu0 0
    %824 = vmatpush1.bf16.msra.mxu0 %v806
    %825 = vmatprep.subr.bf16.mxu0 0
    %826 = vmatpush1.bf16.msra.mxu0 %v807
    %827 = vmatprep.subr.bf16.mxu0 0
    %828 = vmatpush1.bf16.msra.mxu0 %v808
    %829 = vmatprep.subr.bf16.mxu0 0
    %830 = vmatpush1.bf16.msra.mxu0 %v809
    %831 = vmatprep.subr.bf16.mxu0 0
    %832 = vmatpush1.bf16.msra.mxu0 %v810
    %833 = vmatprep.subr.bf16.mxu0 0
    %834 = vmatpush1.bf16.msra.mxu0 %v811
    %835 = vmatprep.subr.bf16.mxu0 0
    %836 = vmatpush1.bf16.msra.mxu0 %v812
    %837 = vmatprep.subr.bf16.mxu0 0
    %838 = vmatpush1.bf16.msra.mxu0 0
    %839 = vmatprep.subr.bf16.mxu0 0
    %840 = vmatpush1.bf16.msra.mxu0 0
    %841 = vmatprep.subr.bf16.mxu0 0
    %842 = vmatpush1.bf16.msra.mxu0 0
    %843 = vmatprep.subr.bf16.mxu0 0
    %844 = vmatpush1.bf16.msra.mxu0 0
    %845 = vmatprep.subr.bf16.mxu0 0
    %846 = vmatpush1.bf16.msra.mxu0 0
    %847 = vmatprep.subr.bf16.mxu0 0
    %848 = vmatpush1.bf16.msra.mxu0 0
    %849 = vmatprep.subr.bf16.mxu0 0
    %850 = vmatpush1.bf16.msra.mxu0 0
    %851 = vmatprep.subr.bf16.mxu0 0
    %852 = vmatpush1.bf16.msra.mxu0 0
    %853 = vmatprep.mubr.bf16.mxu0 0
    %854 = vmatmul.mubr.bf16.gmra.mrb[0].mxu0 %v749
    %v855 = vpop.f32.mrb[0].mxu0
    %v856 = vadd.f32 %v771, %v855
    %v857 = vpop.f32.mrb[0].mxu0
    %v858 = vpop.f32.mrb[0].mxu0
    %v859 = vpop.f32.mrb[0].mxu0
    %860 = vdwg.mxu0
    %v861 = vpack.c.bf16 %v856, %v856
    %v862 = vld [vmem:[%s25] sm:$0xf]
    %v863 = vld [vmem:[%s25 + $0x4] sm:$0xf]
    %v864 = vld [vmem:[%s25 + $0x8] sm:$0xf]
    %v865 = vld [vmem:[%s25 + $0xc] sm:$0xf]
    %v866 = vld [vmem:[%s25 + $0x10] sm:$0xf]
    %v867 = vld [vmem:[%s25 + $0x14] sm:$0xf]
    %v868 = vld [vmem:[%s25 + $0x18] sm:$0xf]
    %v869 = vld [vmem:[%s25 + $0x1c] sm:$0xf]
    %v870 = vld [vmem:[%s25 + $0x20] sm:$0xf]
    %v871 = vld [vmem:[%s25 + $0x24] sm:$0xf]
    %v872 = vld [vmem:[%s25 + $0x28] sm:$0xf]
    %v873 = vld [vmem:[%s25 + $0x2c] sm:$0xf]
    %v874 = vld [vmem:[%s25 + $0x30] sm:$0xf]
    %v875 = vld [vmem:[%s25 + $0x34] sm:$0xf]
    %v876 = vld [vmem:[%s25 + $0x38] sm:$0xf]
    %v877 = vld [vmem:[%s25 + $0x3c] sm:$0xf]
    %v894 = vunpack.c.l.b16 %v862
    %v895 = vunpack.c.l.b16 %v863
    %v896 = vunpack.c.l.b16 %v864
    %v897 = vunpack.c.l.b16 %v865
    %v898 = vunpack.c.l.b16 %v866
    %v899 = vunpack.c.l.b16 %v867
    %v900 = vunpack.c.l.b16 %v868
    %v901 = vunpack.c.l.b16 %v869
    %v902 = vunpack.c.l.b16 %v870
    %v903 = vunpack.c.l.b16 %v871
    %v904 = vunpack.c.l.b16 %v872
    %v905 = vunpack.c.l.b16 %v873
    %v906 = vunpack.c.l.b16 %v874
    %v907 = vunpack.c.l.b16 %v875
    %v908 = vunpack.c.l.b16 %v876
    %v909 = vunpack.c.l.b16 %v877
    %v910 = vpack.c.b16 %v895, %v894
    %v911 = vpack.c.b16 %v897, %v896
    %v912 = vpack.c.b16 %v899, %v898
    %v913 = vpack.c.b16 %v901, %v900
    %v914 = vpack.c.b16 %v903, %v902
    %v915 = vpack.c.b16 %v905, %v904
    %v916 = vpack.c.b16 %v907, %v906
    %v917 = vpack.c.b16 %v909, %v908
    %926 = vmatprep.subr.bf16.mxu0 0
    %927 = vmatpush1.bf16.msra.mxu0 %v910
    %928 = vmatprep.subr.bf16.mxu0 0
    %929 = vmatpush1.bf16.msra.mxu0 %v911
    %930 = vmatprep.subr.bf16.mxu0 0
    %931 = vmatpush1.bf16.msra.mxu0 %v912
    %932 = vmatprep.subr.bf16.mxu0 0
    %933 = vmatpush1.bf16.msra.mxu0 %v913
    %934 = vmatprep.subr.bf16.mxu0 0
    %935 = vmatpush1.bf16.msra.mxu0 %v914
    %936 = vmatprep.subr.bf16.mxu0 0
    %937 = vmatpush1.bf16.msra.mxu0 %v915
    %938 = vmatprep.subr.bf16.mxu0 0
    %939 = vmatpush1.bf16.msra.mxu0 %v916
    %940 = vmatprep.subr.bf16.mxu0 0
    %941 = vmatpush1.bf16.msra.mxu0 %v917
    %942 = vmatprep.subr.bf16.mxu0 0
    %943 = vmatpush1.bf16.msra.mxu0 0
    %944 = vmatprep.subr.bf16.mxu0 0
    %945 = vmatpush1.bf16.msra.mxu0 0
    %946 = vmatprep.subr.bf16.mxu0 0
    %947 = vmatpush1.bf16.msra.mxu0 0
    %948 = vmatprep.subr.bf16.mxu0 0
    %949 = vmatpush1.bf16.msra.mxu0 0
    %950 = vmatprep.subr.bf16.mxu0 0
    %951 = vmatpush1.bf16.msra.mxu0 0
    %952 = vmatprep.subr.bf16.mxu0 0
    %953 = vmatpush1.bf16.msra.mxu0 0
    %954 = vmatprep.subr.bf16.mxu0 0
    %955 = vmatpush1.bf16.msra.mxu0 0
    %956 = vmatprep.subr.bf16.mxu0 0
    %957 = vmatpush1.bf16.msra.mxu0 0
    %958 = vmatprep.mubr.bf16.mxu0 0
    %959 = vmatmul.mubr.bf16.gmra.mrb[0].mxu0 %v861
    %v960 = vpop.f32.mrb[0].mxu0
    %v961 = vadd.f32 0.0, %v960
    %v962 = vpop.f32.mrb[0].mxu0
    %v963 = vpop.f32.mrb[0].mxu0
    %v964 = vpop.f32.mrb[0].mxu0
    %965 = vdwg.mxu0
    %v966 = vmax.f32 %v961, 0.0
    %v967 = vpack.c.bf16 %v966, %v966
    %v968 = vld [vmem:[#allocation20] sm:$0xf]
    %vm969 = vcmask 64512
    %v971 = vsel %vm969, %v967, 0
    %vm973 = vcmask 1043456
    %v975 = vsel %vm973, %v968, 0
    %977 = vmatprep.subr.bf16.mxu0 0
    %978 = vmatpush1.bf16.msra.mxu0 %v975
    %979 = vmatprep.subr.bf16.mxu0 0
    %980 = vmatpush1.bf16.msra.mxu0 0
    %981 = vmatprep.subr.bf16.mxu0 0
    %982 = vmatpush1.bf16.msra.mxu0 0
    %983 = vmatprep.subr.bf16.mxu0 0
    %984 = vmatpush1.bf16.msra.mxu0 0
    %985 = vmatprep.subr.bf16.mxu0 0
    %986 = vmatpush1.bf16.msra.mxu0 0
    %987 = vmatprep.subr.bf16.mxu0 0
    %988 = vmatpush1.bf16.msra.mxu0 0
    %989 = vmatprep.subr.bf16.mxu0 0
    %990 = vmatpush1.bf16.msra.mxu0 0
    %991 = vmatprep.subr.bf16.mxu0 0
    %992 = vmatpush1.bf16.msra.mxu0 0
    %993 = vmatprep.subr.bf16.mxu0 0
    %994 = vmatpush1.bf16.msra.mxu0 0
    %995 = vmatprep.subr.bf16.mxu0 0
    %996 = vmatpush1.bf16.msra.mxu0 0
    %997 = vmatprep.subr.bf16.mxu0 0
    %998 = vmatpush1.bf16.msra.mxu0 0
    %999 = vmatprep.subr.bf16.mxu0 0
    %1000 = vmatpush1.bf16.msra.mxu0 0
    %1001 = vmatprep.subr.bf16.mxu0 0
    %1002 = vmatpush1.bf16.msra.mxu0 0
    %1003 = vmatprep.subr.bf16.mxu0 0
    %1004 = vmatpush1.bf16.msra.mxu0 0
    %1005 = vmatprep.subr.bf16.mxu0 0
    %1006 = vmatpush1.bf16.msra.mxu0 0
    %1007 = vmatprep.subr.bf16.mxu0 0
    %1008 = vmatpush1.bf16.msra.mxu0 0
    %1009 = vmatprep.mubr.bf16.mxu0 0
    %1010 = vmatmul.mubr.bf16.gmra.mrb[0].mxu0 %v971
    %v1011 = vpop.f32.mrb[0].mxu0
    %v1012 = vadd.f32 0.0, %v1011
    %v1013 = vpop.f32.mrb[0].mxu0
    %v1014 = vpop.f32.mrb[0].mxu0
    %v1015 = vpop.f32.mrb[0].mxu0
    %1016 = vdwg.mxu0
    %v1017 = vxor.u32 %v1012, 2147483648
    %v1018 = vmul.f32 %v1017, 1.442695
    %v1019 = vpow.pop %v1018
    %v1020 = vadd.f32 %v1019, 1.0
    %v1021 = vrcp.pop %v1020
    %v1022 = vmul.f32 1.0, %v1021
    %v1023 = vmul.f32 %v856, %v1022
    %v1024 = vadd.f32 %v620, %v1023
    %v1025 = vpack.c.bf16 %v1024, %v1024
    %v1026 = vld [vmem:[#allocation22] sm:$0xff]
    %v1027 = vld [vmem:[#allocation22 + $0x8] sm:$0xff]
    %v1028 = vld [vmem:[#allocation22 + $0x10] sm:$0xff]
    %v1029 = vld [vmem:[#allocation22 + $0x18] sm:$0xff]
    %v1030 = vld [vmem:[#allocation22 + $0x20] sm:$0xff]
    %v1031 = vld [vmem:[#allocation22 + $0x28] sm:$0xff]
    %v1032 = vld [vmem:[#allocation22 + $0x30] sm:$0xff]
    %v1033 = vld [vmem:[#allocation22 + $0x38] sm:$0xff]
    %v1034 = vld [vmem:[#allocation22 + $0x40] sm:$0xff]
    %v1035 = vld [vmem:[#allocation22 + $0x48] sm:$0xff]
    %v1036 = vld [vmem:[#allocation22 + $0x50] sm:$0xff]
    %v1037 = vld [vmem:[#allocation22 + $0x58] sm:$0xff]
    %v1038 = vld [vmem:[#allocation22 + $0x60] sm:$0xff]
    %v1039 = vld [vmem:[#allocation22 + $0x68] sm:$0xff]
    %v1040 = vld [vmem:[#allocation22 + $0x70] sm:$0xff]
    %v1041 = vld [vmem:[#allocation22 + $0x78] sm:$0xff]
    %v1058 = vunpack.c.l.b16 %v1026
    %v1059 = vunpack.c.h.b16 %v1026
    %v1060 = vunpack.c.l.b16 %v1027
    %v1061 = vunpack.c.h.b16 %v1027
    %v1062 = vunpack.c.l.b16 %v1028
    %v1063 = vunpack.c.h.b16 %v1028
    %v1064 = vunpack.c.l.b16 %v1029
    %v1065 = vunpack.c.h.b16 %v1029
    %v1066 = vunpack.c.l.b16 %v1030
    %v1067 = vunpack.c.h.b16 %v1030
    %v1068 = vunpack.c.l.b16 %v1031
    %v1069 = vunpack.c.h.b16 %v1031
    %v1070 = vunpack.c.l.b16 %v1032
    %v1071 = vunpack.c.h.b16 %v1032
    %v1072 = vunpack.c.l.b16 %v1033
    %v1073 = vunpack.c.h.b16 %v1033
    %v1074 = vunpack.c.l.b16 %v1034
    %v1075 = vunpack.c.h.b16 %v1034
    %v1076 = vunpack.c.l.b16 %v1035
    %v1077 = vunpack.c.h.b16 %v1035
    %v1078 = vunpack.c.l.b16 %v1036
    %v1079 = vunpack.c.h.b16 %v1036
    %v1080 = vunpack.c.l.b16 %v1037
    %v1081 = vunpack.c.h.b16 %v1037
    %v1082 = vunpack.c.l.b16 %v1038
    %v1083 = vunpack.c.h.b16 %v1038
    %v1084 = vunpack.c.l.b16 %v1039
    %v1085 = vunpack.c.h.b16 %v1039
    %v1086 = vunpack.c.l.b16 %v1040
    %v1087 = vunpack.c.h.b16 %v1040
    %v1088 = vunpack.c.l.b16 %v1041
    %v1089 = vunpack.c.h.b16 %v1041
    %v1090 = vpack.c.b16 %v1060, %v1058
    %v1091 = vpack.c.b16 %v1061, %v1059
    %v1092 = vpack.c.b16 %v1064, %v1062
    %v1093 = vpack.c.b16 %v1065, %v1063
    %v1094 = vpack.c.b16 %v1068, %v1066
    %v1095 = vpack.c.b16 %v1069, %v1067
    %v1096 = vpack.c.b16 %v1072, %v1070
    %v1097 = vpack.c.b16 %v1073, %v1071
    %v1098 = vpack.c.b16 %v1076, %v1074
    %v1099 = vpack.c.b16 %v1077, %v1075
    %v1100 = vpack.c.b16 %v1080, %v1078
    %v1101 = vpack.c.b16 %v1081, %v1079
    %v1102 = vpack.c.b16 %v1084, %v1082
    %v1103 = vpack.c.b16 %v1085, %v1083
    %v1104 = vpack.c.b16 %v1088, %v1086
    %v1105 = vpack.c.b16 %v1089, %v1087
    %1122 = vmatprep.subr.bf16.mxu0 %v1091
    %1123 = vmatpush1.bf16.msra.mxu0 %v1090
    %1124 = vmatprep.subr.bf16.mxu0 %v1093
    %1125 = vmatpush1.bf16.msra.mxu0 %v1092
    %1126 = vmatprep.subr.bf16.mxu0 %v1095
    %1127 = vmatpush1.bf16.msra.mxu0 %v1094
    %1128 = vmatprep.subr.bf16.mxu0 %v1097
    %1129 = vmatpush1.bf16.msra.mxu0 %v1096
    %1130 = vmatprep.subr.bf16.mxu0 %v1099
    %1131 = vmatpush1.bf16.msra.mxu0 %v1098
    %1132 = vmatprep.subr.bf16.mxu0 %v1101
    %1133 = vmatpush1.bf16.msra.mxu0 %v1100
    %1134 = vmatprep.subr.bf16.mxu0 %v1103
    %1135 = vmatpush1.bf16.msra.mxu0 %v1102
    %1136 = vmatprep.subr.bf16.mxu0 %v1105
    %1137 = vmatpush1.bf16.msra.mxu0 %v1104
    %1138 = vmatprep.subr.bf16.mxu0 0
    %1139 = vmatpush1.bf16.msra.mxu0 0
    %1140 = vmatprep.subr.bf16.mxu0 0
    %1141 = vmatpush1.bf16.msra.mxu0 0
    %1142 = vmatprep.subr.bf16.mxu0 0
    %1143 = vmatpush1.bf16.msra.mxu0 0
    %1144 = vmatprep.subr.bf16.mxu0 0
    %1145 = vmatpush1.bf16.msra.mxu0 0
    %1146 = vmatprep.subr.bf16.mxu0 0
    %1147 = vmatpush1.bf16.msra.mxu0 0
    %1148 = vmatprep.subr.bf16.mxu0 0
    %1149 = vmatpush1.bf16.msra.mxu0 0
    %1150 = vmatprep.subr.bf16.mxu0 0
    %1151 = vmatpush1.bf16.msra.mxu0 0
    %1152 = vmatprep.subr.bf16.mxu0 0
    %1153 = vmatpush1.bf16.msra.mxu0 0
    %1154 = vmatprep.mubr.bf16.mxu0 0
    %1155 = vmatmul.mubr.bf16.gmra.mrb[0].mxu0 %v1025
    %v1156 = vpop.f32.mrb[0].mxu0
    %v1157 = vadd.f32 0.0, %v1156
    %v1158 = vpop.f32.mrb[0].mxu0
    %v1159 = vadd.f32 0.0, %v1158
    %v1160 = vpop.f32.mrb[0].mxu0
    %v1161 = vpop.f32.mrb[0].mxu0
    %1162 = vdwg.mxu0
    %v1163 = vld [vmem:[#allocation23] sm:$0x3]
    %v1165 = vlaneseq
    %v1166 = vshrl.u32 %v1165, 7
    %v1167 = vsub.s32 0, %v1166
    %v1168 = vrot.slane %v1163, %v1167
    %v1169 = vlaneseq
    %v1170 = vshrl.u32 %v1169, 7
    %v1171 = vsub.s32 1, %v1170
    %v1172 = vrot.slane %v1163, %v1171
    %v1175 = vmul.f32 %v1157, %v1168
    %v1176 = vmul.f32 %v1159, %v1172
    %v1177 = vld [vmem:[#allocation25] sm:$0x3]
    %v1179 = vlaneseq
    %v1180 = vshrl.u32 %v1179, 7
    %v1181 = vsub.s32 0, %v1180
    %v1182 = vrot.slane %v1177, %v1181
    %v1183 = vlaneseq
    %v1184 = vshrl.u32 %v1183, 7
    %v1185 = vsub.s32 1, %v1184
    %v1186 = vrot.slane %v1177, %v1185
    %v1189 = vadd.f32 %v1175, %v1182
    %v1190 = vadd.f32 %v1176, %v1186
    %v1191 = vxor.u32 %v1189, 2147483648
    %v1192 = vxor.u32 %v1190, 2147483648
    %v1193 = vmul.f32 %v1191, 1.442695
    %v1194 = vpow.pop %v1193
    %v1195 = vmul.f32 %v1192, 1.442695
    %v1196 = vpow.pop %v1195
    %v1197 = vadd.f32 %v1194, 1.0
    %v1198 = vadd.f32 %v1196, 1.0
    %v1199 = vrcp.pop %v1197
    %v1200 = vmul.f32 1.0, %v1199
    %v1201 = vrcp.pop %v1198
    %v1202 = vmul.f32 1.0, %v1201
    %v1203 = vmul.f32 %v1189, %v1200
    %v1204 = vmul.f32 %v1190, %v1202
    %v1205 = vpack.c.bf16 %v1203, %v1203
    %v1206 = vpack.c.bf16 %v1204, %v1204
    %v1207 = vld [vmem:[%s35] sm:$0xff]
    %v1208 = vld [vmem:[%s35 + $0x8] sm:$0xff]
    %v1209 = vld [vmem:[%s35 + $0x10] sm:$0xff]
    %v1210 = vld [vmem:[%s35 + $0x18] sm:$0xff]
    %v1211 = vld [vmem:[%s35 + $0x20] sm:$0xff]
    %v1212 = vld [vmem:[%s35 + $0x28] sm:$0xff]
    %v1213 = vld [vmem:[%s35 + $0x30] sm:$0xff]
    %v1214 = vld [vmem:[%s35 + $0x38] sm:$0xff]
    %v1215 = vld [vmem:[%s35 + $0x40] sm:$0xff]
    %v1216 = vld [vmem:[%s35 + $0x48] sm:$0xff]
    %v1217 = vld [vmem:[%s35 + $0x50] sm:$0xff]
    %v1218 = vld [vmem:[%s35 + $0x58] sm:$0xff]
    %v1219 = vld [vmem:[%s35 + $0x60] sm:$0xff]
    %v1220 = vld [vmem:[%s35 + $0x68] sm:$0xff]
    %v1221 = vld [vmem:[%s35 + $0x70] sm:$0xff]
    %v1222 = vld [vmem:[%s35 + $0x78] sm:$0xff]
    %v1223 = vld [vmem:[%s35 + $0x80] sm:$0xff]
    %v1224 = vld [vmem:[%s35 + $0x88] sm:$0xff]
    %v1225 = vld [vmem:[%s35 + $0x90] sm:$0xff]
    %v1226 = vld [vmem:[%s35 + $0x98] sm:$0xff]
    %v1227 = vld [vmem:[%s35 + $0xa0] sm:$0xff]
    %v1228 = vld [vmem:[%s35 + $0xa8] sm:$0xff]
    %v1229 = vld [vmem:[%s35 + $0xb0] sm:$0xff]
    %v1230 = vld [vmem:[%s35 + $0xb8] sm:$0xff]
    %v1231 = vld [vmem:[%s35 + $0xc0] sm:$0xff]
    %v1232 = vld [vmem:[%s35 + $0xc8] sm:$0xff]
    %v1233 = vld [vmem:[%s35 + $0xd0] sm:$0xff]
    %v1234 = vld [vmem:[%s35 + $0xd8] sm:$0xff]
    %v1235 = vld [vmem:[%s35 + $0xe0] sm:$0xff]
    %v1236 = vld [vmem:[%s35 + $0xe8] sm:$0xff]
    %v1237 = vld [vmem:[%s35 + $0xf0] sm:$0xff]
    %v1238 = vld [vmem:[%s35 + $0xf8] sm:$0xff]
    %v1271 = vunpack.c.l.b16 %v1207
    %v1272 = vunpack.c.h.b16 %v1207
    %v1273 = vunpack.c.l.b16 %v1208
    %v1274 = vunpack.c.h.b16 %v1208
    %v1275 = vunpack.c.l.b16 %v1209
    %v1276 = vunpack.c.h.b16 %v1209
    %v1277 = vunpack.c.l.b16 %v1210
    %v1278 = vunpack.c.h.b16 %v1210
    %v1279 = vunpack.c.l.b16 %v1211
    %v1280 = vunpack.c.h.b16 %v1211
    %v1281 = vunpack.c.l.b16 %v1212
    %v1282 = vunpack.c.h.b16 %v1212
    %v1283 = vunpack.c.l.b16 %v1213
    %v1284 = vunpack.c.h.b16 %v1213
    %v1285 = vunpack.c.l.b16 %v1214
    %v1286 = vunpack.c.h.b16 %v1214
    %v1287 = vunpack.c.l.b16 %v1215
    %v1288 = vunpack.c.h.b16 %v1215
    %v1289 = vunpack.c.l.b16 %v1216
    %v1290 = vunpack.c.h.b16 %v1216
    %v1291 = vunpack.c.l.b16 %v1217
    %v1292 = vunpack.c.h.b16 %v1217
    %v1293 = vunpack.c.l.b16 %v1218
    %v1294 = vunpack.c.h.b16 %v1218
    %v1295 = vunpack.c.l.b16 %v1219
    %v1296 = vunpack.c.h.b16 %v1219
    %v1297 = vunpack.c.l.b16 %v1220
    %v1298 = vunpack.c.h.b16 %v1220
    %v1299 = vunpack.c.l.b16 %v1221
    %v1300 = vunpack.c.h.b16 %v1221
    %v1301 = vunpack.c.l.b16 %v1222
    %v1302 = vunpack.c.h.b16 %v1222
    %v1303 = vunpack.c.l.b16 %v1223
    %v1304 = vunpack.c.h.b16 %v1223
    %v1305 = vunpack.c.l.b16 %v1224
    %v1306 = vunpack.c.h.b16 %v1224
    %v1307 = vunpack.c.l.b16 %v1225
    %v1308 = vunpack.c.h.b16 %v1225
    %v1309 = vunpack.c.l.b16 %v1226
    %v1310 = vunpack.c.h.b16 %v1226
    %v1311 = vunpack.c.l.b16 %v1227
    %v1312 = vunpack.c.h.b16 %v1227
    %v1313 = vunpack.c.l.b16 %v1228
    %v1314 = vunpack.c.h.b16 %v1228
    %v1315 = vunpack.c.l.b16 %v1229
    %v1316 = vunpack.c.h.b16 %v1229
    %v1317 = vunpack.c.l.b16 %v1230
    %v1318 = vunpack.c.h.b16 %v1230
    %v1319 = vunpack.c.l.b16 %v1231
    %v1320 = vunpack.c.h.b16 %v1231
    %v1321 = vunpack.c.l.b16 %v1232
    %v1322 = vunpack.c.h.b16 %v1232
    %v1323 = vunpack.c.l.b16 %v1233
    %v1324 = vunpack.c.h.b16 %v1233
    %v1325 = vunpack.c.l.b16 %v1234
    %v1326 = vunpack.c.h.b16 %v1234
    %v1327 = vunpack.c.l.b16 %v1235
    %v1328 = vunpack.c.h.b16 %v1235
    %v1329 = vunpack.c.l.b16 %v1236
    %v1330 = vunpack.c.h.b16 %v1236
    %v1331 = vunpack.c.l.b16 %v1237
    %v1332 = vunpack.c.h.b16 %v1237
    %v1333 = vunpack.c.l.b16 %v1238
    %v1334 = vunpack.c.h.b16 %v1238
    %v1335 = vpack.c.b16 %v1273, %v1271
    %v1336 = vpack.c.b16 %v1274, %v1272
    %v1337 = vpack.c.b16 %v1277, %v1275
    %v1338 = vpack.c.b16 %v1278, %v1276
    %v1339 = vpack.c.b16 %v1281, %v1279
    %v1340 = vpack.c.b16 %v1282, %v1280
    %v1341 = vpack.c.b16 %v1285, %v1283
    %v1342 = vpack.c.b16 %v1286, %v1284
    %v1343 = vpack.c.b16 %v1289, %v1287
    %v1344 = vpack.c.b16 %v1290, %v1288
    %v1345 = vpack.c.b16 %v1293, %v1291
    %v1346 = vpack.c.b16 %v1294, %v1292
    %v1347 = vpack.c.b16 %v1297, %v1295
    %v1348 = vpack.c.b16 %v1298, %v1296
    %v1349 = vpack.c.b16 %v1301, %v1299
    %v1350 = vpack.c.b16 %v1302, %v1300
    %v1351 = vpack.c.b16 %v1305, %v1303
    %v1352 = vpack.c.b16 %v1306, %v1304
    %v1353 = vpack.c.b16 %v1309, %v1307
    %v1354 = vpack.c.b16 %v1310, %v1308
    %v1355 = vpack.c.b16 %v1313, %v1311
    %v1356 = vpack.c.b16 %v1314, %v1312
    %v1357 = vpack.c.b16 %v1317, %v1315
    %v1358 = vpack.c.b16 %v1318, %v1316
    %v1359 = vpack.c.b16 %v1321, %v1319
    %v1360 = vpack.c.b16 %v1322, %v1320
    %v1361 = vpack.c.b16 %v1325, %v1323
    %v1362 = vpack.c.b16 %v1326, %v1324
    %v1363 = vpack.c.b16 %v1329, %v1327
    %v1364 = vpack.c.b16 %v1330, %v1328
    %v1365 = vpack.c.b16 %v1333, %v1331
    %v1366 = vpack.c.b16 %v1334, %v1332
    %1399 = vmatprep.subr.bf16.mxu0 %v1336
    %1400 = vmatpush1.bf16.msra.mxu0 %v1335
    %1401 = vmatprep.subr.bf16.mxu0 %v1338
    %1402 = vmatpush1.bf16.msra.mxu0 %v1337
    %1403 = vmatprep.subr.bf16.mxu0 %v1340
    %1404 = vmatpush1.bf16.msra.mxu0 %v1339
    %1405 = vmatprep.subr.bf16.mxu0 %v1342
    %1406 = vmatpush1.bf16.msra.mxu0 %v1341
    %1407 = vmatprep.subr.bf16.mxu0 %v1344
    %1408 = vmatpush1.bf16.msra.mxu0 %v1343
    %1409 = vmatprep.subr.bf16.mxu0 %v1346
    %1410 = vmatpush1.bf16.msra.mxu0 %v1345
    %1411 = vmatprep.subr.bf16.mxu0 %v1348
    %1412 = vmatpush1.bf16.msra.mxu0 %v1347
    %1413 = vmatprep.subr.bf16.mxu0 %v1350
    %1414 = vmatpush1.bf16.msra.mxu0 %v1349
    %1415 = vmatprep.subr.bf16.mxu0 %v1352
    %1416 = vmatpush1.bf16.msra.mxu0 %v1351
    %1417 = vmatprep.subr.bf16.mxu0 %v1354
    %1418 = vmatpush1.bf16.msra.mxu0 %v1353
    %1419 = vmatprep.subr.bf16.mxu0 %v1356
    %1420 = vmatpush1.bf16.msra.mxu0 %v1355
    %1421 = vmatprep.subr.bf16.mxu0 %v1358
    %1422 = vmatpush1.bf16.msra.mxu0 %v1357
    %1423 = vmatprep.subr.bf16.mxu0 %v1360
    %1424 = vmatpush1.bf16.msra.mxu0 %v1359
    %1425 = vmatprep.subr.bf16.mxu0 %v1362
    %1426 = vmatpush1.bf16.msra.mxu0 %v1361
    %1427 = vmatprep.subr.bf16.mxu0 %v1364
    %1428 = vmatpush1.bf16.msra.mxu0 %v1363
    %1429 = vmatprep.subr.bf16.mxu0 %v1366
    %1430 = vmatpush1.bf16.msra.mxu0 %v1365
    %1431 = vmatprep.mubr.bf16.mxu0 %v1206
    %1432 = vmatmul.mubr.bf16.gmra.mrb[0].mxu0 %v1205
    %v1433 = vpop.f32.mrb[0].mxu0
    %v1434 = vadd.f32 0.0, %v1433
    %v1435 = vpop.f32.mrb[0].mxu0
    %v1436 = vadd.f32 0.0, %v1435
    %v1437 = vpop.f32.mrb[0].mxu0
    %v1438 = vpop.f32.mrb[0].mxu0
    %1439 = vdwg.mxu0
    %v1440 = vld [vmem:[#allocation26] sm:$0x3]
    %v1442 = vlaneseq
    %v1443 = vshrl.u32 %v1442, 7
    %v1444 = vsub.s32 0, %v1443
    %v1445 = vrot.slane %v1440, %v1444
    %v1446 = vlaneseq
    %v1447 = vshrl.u32 %v1446, 7
    %v1448 = vsub.s32 1, %v1447
    %v1449 = vrot.slane %v1440, %v1448
    %v1452 = vmul.f32 %v1434, %v1445
    %v1453 = vmul.f32 %v1436, %v1449
    %v1454 = vld [vmem:[%s39] sm:$0x3]
    %v1456 = vlaneseq
    %v1457 = vshrl.u32 %v1456, 7
    %v1458 = vsub.s32 0, %v1457
    %v1459 = vrot.slane %v1454, %v1458
    %v1460 = vlaneseq
    %v1461 = vshrl.u32 %v1460, 7
    %v1462 = vsub.s32 1, %v1461
    %v1463 = vrot.slane %v1454, %v1462
    %v1466 = vadd.f32 %v1452, %v1459
    %v1467 = vadd.f32 %v1453, %v1463
    %v1468 = vxor.u32 %v1466, 2147483648
    %v1469 = vxor.u32 %v1467, 2147483648
    %v1470 = vmul.f32 %v1468, 1.442695
    %v1471 = vpow.pop %v1470
    %v1472 = vmul.f32 %v1469, 1.442695
    %v1473 = vpow.pop %v1472
    %v1474 = vadd.f32 %v1471, 1.0
    %v1475 = vadd.f32 %v1473, 1.0
    %v1476 = vrcp.pop %v1474
    %v1477 = vmul.f32 1.0, %v1476
    %v1478 = vrcp.pop %v1475
    %v1479 = vmul.f32 1.0, %v1478
    %v1480 = vmul.f32 %v1466, %v1477
    %v1481 = vmul.f32 %v1467, %v1479
    %v1482 = vpack.c.bf16 %v1480, %v1480
    %v1483 = vpack.c.bf16 %v1481, %v1481
    %v1484 = vld [vmem:[#allocation28] sm:$0xff]
    %v1485 = vld [vmem:[#allocation28 + $0x8] sm:$0xff]
    %v1486 = vld [vmem:[#allocation28 + $0x10] sm:$0xff]
    %v1487 = vld [vmem:[#allocation28 + $0x18] sm:$0xff]
    %v1488 = vld [vmem:[#allocation28 + $0x20] sm:$0xff]
    %v1489 = vld [vmem:[#allocation28 + $0x28] sm:$0xff]
    %v1490 = vld [vmem:[#allocation28 + $0x30] sm:$0xff]
    %v1491 = vld [vmem:[#allocation28 + $0x38] sm:$0xff]
    %v1492 = vld [vmem:[#allocation28 + $0x40] sm:$0xff]
    %v1493 = vld [vmem:[#allocation28 + $0x48] sm:$0xff]
    %v1494 = vld [vmem:[#allocation28 + $0x50] sm:$0xff]
    %v1495 = vld [vmem:[#allocation28 + $0x58] sm:$0xff]
    %v1496 = vld [vmem:[#allocation28 + $0x60] sm:$0xff]
    %v1497 = vld [vmem:[#allocation28 + $0x68] sm:$0xff]
    %v1498 = vld [vmem:[#allocation28 + $0x70] sm:$0xff]
    %v1499 = vld [vmem:[#allocation28 + $0x78] sm:$0xff]
    %v1500 = vld [vmem:[#allocation28 + $0x80] sm:$0xff]
    %v1501 = vld [vmem:[#allocation28 + $0x88] sm:$0xff]
    %v1502 = vld [vmem:[#allocation28 + $0x90] sm:$0xff]
    %v1503 = vld [vmem:[#allocation28 + $0x98] sm:$0xff]
    %v1504 = vld [vmem:[#allocation28 + $0xa0] sm:$0xff]
    %v1505 = vld [vmem:[#allocation28 + $0xa8] sm:$0xff]
    %v1506 = vld [vmem:[#allocation28 + $0xb0] sm:$0xff]
    %v1507 = vld [vmem:[#allocation28 + $0xb8] sm:$0xff]
    %v1508 = vld [vmem:[#allocation28 + $0xc0] sm:$0xff]
    %v1509 = vld [vmem:[#allocation28 + $0xc8] sm:$0xff]
    %v1510 = vld [vmem:[#allocation28 + $0xd0] sm:$0xff]
    %v1511 = vld [vmem:[#allocation28 + $0xd8] sm:$0xff]
    %v1512 = vld [vmem:[#allocation28 + $0xe0] sm:$0xff]
    %v1513 = vld [vmem:[#allocation28 + $0xe8] sm:$0xff]
    %v1514 = vld [vmem:[#allocation28 + $0xf0] sm:$0xff]
    %v1515 = vld [vmem:[#allocation28 + $0xf8] sm:$0xff]
    %v1548 = vunpack.c.l.b16 %v1484
    %v1549 = vunpack.c.h.b16 %v1484
    %v1550 = vunpack.c.l.b16 %v1485
    %v1551 = vunpack.c.h.b16 %v1485
    %v1552 = vunpack.c.l.b16 %v1486
    %v1553 = vunpack.c.h.b16 %v1486
    %v1554 = vunpack.c.l.b16 %v1487
    %v1555 = vunpack.c.h.b16 %v1487
    %v1556 = vunpack.c.l.b16 %v1488
    %v1557 = vunpack.c.h.b16 %v1488
    %v1558 = vunpack.c.l.b16 %v1489
    %v1559 = vunpack.c.h.b16 %v1489
    %v1560 = vunpack.c.l.b16 %v1490
    %v1561 = vunpack.c.h.b16 %v1490
    %v1562 = vunpack.c.l.b16 %v1491
    %v1563 = vunpack.c.h.b16 %v1491
    %v1564 = vunpack.c.l.b16 %v1492
    %v1565 = vunpack.c.h.b16 %v1492
    %v1566 = vunpack.c.l.b16 %v1493
    %v1567 = vunpack.c.h.b16 %v1493
    %v1568 = vunpack.c.l.b16 %v1494
    %v1569 = vunpack.c.h.b16 %v1494
    %v1570 = vunpack.c.l.b16 %v1495
    %v1571 = vunpack.c.h.b16 %v1495
    %v1572 = vunpack.c.l.b16 %v1496
    %v1573 = vunpack.c.h.b16 %v1496
    %v1574 = vunpack.c.l.b16 %v1497
    %v1575 = vunpack.c.h.b16 %v1497
    %v1576 = vunpack.c.l.b16 %v1498
    %v1577 = vunpack.c.h.b16 %v1498
    %v1578 = vunpack.c.l.b16 %v1499
    %v1579 = vunpack.c.h.b16 %v1499
    %v1580 = vunpack.c.l.b16 %v1500
    %v1581 = vunpack.c.h.b16 %v1500
    %v1582 = vunpack.c.l.b16 %v1501
    %v1583 = vunpack.c.h.b16 %v1501
    %v1584 = vunpack.c.l.b16 %v1502
    %v1585 = vunpack.c.h.b16 %v1502
    %v1586 = vunpack.c.l.b16 %v1503
    %v1587 = vunpack.c.h.b16 %v1503
    %v1588 = vunpack.c.l.b16 %v1504
    %v1589 = vunpack.c.h.b16 %v1504
    %v1590 = vunpack.c.l.b16 %v1505
    %v1591 = vunpack.c.h.b16 %v1505
    %v1592 = vunpack.c.l.b16 %v1506
    %v1593 = vunpack.c.h.b16 %v1506
    %v1594 = vunpack.c.l.b16 %v1507
    %v1595 = vunpack.c.h.b16 %v1507
    %v1596 = vunpack.c.l.b16 %v1508
    %v1597 = vunpack.c.h.b16 %v1508
    %v1598 = vunpack.c.l.b16 %v1509
    %v1599 = vunpack.c.h.b16 %v1509
    %v1600 = vunpack.c.l.b16 %v1510
    %v1601 = vunpack.c.h.b16 %v1510
    %v1602 = vunpack.c.l.b16 %v1511
    %v1603 = vunpack.c.h.b16 %v1511
    %v1604 = vunpack.c.l.b16 %v1512
    %v1605 = vunpack.c.h.b16 %v1512
    %v1606 = vunpack.c.l.b16 %v1513
    %v1607 = vunpack.c.h.b16 %v1513
    %v1608 = vunpack.c.l.b16 %v1514
    %v1609 = vunpack.c.h.b16 %v1514
    %v1610 = vunpack.c.l.b16 %v1515
    %v1611 = vunpack.c.h.b16 %v1515
    %v1612 = vpack.c.b16 %v1550, %v1548
    %v1613 = vpack.c.b16 %v1551, %v1549
    %v1614 = vpack.c.b16 %v1554, %v1552
    %v1615 = vpack.c.b16 %v1555, %v1553
    %v1616 = vpack.c.b16 %v1558, %v1556
    %v1617 = vpack.c.b16 %v1559, %v1557
    %v1618 = vpack.c.b16 %v1562, %v1560
    %v1619 = vpack.c.b16 %v1563, %v1561
    %v1620 = vpack.c.b16 %v1566, %v1564
    %v1621 = vpack.c.b16 %v1567, %v1565
    %v1622 = vpack.c.b16 %v1570, %v1568
    %v1623 = vpack.c.b16 %v1571, %v1569
    %v1624 = vpack.c.b16 %v1574, %v1572
    %v1625 = vpack.c.b16 %v1575, %v1573
    %v1626 = vpack.c.b16 %v1578, %v1576
    %v1627 = vpack.c.b16 %v1579, %v1577
    %v1628 = vpack.c.b16 %v1582, %v1580
    %v1629 = vpack.c.b16 %v1583, %v1581
    %v1630 = vpack.c.b16 %v1586, %v1584
    %v1631 = vpack.c.b16 %v1587, %v1585
    %v1632 = vpack.c.b16 %v1590, %v1588
    %v1633 = vpack.c.b16 %v1591, %v1589
    %v1634 = vpack.c.b16 %v1594, %v1592
    %v1635 = vpack.c.b16 %v1595, %v1593
    %v1636 = vpack.c.b16 %v1598, %v1596
    %v1637 = vpack.c.b16 %v1599, %v1597
    %v1638 = vpack.c.b16 %v1602, %v1600
    %v1639 = vpack.c.b16 %v1603, %v1601
    %v1640 = vpack.c.b16 %v1606, %v1604
    %v1641 = vpack.c.b16 %v1607, %v1605
    %v1642 = vpack.c.b16 %v1610, %v1608
    %v1643 = vpack.c.b16 %v1611, %v1609
    %1676 = vmatprep.subr.bf16.mxu0 %v1613
    %1677 = vmatpush1.bf16.msra.mxu0 %v1612
    %1678 = vmatprep.subr.bf16.mxu0 %v1615
    %1679 = vmatpush1.bf16.msra.mxu0 %v1614
    %1680 = vmatprep.subr.bf16.mxu0 %v1617
    %1681 = vmatpush1.bf16.msra.mxu0 %v1616
    %1682 = vmatprep.subr.bf16.mxu0 %v1619
    %1683 = vmatpush1.bf16.msra.mxu0 %v1618
    %1684 = vmatprep.subr.bf16.mxu0 %v1621
    %1685 = vmatpush1.bf16.msra.mxu0 %v1620
    %1686 = vmatprep.subr.bf16.mxu0 %v1623
    %1687 = vmatpush1.bf16.msra.mxu0 %v1622
    %1688 = vmatprep.subr.bf16.mxu0 %v1625
    %1689 = vmatpush1.bf16.msra.mxu0 %v1624
    %1690 = vmatprep.subr.bf16.mxu0 %v1627
    %1691 = vmatpush1.bf16.msra.mxu0 %v1626
    %1692 = vmatprep.subr.bf16.mxu0 %v1629
    %1693 = vmatpush1.bf16.msra.mxu0 %v1628
    %1694 = vmatprep.subr.bf16.mxu0 %v1631
    %1695 = vmatpush1.bf16.msra.mxu0 %v1630
    %1696 = vmatprep.subr.bf16.mxu0 %v1633
    %1697 = vmatpush1.bf16.msra.mxu0 %v1632
    %1698 = vmatprep.subr.bf16.mxu0 %v1635
    %1699 = vmatpush1.bf16.msra.mxu0 %v1634
    %1700 = vmatprep.subr.bf16.mxu0 %v1637
    %1701 = vmatpush1.bf16.msra.mxu0 %v1636
    %1702 = vmatprep.subr.bf16.mxu0 %v1639
    %1703 = vmatpush1.bf16.msra.mxu0 %v1638
    %1704 = vmatprep.subr.bf16.mxu0 %v1641
    %1705 = vmatpush1.bf16.msra.mxu0 %v1640
    %1706 = vmatprep.subr.bf16.mxu0 %v1643
    %1707 = vmatpush1.bf16.msra.mxu0 %v1642
    %1708 = vmatprep.mubr.bf16.mxu0 %v1483
    %1709 = vmatmul.mubr.bf16.gmra.mrb[0].mxu0 %v1482
    %v1710 = vpop.f32.mrb[0].mxu0
    %v1711 = vadd.f32 0.0, %v1710
    %v1712 = vpop.f32.mrb[0].mxu0
    %v1713 = vadd.f32 0.0, %v1712
    %v1714 = vpop.f32.mrb[0].mxu0
    %v1715 = vpop.f32.mrb[0].mxu0
    %1716 = vdwg.mxu0
    %v1717 = vld [vmem:[#allocation29] sm:$0x3]
    %v1719 = vlaneseq
    %v1720 = vshrl.u32 %v1719, 7
    %v1721 = vsub.s32 0, %v1720
    %v1722 = vrot.slane %v1717, %v1721
    %v1723 = vlaneseq
    %v1724 = vshrl.u32 %v1723, 7
    %v1725 = vsub.s32 1, %v1724
    %v1726 = vrot.slane %v1717, %v1725
    %v1729 = vmul.f32 %v1711, %v1722
    %v1730 = vmul.f32 %v1713, %v1726
    %v1731 = vld [vmem:[#allocation31] sm:$0x3]
    %v1733 = vlaneseq
    %v1734 = vshrl.u32 %v1733, 7
    %v1735 = vsub.s32 0, %v1734
    %v1736 = vrot.slane %v1731, %v1735
    %v1737 = vlaneseq
    %v1738 = vshrl.u32 %v1737, 7
    %v1739 = vsub.s32 1, %v1738
    %v1740 = vrot.slane %v1731, %v1739
    %v1743 = vadd.f32 %v1729, %v1736
    %v1744 = vadd.f32 %v1730, %v1740
    %v1745 = vxor.u32 %v1743, 2147483648
    %v1746 = vxor.u32 %v1744, 2147483648
    %v1747 = vmul.f32 %v1745, 1.442695
    %v1748 = vpow.pop %v1747
    %v1749 = vmul.f32 %v1746, 1.442695
    %v1750 = vpow.pop %v1749
    %v1751 = vadd.f32 %v1748, 1.0
    %v1752 = vadd.f32 %v1750, 1.0
    %v1753 = vrcp.pop %v1751
    %v1754 = vmul.f32 1.0, %v1753
    %v1755 = vrcp.pop %v1752
    %v1756 = vmul.f32 1.0, %v1755
    %v1757 = vmul.f32 %v1743, %v1754
    %v1758 = vmul.f32 %v1744, %v1756
    %v1759 = vpack.c.bf16 %v1757, %v1757
    %v1760 = vpack.c.bf16 %v1758, %v1758
    %v1761 = vld [vmem:[#allocation32] sm:$0xff]
    %v1762 = vld [vmem:[#allocation32 + $0x8] sm:$0xff]
    %v1763 = vld [vmem:[#allocation32 + $0x10] sm:$0xff]
    %v1764 = vld [vmem:[#allocation32 + $0x18] sm:$0xff]
    %v1765 = vld [vmem:[#allocation32 + $0x20] sm:$0xff]
    %v1766 = vld [vmem:[#allocation32 + $0x28] sm:$0xff]
    %v1767 = vld [vmem:[#allocation32 + $0x30] sm:$0xff]
    %v1768 = vld [vmem:[#allocation32 + $0x38] sm:$0xff]
    %v1769 = vld [vmem:[#allocation32 + $0x40] sm:$0xff]
    %v1770 = vld [vmem:[#allocation32 + $0x48] sm:$0xff]
    %v1771 = vld [vmem:[#allocation32 + $0x50] sm:$0xff]
    %v1772 = vld [vmem:[#allocation32 + $0x58] sm:$0xff]
    %v1773 = vld [vmem:[#allocation32 + $0x60] sm:$0xff]
    %v1774 = vld [vmem:[#allocation32 + $0x68] sm:$0xff]
    %v1775 = vld [vmem:[#allocation32 + $0x70] sm:$0xff]
    %v1776 = vld [vmem:[#allocation32 + $0x78] sm:$0xff]
    %v1777 = vld [vmem:[#allocation32 + $0x80] sm:$0xff]
    %v1778 = vld [vmem:[#allocation32 + $0x88] sm:$0xff]
    %v1779 = vld [vmem:[#allocation32 + $0x90] sm:$0xff]
    %v1780 = vld [vmem:[#allocation32 + $0x98] sm:$0xff]
    %v1781 = vld [vmem:[#allocation32 + $0xa0] sm:$0xff]
    %v1782 = vld [vmem:[#allocation32 + $0xa8] sm:$0xff]
    %v1783 = vld [vmem:[#allocation32 + $0xb0] sm:$0xff]
    %v1784 = vld [vmem:[#allocation32 + $0xb8] sm:$0xff]
    %v1785 = vld [vmem:[#allocation32 + $0xc0] sm:$0xff]
    %v1786 = vld [vmem:[#allocation32 + $0xc8] sm:$0xff]
    %v1787 = vld [vmem:[#allocation32 + $0xd0] sm:$0xff]
    %v1788 = vld [vmem:[#allocation32 + $0xd8] sm:$0xff]
    %v1789 = vld [vmem:[#allocation32 + $0xe0] sm:$0xff]
    %v1790 = vld [vmem:[#allocation32 + $0xe8] sm:$0xff]
    %v1791 = vld [vmem:[#allocation32 + $0xf0] sm:$0xff]
    %v1792 = vld [vmem:[#allocation32 + $0xf8] sm:$0xff]
    %v1793 = vld [vmem:[%s49] sm:$0x3]
    %v1795 = vlaneseq
    %v1796 = vshrl.u32 %v1795, 7
    %v1797 = vsub.s32 0, %v1796
    %v1798 = vrot.slane %v1793, %v1797
    %v1799 = vlaneseq
    %v1800 = vshrl.u32 %v1799, 7
    %v1801 = vsub.s32 1, %v1800
    %v1802 = vrot.slane %v1793, %v1801
    %v1837 = vunpack.c.l.b16 %v1761
    %v1838 = vunpack.c.h.b16 %v1761
    %v1839 = vunpack.c.l.b16 %v1762
    %v1840 = vunpack.c.h.b16 %v1762
    %v1841 = vunpack.c.l.b16 %v1763
    %v1842 = vunpack.c.h.b16 %v1763
    %v1843 = vunpack.c.l.b16 %v1764
    %v1844 = vunpack.c.h.b16 %v1764
    %v1845 = vunpack.c.l.b16 %v1765
    %v1846 = vunpack.c.h.b16 %v1765
    %v1847 = vunpack.c.l.b16 %v1766
    %v1848 = vunpack.c.h.b16 %v1766
    %v1849 = vunpack.c.l.b16 %v1767
    %v1850 = vunpack.c.h.b16 %v1767
    %v1851 = vunpack.c.l.b16 %v1768
    %v1852 = vunpack.c.h.b16 %v1768
    %v1853 = vunpack.c.l.b16 %v1769
    %v1854 = vunpack.c.h.b16 %v1769
    %v1855 = vunpack.c.l.b16 %v1770
    %v1856 = vunpack.c.h.b16 %v1770
    %v1857 = vunpack.c.l.b16 %v1771
    %v1858 = vunpack.c.h.b16 %v1771
    %v1859 = vunpack.c.l.b16 %v1772
    %v1860 = vunpack.c.h.b16 %v1772
    %v1861 = vunpack.c.l.b16 %v1773
    %v1862 = vunpack.c.h.b16 %v1773
    %v1863 = vunpack.c.l.b16 %v1774
    %v1864 = vunpack.c.h.b16 %v1774
    %v1865 = vunpack.c.l.b16 %v1775
    %v1866 = vunpack.c.h.b16 %v1775
    %v1867 = vunpack.c.l.b16 %v1776
    %v1868 = vunpack.c.h.b16 %v1776
    %v1869 = vunpack.c.l.b16 %v1777
    %v1870 = vunpack.c.h.b16 %v1777
    %v1871 = vunpack.c.l.b16 %v1778
    %v1872 = vunpack.c.h.b16 %v1778
    %v1873 = vunpack.c.l.b16 %v1779
    %v1874 = vunpack.c.h.b16 %v1779
    %v1875 = vunpack.c.l.b16 %v1780
    %v1876 = vunpack.c.h.b16 %v1780
    %v1877 = vunpack.c.l.b16 %v1781
    %v1878 = vunpack.c.h.b16 %v1781
    %v1879 = vunpack.c.l.b16 %v1782
    %v1880 = vunpack.c.h.b16 %v1782
    %v1881 = vunpack.c.l.b16 %v1783
    %v1882 = vunpack.c.h.b16 %v1783
    %v1883 = vunpack.c.l.b16 %v1784
    %v1884 = vunpack.c.h.b16 %v1784
    %v1885 = vunpack.c.l.b16 %v1785
    %v1886 = vunpack.c.h.b16 %v1785
    %v1887 = vunpack.c.l.b16 %v1786
    %v1888 = vunpack.c.h.b16 %v1786
    %v1889 = vunpack.c.l.b16 %v1787
    %v1890 = vunpack.c.h.b16 %v1787
    %v1891 = vunpack.c.l.b16 %v1788
    %v1892 = vunpack.c.h.b16 %v1788
    %v1893 = vunpack.c.l.b16 %v1789
    %v1894 = vunpack.c.h.b16 %v1789
    %v1895 = vunpack.c.l.b16 %v1790
    %v1896 = vunpack.c.h.b16 %v1790
    %v1897 = vunpack.c.l.b16 %v1791
    %v1898 = vunpack.c.h.b16 %v1791
    %v1899 = vunpack.c.l.b16 %v1792
    %v1900 = vunpack.c.h.b16 %v1792
    %v1901 = vpack.c.b16 %v1839, %v1837
    %v1902 = vpack.c.b16 %v1840, %v1838
    %v1903 = vpack.c.b16 %v1843, %v1841
    %v1904 = vpack.c.b16 %v1844, %v1842
    %v1905 = vpack.c.b16 %v1847, %v1845
    %v1906 = vpack.c.b16 %v1848, %v1846
    %v1907 = vpack.c.b16 %v1851, %v1849
    %v1908 = vpack.c.b16 %v1852, %v1850
    %v1909 = vpack.c.b16 %v1855, %v1853
    %v1910 = vpack.c.b16 %v1856, %v1854
    %v1911 = vpack.c.b16 %v1859, %v1857
    %v1912 = vpack.c.b16 %v1860, %v1858
    %v1913 = vpack.c.b16 %v1863, %v1861
    %v1914 = vpack.c.b16 %v1864, %v1862
    %v1915 = vpack.c.b16 %v1867, %v1865
    %v1916 = vpack.c.b16 %v1868, %v1866
    %v1917 = vpack.c.b16 %v1871, %v1869
    %v1918 = vpack.c.b16 %v1872, %v1870
    %v1919 = vpack.c.b16 %v1875, %v1873
    %v1920 = vpack.c.b16 %v1876, %v1874
    %v1921 = vpack.c.b16 %v1879, %v1877
    %v1922 = vpack.c.b16 %v1880, %v1878
    %v1923 = vpack.c.b16 %v1883, %v1881
    %v1924 = vpack.c.b16 %v1884, %v1882
    %v1925 = vpack.c.b16 %v1887, %v1885
    %v1926 = vpack.c.b16 %v1888, %v1886
    %v1927 = vpack.c.b16 %v1891, %v1889
    %v1928 = vpack.c.b16 %v1892, %v1890
    %v1929 = vpack.c.b16 %v1895, %v1893
    %v1930 = vpack.c.b16 %v1896, %v1894
    %v1931 = vpack.c.b16 %v1899, %v1897
    %v1932 = vpack.c.b16 %v1900, %v1898
    %1965 = vmatprep.subr.bf16.mxu0 %v1902
    %1966 = vmatpush1.bf16.msra.mxu0 %v1901
    %1967 = vmatprep.subr.bf16.mxu0 %v1904
    %1968 = vmatpush1.bf16.msra.mxu0 %v1903
    %1969 = vmatprep.subr.bf16.mxu0 %v1906
    %1970 = vmatpush1.bf16.msra.mxu0 %v1905
    %1971 = vmatprep.subr.bf16.mxu0 %v1908
    %1972 = vmatpush1.bf16.msra.mxu0 %v1907
    %1973 = vmatprep.subr.bf16.mxu0 %v1910
    %1974 = vmatpush1.bf16.msra.mxu0 %v1909
    %1975 = vmatprep.subr.bf16.mxu0 %v1912
    %1976 = vmatpush1.bf16.msra.mxu0 %v1911
    %1977 = vmatprep.subr.bf16.mxu0 %v1914
    %1978 = vmatpush1.bf16.msra.mxu0 %v1913
    %1979 = vmatprep.subr.bf16.mxu0 %v1916
    %1980 = vmatpush1.bf16.msra.mxu0 %v1915
    %1981 = vmatprep.subr.bf16.mxu0 %v1918
    %1982 = vmatpush1.bf16.msra.mxu0 %v1917
    %1983 = vmatprep.subr.bf16.mxu0 %v1920
    %1984 = vmatpush1.bf16.msra.mxu0 %v1919
    %1985 = vmatprep.subr.bf16.mxu0 %v1922
    %1986 = vmatpush1.bf16.msra.mxu0 %v1921
    %1987 = vmatprep.subr.bf16.mxu0 %v1924
    %1988 = vmatpush1.bf16.msra.mxu0 %v1923
    %1989 = vmatprep.subr.bf16.mxu0 %v1926
    %1990 = vmatpush1.bf16.msra.mxu0 %v1925
    %1991 = vmatprep.subr.bf16.mxu0 %v1928
    %1992 = vmatpush1.bf16.msra.mxu0 %v1927
    %1993 = vmatprep.subr.bf16.mxu0 %v1930
    %1994 = vmatpush1.bf16.msra.mxu0 %v1929
    %1995 = vmatprep.subr.bf16.mxu0 %v1932
    %1996 = vmatpush1.bf16.msra.mxu0 %v1931
    %1997 = vmatprep.mubr.bf16.mxu0 %v1760
    %1998 = vmatmul.mubr.bf16.gmra.mrb[0].mxu0 %v1759
    %v1999 = vpop.f32.mrb[0].mxu0
    %v2000 = vadd.f32 %v1798, %v1999
    %v2001 = vpop.f32.mrb[0].mxu0
    %v2002 = vadd.f32 %v1802, %v2001
    %v2003 = vpop.f32.mrb[0].mxu0
    %v2004 = vpop.f32.mrb[0].mxu0
    %2005 = vdwg.mxu0
    %v2006 = vpack.c.bf16 %v2000, %v2000
    %v2007 = vpack.c.bf16 %v2002, %v2002
    %v2008 = vld [vmem:[%s51] sm:$0xf]
    %v2009 = vld [vmem:[%s51 + $0x4] sm:$0xf]
    %v2010 = vld [vmem:[%s51 + $0x8] sm:$0xf]
    %v2011 = vld [vmem:[%s51 + $0xc] sm:$0xf]
    %v2012 = vld [vmem:[%s51 + $0x10] sm:$0xf]
    %v2013 = vld [vmem:[%s51 + $0x14] sm:$0xf]
    %v2014 = vld [vmem:[%s51 + $0x18] sm:$0xf]
    %v2015 = vld [vmem:[%s51 + $0x1c] sm:$0xf]
    %v2016 = vld [vmem:[%s51 + $0x20] sm:$0xf]
    %v2017 = vld [vmem:[%s51 + $0x24] sm:$0xf]
    %v2018 = vld [vmem:[%s51 + $0x28] sm:$0xf]
    %v2019 = vld [vmem:[%s51 + $0x2c] sm:$0xf]
    %v2020 = vld [vmem:[%s51 + $0x30] sm:$0xf]
    %v2021 = vld [vmem:[%s51 + $0x34] sm:$0xf]
    %v2022 = vld [vmem:[%s51 + $0x38] sm:$0xf]
    %v2023 = vld [vmem:[%s51 + $0x3c] sm:$0xf]
    %v2024 = vld [vmem:[%s51 + $0x40] sm:$0xf]
    %v2025 = vld [vmem:[%s51 + $0x44] sm:$0xf]
    %v2026 = vld [vmem:[%s51 + $0x48] sm:$0xf]
    %v2027 = vld [vmem:[%s51 + $0x4c] sm:$0xf]
    %v2028 = vld [vmem:[%s51 + $0x50] sm:$0xf]
    %v2029 = vld [vmem:[%s51 + $0x54] sm:$0xf]
    %v2030 = vld [vmem:[%s51 + $0x58] sm:$0xf]
    %v2031 = vld [vmem:[%s51 + $0x5c] sm:$0xf]
    %v2032 = vld [vmem:[%s51 + $0x60] sm:$0xf]
    %v2033 = vld [vmem:[%s51 + $0x64] sm:$0xf]
    %v2034 = vld [vmem:[%s51 + $0x68] sm:$0xf]
    %v2035 = vld [vmem:[%s51 + $0x6c] sm:$0xf]
    %v2036 = vld [vmem:[%s51 + $0x70] sm:$0xf]
    %v2037 = vld [vmem:[%s51 + $0x74] sm:$0xf]
    %v2038 = vld [vmem:[%s51 + $0x78] sm:$0xf]
    %v2039 = vld [vmem:[%s51 + $0x7c] sm:$0xf]
    %v2072 = vunpack.c.l.b16 %v2008
    %v2073 = vunpack.c.l.b16 %v2009
    %v2074 = vunpack.c.l.b16 %v2010
    %v2075 = vunpack.c.l.b16 %v2011
    %v2076 = vunpack.c.l.b16 %v2012
    %v2077 = vunpack.c.l.b16 %v2013
    %v2078 = vunpack.c.l.b16 %v2014
    %v2079 = vunpack.c.l.b16 %v2015
    %v2080 = vunpack.c.l.b16 %v2016
    %v2081 = vunpack.c.l.b16 %v2017
    %v2082 = vunpack.c.l.b16 %v2018
    %v2083 = vunpack.c.l.b16 %v2019
    %v2084 = vunpack.c.l.b16 %v2020
    %v2085 = vunpack.c.l.b16 %v2021
    %v2086 = vunpack.c.l.b16 %v2022
    %v2087 = vunpack.c.l.b16 %v2023
    %v2088 = vunpack.c.l.b16 %v2024
    %v2089 = vunpack.c.l.b16 %v2025
    %v2090 = vunpack.c.l.b16 %v2026
    %v2091 = vunpack.c.l.b16 %v2027
    %v2092 = vunpack.c.l.b16 %v2028
    %v2093 = vunpack.c.l.b16 %v2029
    %v2094 = vunpack.c.l.b16 %v2030
    %v2095 = vunpack.c.l.b16 %v2031
    %v2096 = vunpack.c.l.b16 %v2032
    %v2097 = vunpack.c.l.b16 %v2033
    %v2098 = vunpack.c.l.b16 %v2034
    %v2099 = vunpack.c.l.b16 %v2035
    %v2100 = vunpack.c.l.b16 %v2036
    %v2101 = vunpack.c.l.b16 %v2037
    %v2102 = vunpack.c.l.b16 %v2038
    %v2103 = vunpack.c.l.b16 %v2039
    %v2104 = vpack.c.b16 %v2073, %v2072
    %v2105 = vpack.c.b16 %v2075, %v2074
    %v2106 = vpack.c.b16 %v2077, %v2076
    %v2107 = vpack.c.b16 %v2079, %v2078
    %v2108 = vpack.c.b16 %v2081, %v2080
    %v2109 = vpack.c.b16 %v2083, %v2082
    %v2110 = vpack.c.b16 %v2085, %v2084
    %v2111 = vpack.c.b16 %v2087, %v2086
    %v2112 = vpack.c.b16 %v2089, %v2088
    %v2113 = vpack.c.b16 %v2091, %v2090
    %v2114 = vpack.c.b16 %v2093, %v2092
    %v2115 = vpack.c.b16 %v2095, %v2094
    %v2116 = vpack.c.b16 %v2097, %v2096
    %v2117 = vpack.c.b16 %v2099, %v2098
    %v2118 = vpack.c.b16 %v2101, %v2100
    %v2119 = vpack.c.b16 %v2103, %v2102
    %2136 = vmatprep.subr.bf16.mxu0 0
    %2137 = vmatpush1.bf16.msra.mxu0 %v2104
    %2138 = vmatprep.subr.bf16.mxu0 0
    %2139 = vmatpush1.bf16.msra.mxu0 %v2105
    %2140 = vmatprep.subr.bf16.mxu0 0
    %2141 = vmatpush1.bf16.msra.mxu0 %v2106
    %2142 = vmatprep.subr.bf16.mxu0 0
    %2143 = vmatpush1.bf16.msra.mxu0 %v2107
    %2144 = vmatprep.subr.bf16.mxu0 0
    %2145 = vmatpush1.bf16.msra.mxu0 %v2108
    %2146 = vmatprep.subr.bf16.mxu0 0
    %2147 = vmatpush1.bf16.msra.mxu0 %v2109
    %2148 = vmatprep.subr.bf16.mxu0 0
    %2149 = vmatpush1.bf16.msra.mxu0 %v2110
    %2150 = vmatprep.subr.bf16.mxu0 0
    %2151 = vmatpush1.bf16.msra.mxu0 %v2111
    %2152 = vmatprep.subr.bf16.mxu0 0
    %2153 = vmatpush1.bf16.msra.mxu0 %v2112
    %2154 = vmatprep.subr.bf16.mxu0 0
    %2155 = vmatpush1.bf16.msra.mxu0 %v2113
    %2156 = vmatprep.subr.bf16.mxu0 0
    %2157 = vmatpush1.bf16.msra.mxu0 %v2114
    %2158 = vmatprep.subr.bf16.mxu0 0
    %2159 = vmatpush1.bf16.msra.mxu0 %v2115
    %2160 = vmatprep.subr.bf16.mxu0 0
    %2161 = vmatpush1.bf16.msra.mxu0 %v2116
    %2162 = vmatprep.subr.bf16.mxu0 0
    %2163 = vmatpush1.bf16.msra.mxu0 %v2117
    %2164 = vmatprep.subr.bf16.mxu0 0
    %2165 = vmatpush1.bf16.msra.mxu0 %v2118
    %2166 = vmatprep.subr.bf16.mxu0 0
    %2167 = vmatpush1.bf16.msra.mxu0 %v2119
    %2168 = vmatprep.mubr.bf16.mxu0 %v2007
    %2169 = vmatmul.mubr.bf16.gmra.mrb[0].mxu0 %v2006
    %v2170 = vpop.f32.mrb[0].mxu0
    %v2171 = vadd.f32 0.0, %v2170
    %v2172 = vpop.f32.mrb[0].mxu0
    %v2173 = vpop.f32.mrb[0].mxu0
    %v2174 = vpop.f32.mrb[0].mxu0
    %2175 = vdwg.mxu0
    %v2176 = vmax.f32 %v2171, 0.0
    %v2177 = vpack.c.bf16 %v2176, %v2176
    %v2178 = vld [vmem:[%s53] sm:$0xff]
    %v2180 = vunpack.c.l.b16 %v2178
    %v2181 = vunpack.c.h.b16 %v2178
    %v2182 = vpack.c.b16 %v2180, %v2180
    %v2183 = vpack.c.b16 %v2181, %v2181
    %v2185 = vsel %vm969, %v2177, 0
    %v2188 = vsel %vm973, %v2182, 0
    %v2191 = vsel %vm973, %v2183, 0
    %2193 = vmatprep.subr.bf16.mxu0 %v2191
    %2194 = vmatpush1.bf16.msra.mxu0 %v2188
    %2195 = vmatprep.subr.bf16.mxu0 0
    %2196 = vmatpush1.bf16.msra.mxu0 0
    %2197 = vmatprep.subr.bf16.mxu0 0
    %2198 = vmatpush1.bf16.msra.mxu0 0
    %2199 = vmatprep.subr.bf16.mxu0 0
    %2200 = vmatpush1.bf16.msra.mxu0 0
    %2201 = vmatprep.subr.bf16.mxu0 0
    %2202 = vmatpush1.bf16.msra.mxu0 0
    %2203 = vmatprep.subr.bf16.mxu0 0
    %2204 = vmatpush1.bf16.msra.mxu0 0
    %2205 = vmatprep.subr.bf16.mxu0 0
    %2206 = vmatpush1.bf16.msra.mxu0 0
    %2207 = vmatprep.subr.bf16.mxu0 0
    %2208 = vmatpush1.bf16.msra.mxu0 0
    %2209 = vmatprep.subr.bf16.mxu0 0
    %2210 = vmatpush1.bf16.msra.mxu0 0
    %2211 = vmatprep.subr.bf16.mxu0 0
    %2212 = vmatpush1.bf16.msra.mxu0 0
    %2213 = vmatprep.subr.bf16.mxu0 0
    %2214 = vmatpush1.bf16.msra.mxu0 0
    %2215 = vmatprep.subr.bf16.mxu0 0
    %2216 = vmatpush1.bf16.msra.mxu0 0
    %2217 = vmatprep.subr.bf16.mxu0 0
    %2218 = vmatpush1.bf16.msra.mxu0 0
    %2219 = vmatprep.subr.bf16.mxu0 0
    %2220 = vmatpush1.bf16.msra.mxu0 0
    %2221 = vmatprep.subr.bf16.mxu0 0
    %2222 = vmatpush1.bf16.msra.mxu0 0
    %2223 = vmatprep.subr.bf16.mxu0 0
    %2224 = vmatpush1.bf16.msra.mxu0 0
    %2225 = vmatprep.mubr.bf16.mxu0 0
    %2226 = vmatmul.mubr.bf16.gmra.mrb[0].mxu0 %v2185
    %v2227 = vpop.f32.mrb[0].mxu0
    %v2228 = vadd.f32 0.0, %v2227
    %v2229 = vpop.f32.mrb[0].mxu0
    %v2230 = vadd.f32 0.0, %v2229
    %v2231 = vpop.f32.mrb[0].mxu0
    %v2232 = vpop.f32.mrb[0].mxu0
    %2233 = vdwg.mxu0
    %v2234 = vxor.u32 %v2228, 2147483648
    %v2235 = vxor.u32 %v2230, 2147483648
    %v2236 = vmul.f32 %v2234, 1.442695
    %v2237 = vpow.pop %v2236
    %v2238 = vmul.f32 %v2235, 1.442695
    %v2239 = vpow.pop %v2238
    %v2240 = vadd.f32 %v2237, 1.0
    %v2241 = vadd.f32 %v2239, 1.0
    %v2242 = vrcp.pop %v2240
    %v2243 = vmul.f32 1.0, %v2242
    %v2244 = vrcp.pop %v2241
    %v2245 = vmul.f32 1.0, %v2244
    %v2246 = vmul.f32 %v2000, %v2243
    %v2247 = vmul.f32 %v2002, %v2245
    %v2248 = vadd.f32 %v1480, %v2246
    %v2249 = vadd.f32 %v1481, %v2247
    %v2250 = vpack.c.bf16 %v2248, %v2248
    %v2251 = vpack.c.bf16 %v2249, %v2249
    %v2252 = vld [vmem:[#allocation34] sm:$0xff]
    %v2253 = vld [vmem:[#allocation34 + $0x8] sm:$0xff]
    %v2254 = vld [vmem:[#allocation34 + $0x10] sm:$0xff]
    %v2255 = vld [vmem:[#allocation34 + $0x18] sm:$0xff]
    %v2256 = vld [vmem:[#allocation34 + $0x20] sm:$0xff]
    %v2257 = vld [vmem:[#allocation34 + $0x28] sm:$0xff]
    %v2258 = vld [vmem:[#allocation34 + $0x30] sm:$0xff]
    %v2259 = vld [vmem:[#allocation34 + $0x38] sm:$0xff]
    %v2260 = vld [vmem:[#allocation34 + $0x40] sm:$0xff]
    %v2261 = vld [vmem:[#allocation34 + $0x48] sm:$0xff]
    %v2262 = vld [vmem:[#allocation34 + $0x50] sm:$0xff]
    %v2263 = vld [vmem:[#allocation34 + $0x58] sm:$0xff]
    %v2264 = vld [vmem:[#allocation34 + $0x60] sm:$0xff]
    %v2265 = vld [vmem:[#allocation34 + $0x68] sm:$0xff]
    %v2266 = vld [vmem:[#allocation34 + $0x70] sm:$0xff]
    %v2267 = vld [vmem:[#allocation34 + $0x78] sm:$0xff]
    %v2268 = vld [vmem:[#allocation34 + $0x80] sm:$0xff]
    %v2269 = vld [vmem:[#allocation34 + $0x88] sm:$0xff]
    %v2270 = vld [vmem:[#allocation34 + $0x90] sm:$0xff]
    %v2271 = vld [vmem:[#allocation34 + $0x98] sm:$0xff]
    %v2272 = vld [vmem:[#allocation34 + $0xa0] sm:$0xff]
    %v2273 = vld [vmem:[#allocation34 + $0xa8] sm:$0xff]
    %v2274 = vld [vmem:[#allocation34 + $0xb0] sm:$0xff]
    %v2275 = vld [vmem:[#allocation34 + $0xb8] sm:$0xff]
    %v2276 = vld [vmem:[#allocation34 + $0xc0] sm:$0xff]
    %v2277 = vld [vmem:[#allocation34 + $0xc8] sm:$0xff]
    %v2278 = vld [vmem:[#allocation34 + $0xd0] sm:$0xff]
    %v2279 = vld [vmem:[#allocation34 + $0xd8] sm:$0xff]
    %v2280 = vld [vmem:[#allocation34 + $0xe0] sm:$0xff]
    %v2281 = vld [vmem:[#allocation34 + $0xe8] sm:$0xff]
    %v2282 = vld [vmem:[#allocation34 + $0xf0] sm:$0xff]
    %v2283 = vld [vmem:[#allocation34 + $0xf8] sm:$0xff]
    %v2284 = vld [vmem:[#allocation34 + $0x100] sm:$0xff]
    %v2285 = vld [vmem:[#allocation34 + $0x108] sm:$0xff]
    %v2286 = vld [vmem:[#allocation34 + $0x110] sm:$0xff]
    %v2287 = vld [vmem:[#allocation34 + $0x118] sm:$0xff]
    %v2288 = vld [vmem:[#allocation34 + $0x120] sm:$0xff]
    %v2289 = vld [vmem:[#allocation34 + $0x128] sm:$0xff]
    %v2290 = vld [vmem:[#allocation34 + $0x130] sm:$0xff]
    %v2291 = vld [vmem:[#allocation34 + $0x138] sm:$0xff]
    %v2292 = vld [vmem:[#allocation34 + $0x140] sm:$0xff]
    %v2293 = vld [vmem:[#allocation34 + $0x148] sm:$0xff]
    %v2294 = vld [vmem:[#allocation34 + $0x150] sm:$0xff]
    %v2295 = vld [vmem:[#allocation34 + $0x158] sm:$0xff]
    %v2296 = vld [vmem:[#allocation34 + $0x160] sm:$0xff]
    %v2297 = vld [vmem:[#allocation34 + $0x168] sm:$0xff]
    %v2298 = vld [vmem:[#allocation34 + $0x170] sm:$0xff]
    %v2299 = vld [vmem:[#allocation34 + $0x178] sm:$0xff]
    %v2300 = vld [vmem:[#allocation34 + $0x180] sm:$0xff]
    %v2301 = vld [vmem:[#allocation34 + $0x188] sm:$0xff]
    %v2302 = vld [vmem:[#allocation34 + $0x190] sm:$0xff]
    %v2303 = vld [vmem:[#allocation34 + $0x198] sm:$0xff]
    %v2304 = vld [vmem:[#allocation34 + $0x1a0] sm:$0xff]
    %v2305 = vld [vmem:[#allocation34 + $0x1a8] sm:$0xff]
    %v2306 = vld [vmem:[#allocation34 + $0x1b0] sm:$0xff]
    %v2307 = vld [vmem:[#allocation34 + $0x1b8] sm:$0xff]
    %v2308 = vld [vmem:[#allocation34 + $0x1c0] sm:$0xff]
    %v2309 = vld [vmem:[#allocation34 + $0x1c8] sm:$0xff]
    %v2310 = vld [vmem:[#allocation34 + $0x1d0] sm:$0xff]
    %v2311 = vld [vmem:[#allocation34 + $0x1d8] sm:$0xff]
    %v2312 = vld [vmem:[#allocation34 + $0x1e0] sm:$0xff]
    %v2313 = vld [vmem:[#allocation34 + $0x1e8] sm:$0xff]
    %v2314 = vld [vmem:[#allocation34 + $0x1f0] sm:$0xff]
    %v2315 = vld [vmem:[#allocation34 + $0x1f8] sm:$0xff]
    %v2380 = vunpack.c.l.b16 %v2252
    %v2381 = vunpack.c.h.b16 %v2252
    %v2382 = vunpack.c.l.b16 %v2253
    %v2383 = vunpack.c.h.b16 %v2253
    %v2384 = vunpack.c.l.b16 %v2254
    %v2385 = vunpack.c.h.b16 %v2254
    %v2386 = vunpack.c.l.b16 %v2255
    %v2387 = vunpack.c.h.b16 %v2255
    %v2388 = vunpack.c.l.b16 %v2256
    %v2389 = vunpack.c.h.b16 %v2256
    %v2390 = vunpack.c.l.b16 %v2257
    %v2391 = vunpack.c.h.b16 %v2257
    %v2392 = vunpack.c.l.b16 %v2258
    %v2393 = vunpack.c.h.b16 %v2258
    %v2394 = vunpack.c.l.b16 %v2259
    %v2395 = vunpack.c.h.b16 %v2259
    %v2396 = vunpack.c.l.b16 %v2260
    %v2397 = vunpack.c.h.b16 %v2260
    %v2398 = vunpack.c.l.b16 %v2261
    %v2399 = vunpack.c.h.b16 %v2261
    %v2400 = vunpack.c.l.b16 %v2262
    %v2401 = vunpack.c.h.b16 %v2262
    %v2402 = vunpack.c.l.b16 %v2263
    %v2403 = vunpack.c.h.b16 %v2263
    %v2404 = vunpack.c.l.b16 %v2264
    %v2405 = vunpack.c.h.b16 %v2264
    %v2406 = vunpack.c.l.b16 %v2265
    %v2407 = vunpack.c.h.b16 %v2265
    %v2408 = vunpack.c.l.b16 %v2266
    %v2409 = vunpack.c.h.b16 %v2266
    %v2410 = vunpack.c.l.b16 %v2267
    %v2411 = vunpack.c.h.b16 %v2267
    %v2412 = vunpack.c.l.b16 %v2268
    %v2413 = vunpack.c.h.b16 %v2268
    %v2414 = vunpack.c.l.b16 %v2269
    %v2415 = vunpack.c.h.b16 %v2269
    %v2416 = vunpack.c.l.b16 %v2270
    %v2417 = vunpack.c.h.b16 %v2270
    %v2418 = vunpack.c.l.b16 %v2271
    %v2419 = vunpack.c.h.b16 %v2271
    %v2420 = vunpack.c.l.b16 %v2272
    %v2421 = vunpack.c.h.b16 %v2272
    %v2422 = vunpack.c.l.b16 %v2273
    %v2423 = vunpack.c.h.b16 %v2273
    %v2424 = vunpack.c.l.b16 %v2274
    %v2425 = vunpack.c.h.b16 %v2274
    %v2426 = vunpack.c.l.b16 %v2275
    %v2427 = vunpack.c.h.b16 %v2275
    %v2428 = vunpack.c.l.b16 %v2276
    %v2429 = vunpack.c.h.b16 %v2276
    %v2430 = vunpack.c.l.b16 %v2277
    %v2431 = vunpack.c.h.b16 %v2277
    %v2432 = vunpack.c.l.b16 %v2278
    %v2433 = vunpack.c.h.b16 %v2278
    %v2434 = vunpack.c.l.b16 %v2279
    %v2435 = vunpack.c.h.b16 %v2279
    %v2436 = vunpack.c.l.b16 %v2280
    %v2437 = vunpack.c.h.b16 %v2280
    %v2438 = vunpack.c.l.b16 %v2281
    %v2439 = vunpack.c.h.b16 %v2281
    %v2440 = vunpack.c.l.b16 %v2282
    %v2441 = vunpack.c.h.b16 %v2282
    %v2442 = vunpack.c.l.b16 %v2283
    %v2443 = vunpack.c.h.b16 %v2283
    %v2444 = vunpack.c.l.b16 %v2284
    %v2445 = vunpack.c.h.b16 %v2284
    %v2446 = vunpack.c.l.b16 %v2285
    %v2447 = vunpack.c.h.b16 %v2285
    %v2448 = vunpack.c.l.b16 %v2286
    %v2449 = vunpack.c.h.b16 %v2286
    %v2450 = vunpack.c.l.b16 %v2287
    %v2451 = vunpack.c.h.b16 %v2287
    %v2452 = vunpack.c.l.b16 %v2288
    %v2453 = vunpack.c.h.b16 %v2288
    %v2454 = vunpack.c.l.b16 %v2289
    %v2455 = vunpack.c.h.b16 %v2289
    %v2456 = vunpack.c.l.b16 %v2290
    %v2457 = vunpack.c.h.b16 %v2290
    %v2458 = vunpack.c.l.b16 %v2291
    %v2459 = vunpack.c.h.b16 %v2291
    %v2460 = vunpack.c.l.b16 %v2292
    %v2461 = vunpack.c.h.b16 %v2292
    %v2462 = vunpack.c.l.b16 %v2293
    %v2463 = vunpack.c.h.b16 %v2293
    %v2464 = vunpack.c.l.b16 %v2294
    %v2465 = vunpack.c.h.b16 %v2294
    %v2466 = vunpack.c.l.b16 %v2295
    %v2467 = vunpack.c.h.b16 %v2295
    %v2468 = vunpack.c.l.b16 %v2296
    %v2469 = vunpack.c.h.b16 %v2296
    %v2470 = vunpack.c.l.b16 %v2297
    %v2471 = vunpack.c.h.b16 %v2297
    %v2472 = vunpack.c.l.b16 %v2298
    %v2473 = vunpack.c.h.b16 %v2298
    %v2474 = vunpack.c.l.b16 %v2299
    %v2475 = vunpack.c.h.b16 %v2299
    %v2476 = vunpack.c.l.b16 %v2300
    %v2477 = vunpack.c.h.b16 %v2300
    %v2478 = vunpack.c.l.b16 %v2301
    %v2479 = vunpack.c.h.b16 %v2301
    %v2480 = vunpack.c.l.b16 %v2302
    %v2481 = vunpack.c.h.b16 %v2302
    %v2482 = vunpack.c.l.b16 %v2303
    %v2483 = vunpack.c.h.b16 %v2303
    %v2484 = vunpack.c.l.b16 %v2304
    %v2485 = vunpack.c.h.b16 %v2304
    %v2486 = vunpack.c.l.b16 %v2305
    %v2487 = vunpack.c.h.b16 %v2305
    %v2488 = vunpack.c.l.b16 %v2306
    %v2489 = vunpack.c.h.b16 %v2306
    %v2490 = vunpack.c.l.b16 %v2307
    %v2491 = vunpack.c.h.b16 %v2307
    %v2492 = vunpack.c.l.b16 %v2308
    %v2493 = vunpack.c.h.b16 %v2308
    %v2494 = vunpack.c.l.b16 %v2309
    %v2495 = vunpack.c.h.b16 %v2309
    %v2496 = vunpack.c.l.b16 %v2310
    %v2497 = vunpack.c.h.b16 %v2310
    %v2498 = vunpack.c.l.b16 %v2311
    %v2499 = vunpack.c.h.b16 %v2311
    %v2500 = vunpack.c.l.b16 %v2312
    %v2501 = vunpack.c.h.b16 %v2312
    %v2502 = vunpack.c.l.b16 %v2313
    %v2503 = vunpack.c.h.b16 %v2313
    %v2504 = vunpack.c.l.b16 %v2314
    %v2505 = vunpack.c.h.b16 %v2314
    %v2506 = vunpack.c.l.b16 %v2315
    %v2507 = vunpack.c.h.b16 %v2315
    %v2508 = vpack.c.b16 %v2384, %v2380
    %v2509 = vpack.c.b16 %v2385, %v2381
    %v2510 = vpack.c.b16 %v2386, %v2382
    %v2511 = vpack.c.b16 %v2387, %v2383
    %v2512 = vpack.c.b16 %v2392, %v2388
    %v2513 = vpack.c.b16 %v2393, %v2389
    %v2514 = vpack.c.b16 %v2394, %v2390
    %v2515 = vpack.c.b16 %v2395, %v2391
    %v2516 = vpack.c.b16 %v2400, %v2396
    %v2517 = vpack.c.b16 %v2401, %v2397
    %v2518 = vpack.c.b16 %v2402, %v2398
    %v2519 = vpack.c.b16 %v2403, %v2399
    %v2520 = vpack.c.b16 %v2408, %v2404
    %v2521 = vpack.c.b16 %v2409, %v2405
    %v2522 = vpack.c.b16 %v2410, %v2406
    %v2523 = vpack.c.b16 %v2411, %v2407
    %v2524 = vpack.c.b16 %v2416, %v2412
    %v2525 = vpack.c.b16 %v2417, %v2413
    %v2526 = vpack.c.b16 %v2418, %v2414
    %v2527 = vpack.c.b16 %v2419, %v2415
    %v2528 = vpack.c.b16 %v2424, %v2420
    %v2529 = vpack.c.b16 %v2425, %v2421
    %v2530 = vpack.c.b16 %v2426, %v2422
    %v2531 = vpack.c.b16 %v2427, %v2423
    %v2532 = vpack.c.b16 %v2432, %v2428
    %v2533 = vpack.c.b16 %v2433, %v2429
    %v2534 = vpack.c.b16 %v2434, %v2430
    %v2535 = vpack.c.b16 %v2435, %v2431
    %v2536 = vpack.c.b16 %v2440, %v2436
    %v2537 = vpack.c.b16 %v2441, %v2437
    %v2538 = vpack.c.b16 %v2442, %v2438
    %v2539 = vpack.c.b16 %v2443, %v2439
    %v2540 = vpack.c.b16 %v2448, %v2444
    %v2541 = vpack.c.b16 %v2449, %v2445
    %v2542 = vpack.c.b16 %v2450, %v2446
    %v2543 = vpack.c.b16 %v2451, %v2447
    %v2544 = vpack.c.b16 %v2456, %v2452
    %v2545 = vpack.c.b16 %v2457, %v2453
    %v2546 = vpack.c.b16 %v2458, %v2454
    %v2547 = vpack.c.b16 %v2459, %v2455
    %v2548 = vpack.c.b16 %v2464, %v2460
    %v2549 = vpack.c.b16 %v2465, %v2461
    %v2550 = vpack.c.b16 %v2466, %v2462
    %v2551 = vpack.c.b16 %v2467, %v2463
    %v2552 = vpack.c.b16 %v2472, %v2468
    %v2553 = vpack.c.b16 %v2473, %v2469
    %v2554 = vpack.c.b16 %v2474, %v2470
    %v2555 = vpack.c.b16 %v2475, %v2471
    %v2556 = vpack.c.b16 %v2480, %v2476
    %v2557 = vpack.c.b16 %v2481, %v2477
    %v2558 = vpack.c.b16 %v2482, %v2478
    %v2559 = vpack.c.b16 %v2483, %v2479
    %v2560 = vpack.c.b16 %v2488, %v2484
    %v2561 = vpack.c.b16 %v2489, %v2485
    %v2562 = vpack.c.b16 %v2490, %v2486
    %v2563 = vpack.c.b16 %v2491, %v2487
    %v2564 = vpack.c.b16 %v2496, %v2492
    %v2565 = vpack.c.b16 %v2497, %v2493
    %v2566 = vpack.c.b16 %v2498, %v2494
    %v2567 = vpack.c.b16 %v2499, %v2495
    %v2568 = vpack.c.b16 %v2504, %v2500
    %v2569 = vpack.c.b16 %v2505, %v2501
    %v2570 = vpack.c.b16 %v2506, %v2502
    %v2571 = vpack.c.b16 %v2507, %v2503
    %2636 = vmatprep.subr.bf16.mxu0 %v2509
    %2637 = vmatpush1.bf16.msra.mxu0 %v2508
    %2638 = vmatprep.subr.bf16.mxu0 %v2513
    %2639 = vmatpush1.bf16.msra.mxu0 %v2512
    %2640 = vmatprep.subr.bf16.mxu0 %v2517
    %2641 = vmatpush1.bf16.msra.mxu0 %v2516
    %2642 = vmatprep.subr.bf16.mxu0 %v2521
    %2643 = vmatpush1.bf16.msra.mxu0 %v2520
    %2644 = vmatprep.subr.bf16.mxu0 %v2525
    %2645 = vmatpush1.bf16.msra.mxu0 %v2524
    %2646 = vmatprep.subr.bf16.mxu0 %v2529
    %2647 = vmatpush1.bf16.msra.mxu0 %v2528
    %2648 = vmatprep.subr.bf16.mxu0 %v2533
    %2649 = vmatpush1.bf16.msra.mxu0 %v2532
    %2650 = vmatprep.subr.bf16.mxu0 %v2537
    %2651 = vmatpush1.bf16.msra.mxu0 %v2536
    %2652 = vmatprep.subr.bf16.mxu0 %v2541
    %2653 = vmatpush1.bf16.msra.mxu0 %v2540
    %2654 = vmatprep.subr.bf16.mxu0 %v2545
    %2655 = vmatpush1.bf16.msra.mxu0 %v2544
    %2656 = vmatprep.subr.bf16.mxu0 %v2549
    %2657 = vmatpush1.bf16.msra.mxu0 %v2548
    %2658 = vmatprep.subr.bf16.mxu0 %v2553
    %2659 = vmatpush1.bf16.msra.mxu0 %v2552
    %2660 = vmatprep.subr.bf16.mxu0 %v2557
    %2661 = vmatpush1.bf16.msra.mxu0 %v2556
    %2662 = vmatprep.subr.bf16.mxu0 %v2561
    %2663 = vmatpush1.bf16.msra.mxu0 %v2560
    %2664 = vmatprep.subr.bf16.mxu0 %v2565
    %2665 = vmatpush1.bf16.msra.mxu0 %v2564
    %2666 = vmatprep.subr.bf16.mxu0 %v2569
    %2667 = vmatpush1.bf16.msra.mxu0 %v2568
    %2668 = vmatprep.mubr.bf16.mxu0 %v2251
    %2669 = vmatmul.mubr.bf16.gmra.mrb[0].mxu0 %v2250
    %v2670 = vpop.f32.mrb[0].mxu0
    %v2671 = vadd.f32 0.0, %v2670
    %v2672 = vpop.f32.mrb[0].mxu0
    %v2673 = vadd.f32 0.0, %v2672
    %v2674 = vpop.f32.mrb[0].mxu0
    %v2675 = vpop.f32.mrb[0].mxu0
    %2676 = vdwg.mxu0
    %2677 = vmatprep.subr.bf16.mxu0 %v2511
    %2678 = vmatpush1.bf16.msra.mxu0 %v2510
    %2679 = vmatprep.subr.bf16.mxu0 %v2515
    %2680 = vmatpush1.bf16.msra.mxu0 %v2514
    %2681 = vmatprep.subr.bf16.mxu0 %v2519
    %2682 = vmatpush1.bf16.msra.mxu0 %v2518
    %2683 = vmatprep.subr.bf16.mxu0 %v2523
    %2684 = vmatpush1.bf16.msra.mxu0 %v2522
    %2685 = vmatprep.subr.bf16.mxu0 %v2527
    %2686 = vmatpush1.bf16.msra.mxu0 %v2526
    %2687 = vmatprep.subr.bf16.mxu0 %v2531
    %2688 = vmatpush1.bf16.msra.mxu0 %v2530
    %2689 = vmatprep.subr.bf16.mxu0 %v2535
    %2690 = vmatpush1.bf16.msra.mxu0 %v2534
    %2691 = vmatprep.subr.bf16.mxu0 %v2539
    %2692 = vmatpush1.bf16.msra.mxu0 %v2538
    %2693 = vmatprep.subr.bf16.mxu0 %v2543
    %2694 = vmatpush1.bf16.msra.mxu0 %v2542
    %2695 = vmatprep.subr.bf16.mxu0 %v2547
    %2696 = vmatpush1.bf16.msra.mxu0 %v2546
    %2697 = vmatprep.subr.bf16.mxu0 %v2551
    %2698 = vmatpush1.bf16.msra.mxu0 %v2550
    %2699 = vmatprep.subr.bf16.mxu0 %v2555
    %2700 = vmatpush1.bf16.msra.mxu0 %v2554
    %2701 = vmatprep.subr.bf16.mxu0 %v2559
    %2702 = vmatpush1.bf16.msra.mxu0 %v2558
    %2703 = vmatprep.subr.bf16.mxu0 %v2563
    %2704 = vmatpush1.bf16.msra.mxu0 %v2562
    %2705 = vmatprep.subr.bf16.mxu0 %v2567
    %2706 = vmatpush1.bf16.msra.mxu0 %v2566
    %2707 = vmatprep.subr.bf16.mxu0 %v2571
    %2708 = vmatpush1.bf16.msra.mxu0 %v2570
    %2709 = vmatprep.mubr.bf16.mxu0 %v2251
    %2710 = vmatmul.mubr.bf16.gmra.mrb[0].mxu0 %v2250
    %v2711 = vpop.f32.mrb[0].mxu0
    %v2712 = vadd.f32 0.0, %v2711
    %v2713 = vpop.f32.mrb[0].mxu0
    %v2714 = vadd.f32 0.0, %v2713
    %v2715 = vpop.f32.mrb[0].mxu0
    %v2716 = vpop.f32.mrb[0].mxu0
    %2717 = vdwg.mxu0
    %v2718 = vld [vmem:[%s57] sm:$0xf]
    %v2720 = vlaneseq
    %v2721 = vshrl.u32 %v2720, 7
    %v2722 = vsub.s32 0, %v2721
    %v2723 = vrot.slane %v2718, %v2722
    %v2724 = vlaneseq
    %v2725 = vshrl.u32 %v2724, 7
    %v2726 = vsub.s32 1, %v2725
    %v2727 = vrot.slane %v2718, %v2726
    %v2728 = vlaneseq
    %v2729 = vshrl.u32 %v2728, 7
    %v2730 = vsub.s32 2, %v2729
    %v2731 = vrot.slane %v2718, %v2730
    %v2732 = vlaneseq
    %v2733 = vshrl.u32 %v2732, 7
    %v2734 = vsub.s32 3, %v2733
    %v2735 = vrot.slane %v2718, %v2734
    %v2740 = vmul.f32 %v2671, %v2723
    %v2741 = vmul.f32 %v2673, %v2727
    %v2742 = vmul.f32 %v2712, %v2731
    %v2743 = vmul.f32 %v2714, %v2735
    %v2744 = vld [vmem:[%s59] sm:$0xf]
    %v2746 = vlaneseq
    %v2747 = vshrl.u32 %v2746, 7
    %v2748 = vsub.s32 0, %v2747
    %v2749 = vrot.slane %v2744, %v2748
    %v2750 = vlaneseq
    %v2751 = vshrl.u32 %v2750, 7
    %v2752 = vsub.s32 1, %v2751
    %v2753 = vrot.slane %v2744, %v2752
    %v2754 = vlaneseq
    %v2755 = vshrl.u32 %v2754, 7
    %v2756 = vsub.s32 2, %v2755
    %v2757 = vrot.slane %v2744, %v2756
    %v2758 = vlaneseq
    %v2759 = vshrl.u32 %v2758, 7
    %v2760 = vsub.s32 3, %v2759
    %v2761 = vrot.slane %v2744, %v2760
    %v2766 = vadd.f32 %v2740, %v2749
    %v2767 = vadd.f32 %v2741, %v2753
    %v2768 = vadd.f32 %v2742, %v2757
    %v2769 = vadd.f32 %v2743, %v2761
    %v2770 = vxor.u32 %v2766, 2147483648
    %v2771 = vxor.u32 %v2767, 2147483648
    %v2772 = vxor.u32 %v2768, 2147483648
    %v2773 = vxor.u32 %v2769, 2147483648
    %v2774 = vmul.f32 %v2770, 1.442695
    %v2775 = vpow.pop %v2774
    %v2776 = vmul.f32 %v2771, 1.442695
    %v2777 = vpow.pop %v2776
    %v2778 = vmul.f32 %v2772, 1.442695
    %v2779 = vpow.pop %v2778
    %v2780 = vmul.f32 %v2773, 1.442695
    %v2781 = vpow.pop %v2780
    %v2782 = vadd.f32 %v2775, 1.0
    %v2783 = vadd.f32 %v2777, 1.0
    %v2784 = vadd.f32 %v2779, 1.0
    %v2785 = vadd.f32 %v2781, 1.0
    %v2786 = vrcp.pop %v2782
    %v2787 = vmul.f32 1.0, %v2786
    %v2788 = vrcp.pop %v2783
    %v2789 = vmul.f32 1.0, %v2788
    %v2790 = vrcp.pop %v2784
    %v2791 = vmul.f32 1.0, %v2790
    %v2792 = vrcp.pop %v2785
    %v2793 = vmul.f32 1.0, %v2792
    %v2794 = vmul.f32 %v2766, %v2787
    %v2795 = vmul.f32 %v2767, %v2789
    %v2796 = vmul.f32 %v2768, %v2791
    %v2797 = vmul.f32 %v2769, %v2793
    %v2798 = vpack.c.bf16 %v2794, %v2794
    %v2799 = vpack.c.bf16 %v2795, %v2795
    %v2800 = vpack.c.bf16 %v2796, %v2796
    %v2801 = vpack.c.bf16 %v2797, %v2797
    %v2802 = vld [vmem:[#allocation35] sm:$0xf]
    %v2803 = vld [vmem:[#allocation35 + $0x4] sm:$0xf]
    %v2804 = vld [vmem:[#allocation35 + $0x8] sm:$0xf]
    %v2805 = vld [vmem:[#allocation35 + $0xc] sm:$0xf]
    %v2806 = vld [vmem:[#allocation35 + $0x10] sm:$0xf]
    %v2807 = vld [vmem:[#allocation35 + $0x14] sm:$0xf]
    %v2808 = vld [vmem:[#allocation35 + $0x18] sm:$0xf]
    %v2809 = vld [vmem:[#allocation35 + $0x1c] sm:$0xf]
    %v2810 = vld [vmem:[#allocation35 + $0x20] sm:$0xf]
    %v2811 = vld [vmem:[#allocation35 + $0x24] sm:$0xf]
    %v2812 = vld [vmem:[#allocation35 + $0x28] sm:$0xf]
    %v2813 = vld [vmem:[#allocation35 + $0x2c] sm:$0xf]
    %v2814 = vld [vmem:[#allocation35 + $0x30] sm:$0xf]
    %v2815 = vld [vmem:[#allocation35 + $0x34] sm:$0xf]
    %v2816 = vld [vmem:[#allocation35 + $0x38] sm:$0xf]
    %v2817 = vld [vmem:[#allocation35 + $0x3c] sm:$0xf]
    %v2818 = vld [vmem:[#allocation35 + $0x40] sm:$0xf]
    %v2819 = vld [vmem:[#allocation35 + $0x44] sm:$0xf]
    %v2820 = vld [vmem:[#allocation35 + $0x48] sm:$0xf]
    %v2821 = vld [vmem:[#allocation35 + $0x4c] sm:$0xf]
    %v2822 = vld [vmem:[#allocation35 + $0x50] sm:$0xf]
    %v2823 = vld [vmem:[#allocation35 + $0x54] sm:$0xf]
    %v2824 = vld [vmem:[#allocation35 + $0x58] sm:$0xf]
    %v2825 = vld [vmem:[#allocation35 + $0x5c] sm:$0xf]
    %v2826 = vld [vmem:[#allocation35 + $0x60] sm:$0xf]
    %v2827 = vld [vmem:[#allocation35 + $0x64] sm:$0xf]
    %v2828 = vld [vmem:[#allocation35 + $0x68] sm:$0xf]
    %v2829 = vld [vmem:[#allocation35 + $0x6c] sm:$0xf]
    %v2830 = vld [vmem:[#allocation35 + $0x70] sm:$0xf]
    %v2831 = vld [vmem:[#allocation35 + $0x74] sm:$0xf]
    %v2832 = vld [vmem:[#allocation35 + $0x78] sm:$0xf]
    %v2833 = vld [vmem:[#allocation35 + $0x7c] sm:$0xf]
    %v2834 = vld [vmem:[#allocation35 + $0x80] sm:$0xf]
    %v2835 = vld [vmem:[#allocation35 + $0x84] sm:$0xf]
    %v2836 = vld [vmem:[#allocation35 + $0x88] sm:$0xf]
    %v2837 = vld [vmem:[#allocation35 + $0x8c] sm:$0xf]
    %v2838 = vld [vmem:[#allocation35 + $0x90] sm:$0xf]
    %v2839 = vld [vmem:[#allocation35 + $0x94] sm:$0xf]
    %v2840 = vld [vmem:[#allocation35 + $0x98] sm:$0xf]
    %v2841 = vld [vmem:[#allocation35 + $0x9c] sm:$0xf]
    %v2842 = vld [vmem:[#allocation35 + $0xa0] sm:$0xf]
    %v2843 = vld [vmem:[#allocation35 + $0xa4] sm:$0xf]
    %v2844 = vld [vmem:[#allocation35 + $0xa8] sm:$0xf]
    %v2845 = vld [vmem:[#allocation35 + $0xac] sm:$0xf]
    %v2846 = vld [vmem:[#allocation35 + $0xb0] sm:$0xf]
    %v2847 = vld [vmem:[#allocation35 + $0xb4] sm:$0xf]
    %v2848 = vld [vmem:[#allocation35 + $0xb8] sm:$0xf]
    %v2849 = vld [vmem:[#allocation35 + $0xbc] sm:$0xf]
    %v2850 = vld [vmem:[#allocation35 + $0xc0] sm:$0xf]
    %v2851 = vld [vmem:[#allocation35 + $0xc4] sm:$0xf]
    %v2852 = vld [vmem:[#allocation35 + $0xc8] sm:$0xf]
    %v2853 = vld [vmem:[#allocation35 + $0xcc] sm:$0xf]
    %v2854 = vld [vmem:[#allocation35 + $0xd0] sm:$0xf]
    %v2855 = vld [vmem:[#allocation35 + $0xd4] sm:$0xf]
    %v2856 = vld [vmem:[#allocation35 + $0xd8] sm:$0xf]
    %v2857 = vld [vmem:[#allocation35 + $0xdc] sm:$0xf]
    %v2858 = vld [vmem:[#allocation35 + $0xe0] sm:$0xf]
    %v2859 = vld [vmem:[#allocation35 + $0xe4] sm:$0xf]
    %v2860 = vld [vmem:[#allocation35 + $0xe8] sm:$0xf]
    %v2861 = vld [vmem:[#allocation35 + $0xec] sm:$0xf]
    %v2862 = vld [vmem:[#allocation35 + $0xf0] sm:$0xf]
    %v2863 = vld [vmem:[#allocation35 + $0xf4] sm:$0xf]
    %v2864 = vld [vmem:[#allocation35 + $0xf8] sm:$0xf]
    %v2865 = vld [vmem:[#allocation35 + $0xfc] sm:$0xf]
    %v2866 = vld [vmem:[%s63] sm:$0x1]
    %v2868 = vlaneseq
    %v2869 = vshrl.u32 %v2868, 7
    %v2870 = vsub.s32 0, %v2869
    %v2871 = vrot.slane %v2866, %v2870
    %v2937 = vunpack.c.l.b16 %v2802
    %v2938 = vunpack.c.l.b16 %v2803
    %v2939 = vunpack.c.l.b16 %v2804
    %v2940 = vunpack.c.l.b16 %v2805
    %v2941 = vunpack.c.l.b16 %v2806
    %v2942 = vunpack.c.l.b16 %v2807
    %v2943 = vunpack.c.l.b16 %v2808
    %v2944 = vunpack.c.l.b16 %v2809
    %v2945 = vunpack.c.l.b16 %v2810
    %v2946 = vunpack.c.l.b16 %v2811
    %v2947 = vunpack.c.l.b16 %v2812
    %v2948 = vunpack.c.l.b16 %v2813
    %v2949 = vunpack.c.l.b16 %v2814
    %v2950 = vunpack.c.l.b16 %v2815
    %v2951 = vunpack.c.l.b16 %v2816
    %v2952 = vunpack.c.l.b16 %v2817
    %v2953 = vunpack.c.l.b16 %v2818
    %v2954 = vunpack.c.l.b16 %v2819
    %v2955 = vunpack.c.l.b16 %v2820
    %v2956 = vunpack.c.l.b16 %v2821
    %v2957 = vunpack.c.l.b16 %v2822
    %v2958 = vunpack.c.l.b16 %v2823
    %v2959 = vunpack.c.l.b16 %v2824
    %v2960 = vunpack.c.l.b16 %v2825
    %v2961 = vunpack.c.l.b16 %v2826
    %v2962 = vunpack.c.l.b16 %v2827
    %v2963 = vunpack.c.l.b16 %v2828
    %v2964 = vunpack.c.l.b16 %v2829
    %v2965 = vunpack.c.l.b16 %v2830
    %v2966 = vunpack.c.l.b16 %v2831
    %v2967 = vunpack.c.l.b16 %v2832
    %v2968 = vunpack.c.l.b16 %v2833
    %v2969 = vunpack.c.l.b16 %v2834
    %v2970 = vunpack.c.l.b16 %v2835
    %v2971 = vunpack.c.l.b16 %v2836
    %v2972 = vunpack.c.l.b16 %v2837
    %v2973 = vunpack.c.l.b16 %v2838
    %v2974 = vunpack.c.l.b16 %v2839
    %v2975 = vunpack.c.l.b16 %v2840
    %v2976 = vunpack.c.l.b16 %v2841
    %v2977 = vunpack.c.l.b16 %v2842
    %v2978 = vunpack.c.l.b16 %v2843
    %v2979 = vunpack.c.l.b16 %v2844
    %v2980 = vunpack.c.l.b16 %v2845
    %v2981 = vunpack.c.l.b16 %v2846
    %v2982 = vunpack.c.l.b16 %v2847
    %v2983 = vunpack.c.l.b16 %v2848
    %v2984 = vunpack.c.l.b16 %v2849
    %v2985 = vunpack.c.l.b16 %v2850
    %v2986 = vunpack.c.l.b16 %v2851
    %v2987 = vunpack.c.l.b16 %v2852
    %v2988 = vunpack.c.l.b16 %v2853
    %v2989 = vunpack.c.l.b16 %v2854
    %v2990 = vunpack.c.l.b16 %v2855
    %v2991 = vunpack.c.l.b16 %v2856
    %v2992 = vunpack.c.l.b16 %v2857
    %v2993 = vunpack.c.l.b16 %v2858
    %v2994 = vunpack.c.l.b16 %v2859
    %v2995 = vunpack.c.l.b16 %v2860
    %v2996 = vunpack.c.l.b16 %v2861
    %v2997 = vunpack.c.l.b16 %v2862
    %v2998 = vunpack.c.l.b16 %v2863
    %v2999 = vunpack.c.l.b16 %v2864
    %v3000 = vunpack.c.l.b16 %v2865
    %v3001 = vpack.c.b16 %v2938, %v2937
    %v3002 = vpack.c.b16 %v2940, %v2939
    %v3003 = vpack.c.b16 %v2942, %v2941
    %v3004 = vpack.c.b16 %v2944, %v2943
    %v3005 = vpack.c.b16 %v2946, %v2945
    %v3006 = vpack.c.b16 %v2948, %v2947
    %v3007 = vpack.c.b16 %v2950, %v2949
    %v3008 = vpack.c.b16 %v2952, %v2951
    %v3009 = vpack.c.b16 %v2954, %v2953
    %v3010 = vpack.c.b16 %v2956, %v2955
    %v3011 = vpack.c.b16 %v2958, %v2957
    %v3012 = vpack.c.b16 %v2960, %v2959
    %v3013 = vpack.c.b16 %v2962, %v2961
    %v3014 = vpack.c.b16 %v2964, %v2963
    %v3015 = vpack.c.b16 %v2966, %v2965
    %v3016 = vpack.c.b16 %v2968, %v2967
    %v3017 = vpack.c.b16 %v2970, %v2969
    %v3018 = vpack.c.b16 %v2972, %v2971
    %v3019 = vpack.c.b16 %v2974, %v2973
    %v3020 = vpack.c.b16 %v2976, %v2975
    %v3021 = vpack.c.b16 %v2978, %v2977
    %v3022 = vpack.c.b16 %v2980, %v2979
    %v3023 = vpack.c.b16 %v2982, %v2981
    %v3024 = vpack.c.b16 %v2984, %v2983
    %v3025 = vpack.c.b16 %v2986, %v2985
    %v3026 = vpack.c.b16 %v2988, %v2987
    %v3027 = vpack.c.b16 %v2990, %v2989
    %v3028 = vpack.c.b16 %v2992, %v2991
    %v3029 = vpack.c.b16 %v2994, %v2993
    %v3030 = vpack.c.b16 %v2996, %v2995
    %v3031 = vpack.c.b16 %v2998, %v2997
    %v3032 = vpack.c.b16 %v3000, %v2999
    %3065 = vmatprep.subr.bf16.mxu0 0
    %3066 = vmatpush1.bf16.msra.mxu0 %v3001
    %3067 = vmatprep.subr.bf16.mxu0 0
    %3068 = vmatpush1.bf16.msra.mxu0 %v3002
    %3069 = vmatprep.subr.bf16.mxu0 0
    %3070 = vmatpush1.bf16.msra.mxu0 %v3003
    %3071 = vmatprep.subr.bf16.mxu0 0
    %3072 = vmatpush1.bf16.msra.mxu0 %v3004
    %3073 = vmatprep.subr.bf16.mxu0 0
    %3074 = vmatpush1.bf16.msra.mxu0 %v3005
    %3075 = vmatprep.subr.bf16.mxu0 0
    %3076 = vmatpush1.bf16.msra.mxu0 %v3006
    %3077 = vmatprep.subr.bf16.mxu0 0
    %3078 = vmatpush1.bf16.msra.mxu0 %v3007
    %3079 = vmatprep.subr.bf16.mxu0 0
    %3080 = vmatpush1.bf16.msra.mxu0 %v3008
    %3081 = vmatprep.subr.bf16.mxu0 0
    %3082 = vmatpush1.bf16.msra.mxu0 %v3009
    %3083 = vmatprep.subr.bf16.mxu0 0
    %3084 = vmatpush1.bf16.msra.mxu0 %v3010
    %3085 = vmatprep.subr.bf16.mxu0 0
    %3086 = vmatpush1.bf16.msra.mxu0 %v3011
    %3087 = vmatprep.subr.bf16.mxu0 0
    %3088 = vmatpush1.bf16.msra.mxu0 %v3012
    %3089 = vmatprep.subr.bf16.mxu0 0
    %3090 = vmatpush1.bf16.msra.mxu0 %v3013
    %3091 = vmatprep.subr.bf16.mxu0 0
    %3092 = vmatpush1.bf16.msra.mxu0 %v3014
    %3093 = vmatprep.subr.bf16.mxu0 0
    %3094 = vmatpush1.bf16.msra.mxu0 %v3015
    %3095 = vmatprep.subr.bf16.mxu0 0
    %3096 = vmatpush1.bf16.msra.mxu0 %v3016
    %3097 = vmatprep.mubr.bf16.mxu0 %v2799
    %3098 = vmatmul.mubr.bf16.gmra.mrb[0].mxu0 %v2798
    %v3099 = vpop.f32.mrb[0].mxu0
    %v3100 = vadd.f32 %v2871, %v3099
    %v3101 = vpop.f32.mrb[0].mxu0
    %v3102 = vpop.f32.mrb[0].mxu0
    %v3103 = vpop.f32.mrb[0].mxu0
    %3104 = vdwg.mxu0
    %3105 = vmatprep.subr.bf16.mxu0 0
    %3106 = vmatpush1.bf16.msra.mxu0 %v3017
    %3107 = vmatprep.subr.bf16.mxu0 0
    %3108 = vmatpush1.bf16.msra.mxu0 %v3018
    %3109 = vmatprep.subr.bf16.mxu0 0
    %3110 = vmatpush1.bf16.msra.mxu0 %v3019
    %3111 = vmatprep.subr.bf16.mxu0 0
    %3112 = vmatpush1.bf16.msra.mxu0 %v3020
    %3113 = vmatprep.subr.bf16.mxu0 0
    %3114 = vmatpush1.bf16.msra.mxu0 %v3021
    %3115 = vmatprep.subr.bf16.mxu0 0
    %3116 = vmatpush1.bf16.msra.mxu0 %v3022
    %3117 = vmatprep.subr.bf16.mxu0 0
    %3118 = vmatpush1.bf16.msra.mxu0 %v3023
    %3119 = vmatprep.subr.bf16.mxu0 0
    %3120 = vmatpush1.bf16.msra.mxu0 %v3024
    %3121 = vmatprep.subr.bf16.mxu0 0
    %3122 = vmatpush1.bf16.msra.mxu0 %v3025
    %3123 = vmatprep.subr.bf16.mxu0 0
    %3124 = vmatpush1.bf16.msra.mxu0 %v3026
    %3125 = vmatprep.subr.bf16.mxu0 0
    %3126 = vmatpush1.bf16.msra.mxu0 %v3027
    %3127 = vmatprep.subr.bf16.mxu0 0
    %3128 = vmatpush1.bf16.msra.mxu0 %v3028
    %3129 = vmatprep.subr.bf16.mxu0 0
    %3130 = vmatpush1.bf16.msra.mxu0 %v3029
    %3131 = vmatprep.subr.bf16.mxu0 0
    %3132 = vmatpush1.bf16.msra.mxu0 %v3030
    %3133 = vmatprep.subr.bf16.mxu0 0
    %3134 = vmatpush1.bf16.msra.mxu0 %v3031
    %3135 = vmatprep.subr.bf16.mxu0 0
    %3136 = vmatpush1.bf16.msra.mxu0 %v3032
    %3137 = vmatprep.mubr.bf16.mxu0 %v2801
    %3138 = vmatmul.mubr.bf16.gmra.mrb[0].mxu0 %v2800
    %v3139 = vpop.f32.mrb[0].mxu0
    %v3140 = vadd.f32 %v3100, %v3139
    %v3141 = vpop.f32.mrb[0].mxu0
    %v3142 = vpop.f32.mrb[0].mxu0
    %v3143 = vpop.f32.mrb[0].mxu0
    %3144 = vdwg.mxu0
    %3145 = vst [vmem:[#allocation37] sm:$0xff] %v3140
    // Predicated region
    $region218: #{tpu_custom_call.1} parent=1 // pred_check
      _
    $region219: #{tpu_custom_call.1} parent=1 // pred_check_branch
      %3147 = sbr.rel (0) target = $region221
    $region220: #{tpu_custom_call.1} parent=1 // pred_region
      %s3149 = ssub.s32 128, 128
      %3150 = vsyncadd [#allocation4], %s3149
      %s3152 = sshll.u32 [#allocation37], 4
      %s3153 = int_to_ptr.vmem [resolvable:$true] %s3152
      %3155 = dma.vmem_to_hbm [thread:$0]  %s3153, 128, %s65, [#allocation4]
    $region221: #{tpu_custom_call.1} parent=1 // pred_fallthru
      _
    // Predicated region
    $region222: #{tpu_custom_call.1} parent=1 // pred_check
      _
    $region223: #{tpu_custom_call.1} parent=1 // pred_check_branch
      %3157 = sbr.rel (0) target = $region225
    $region224: #{tpu_custom_call.1} parent=1 // pred_region
      %3158 = dma.done [#allocation4], 128
    $region225: #{tpu_custom_call.1} parent=1 // pred_fallthru
      _
    %3159 = vsyncpa [#allocation3], 1
    %3160 = vsyncpa [#allocation6], 1
    %3161 = vsyncpa [#allocation9], 1
    %3162 = vsyncpa [#allocation12], 1
    %3163 = vsyncpa [#allocation15], 1
    %3164 = vsyncpa [#allocation18], 1
    %3165 = vsyncpa [#allocation21], 1
    %3166 = vsyncpa [#allocation24], 1
    %3167 = vsyncpa [#allocation27], 1
    %3168 = vsyncpa [#allocation30], 1
    %3169 = vsyncpa [#allocation33], 1
    %3170 = vsyncpa [#allocation36], 1
    %3171 = vsyncpa [#allocation4], 1

</llo_original>
